<compile_context>
chip_gen: v7x
topology: tpu7x:2x2x1
jax: 0.10.0
libtpu: 0.0.40
codegen_flags: <defaults>
</compile_context>

<pallas_src>
import functools

import jax
import jax.numpy as jnp
from jax.experimental import pallas as pl
from jax.experimental.pallas import tpu as pltpu

NUM_ATOM_TYPE = 120                 # num_atom_type (complete_feature=False)
MASK_TOKEN = NUM_ATOM_TYPE - 1      # token used for masked atoms in x_masked
NUM_CLASSES = NUM_ATOM_TYPE         # self.num_classes
EMB_DIM = 32                        # args.gnn_emb_dim

LANE = 128
C_PAD = 128                         # padded atom-type / class dim (lane dense)
D_PAD = 128                         # padded hidden dim (lane dense)


# ------------------------------ kernel ---------------------------------------


def _gin(adj_bf, h, w1, b1, w2, b2, act_last):
    """GIN layer: neighbour+self aggregation then 2-layer MLP.

    bf16 MXU inputs, f32 accumulation; biases / activations stay f32.
    """
    agg = jnp.dot(adj_bf, h.astype(jnp.bfloat16),
                  preferred_element_type=jnp.float32) + h
    z = jnp.dot(agg.astype(jnp.bfloat16), w1,
                preferred_element_type=jnp.float32) + b1
    z = jnp.maximum(z, 0.0)
    z = jnp.dot(z.astype(jnp.bfloat16), w2,
                preferred_element_type=jnp.float32) + b2
    if act_last:
        z = jnp.maximum(z, 0.0)
    return z


def fused_kernel(src_ref, dst_ref, xm_ref, lbl_ref, msk_ref,
                 w_ref, b_ref, out_ref, *, loss_type):
    bn = xm_ref.shape[0]        # total (padded) node count, all graphs stacked
    be = src_ref.shape[0]       # total (padded) edge count

    # ---- block-diagonal adjacency built on the MXU from edge one-hots ------
    src_col = src_ref[...]                                       # (BE, 1) i32
    dst_row = dst_ref[...]                                       # (1, BE) i32
    lane_nodes = jax.lax.broadcasted_iota(jnp.int32, (be, bn), 1)
    sub_nodes = jax.lax.broadcasted_iota(jnp.int32, (bn, be), 0)
    # padded edges carry index -1 -> all-zero one-hot rows/cols (no edge).
    src_oh = (lane_nodes == src_col).astype(jnp.float32).astype(jnp.bfloat16)
    dst_oht = (sub_nodes == dst_row).astype(jnp.float32).astype(jnp.bfloat16)
    # adj[d, s] = #edges with dst=d, src=s  (exact small ints -> bf16 exact
    # as long as edge multiplicity stays below 256).
    adj = jnp.dot(dst_oht, src_oh,
                  preferred_element_type=jnp.float32).astype(jnp.bfloat16)

    # ---- packed weights (static ref windows into the bf16 slab) ------------
    def wrow(i):
        return w_ref[i * D_PAD:(i + 1) * D_PAD, :]

    emb, e1w1, e1w2, e2w1, e2w2, dw1, dw2, wout = (wrow(i) for i in range(8))
    b = b_ref[...]                                               # (8, 128) f32
    e1b1, e1b2 = b[0:1, :], b[1:2, :]
    e2b1, e2b2 = b[2:3, :], b[3:4, :]
    db1, db2 = b[4:5, :], b[5:6, :]
    mask_emb, bout = b[6:7, :], b[7:8, :]

    # ---- node features: one-hot built in-kernel, embedded on the MXU -------
    xm = xm_ref[...]                                             # (BN, 1) i32
    lbl = lbl_ref[...]                                           # (BN, 1) i32
    m = msk_ref[...]                                             # (BN, 1) f32
    class_iota = jax.lax.broadcasted_iota(jnp.int32, (bn, C_PAD), 1)
    x_oh = (class_iota == xm).astype(jnp.float32).astype(jnp.bfloat16)

    h = jnp.dot(x_oh, emb, preferred_element_type=jnp.float32)   # (BN, D_PAD)

    # ---- encoder (tokenizer): 2 GIN layers ----------------------------------
    h = _gin(adj, h, e1w1, e1b1, e1w2, e1b2, True)
    h = _gin(adj, h, e2w1, e2b1, e2w2, e2b2, False)

    # ---- decoder: remask masked nodes with the learned mask embedding ------
    h = h * (1.0 - m) + m * mask_emb

    # decoder GIN layer + linear projection to (padded) num_classes
    h = _gin(adj, h, dw1, db1, dw2, db2, True)
    g_pred = jnp.dot(h.astype(jnp.bfloat16), wout,
                     preferred_element_type=jnp.float32) + bout  # (BN, C_PAD)

    if loss_type == "sce":
        # targets are one-hot (unit norm): 1 - cos = 1 - g_pred[label]/||g_pred||
        # padded class lanes of g_pred are exactly 0 -> norm unaffected.
        sumsq = jnp.sum(g_pred * g_pred, axis=-1, keepdims=True)
        sel = jnp.sum(jnp.where(class_iota == lbl, g_pred, 0.0), axis=-1,
                      keepdims=True)
        per = 1.0 - sel * jax.lax.rsqrt(jnp.maximum(sumsq, 1e-24))
    else:  # 'mse'
        g_nodes = (class_iota == lbl).astype(jnp.float32)
        per = jnp.sum((g_nodes - g_pred) ** 2, axis=-1,
                      keepdims=True) / float(NUM_CLASSES)

    # mean over masked nodes of the whole batch, fully reduced in-kernel.
    loss_sum = jnp.sum(per * m)
    cnt = jnp.maximum(jnp.sum(m), 1.0)                   # guard: no masked node
    out_ref[...] = jnp.broadcast_to(loss_sum / cnt, out_ref.shape)


# ------------------------------ wrapper ---------------------------------------


def _pad2(a, rows, cols):
    return jnp.pad(a, ((0, rows - a.shape[0]), (0, cols - a.shape[1])))


def _pack_params(params):
    """Pack the 16 weights into 2 lane-dense slabs (bf16 weights, f32 biases)."""
    (emb, e1w1, e1b1, e1w2, e1b2, e2w1, e2b1, e2w2, e2b2,
     mask_emb, dw1, db1, dw2, db2, wout, bout) = params
    w_slab = jnp.concatenate(
        [_pad2(emb, C_PAD, D_PAD)]
        + [_pad2(w, D_PAD, D_PAD) for w in (e1w1, e1w2, e2w1, e2w2, dw1, dw2)]
        + [_pad2(wout, D_PAD, C_PAD)], axis=0).astype(jnp.bfloat16)   # (1024,128)
    b_slab = jnp.concatenate(
        [_pad2(v, 1, D_PAD) for v in (e1b1, e1b2, e2b1, e2b2, db1, db2, mask_emb)]
        + [_pad2(bout, 1, C_PAD)], axis=0).astype(jnp.float32)        # (8,128)
    return w_slab, b_slab


@functools.partial(jax.jit, static_argnames=("loss_type",))
def graphmae_pretrainer_forward(x, edge_index, mask_tokens, params,
                                loss_type="sce"):
    """Pallas implementation of GraphMAEPretrainer.forward.

    x           : [B, N, 1] int32 atom-type indices
    edge_index  : [B, 2, E] int32 (src, dst) per graph
    mask_tokens : [B, N]    bool
    """
    B, N, _ = x.shape
    E = edge_index.shape[-1]
    bn, be = B * N, B * E
    bn_pad = -(-bn // 8) * 8            # sublane multiple (128 in the demo)
    be_pad = -(-be // LANE) * LANE      # lane multiple

    # ---- flatten the batch along the node axis (block-diagonal graphs) -----
    x_flat = x[..., 0].reshape(bn).astype(jnp.int32)
    mask_flat = mask_tokens.reshape(bn)
    pad_n = bn_pad - bn
    xm = jnp.pad(jnp.where(mask_flat, MASK_TOKEN, x_flat), (0, pad_n))[:, None]
    lbl = jnp.pad(x_flat, (0, pad_n))[:, None]
    msk = jnp.pad(mask_flat.astype(jnp.float32), (0, pad_n))[:, None]

    # global node ids per edge; padded edges get -1 (matches no node -> no edge)
    offs = (jnp.arange(B, dtype=jnp.int32) * N)[:, None]
    src = (edge_index[:, 0, :].astype(jnp.int32) + offs).reshape(be)
    dst = (edge_index[:, 1, :].astype(jnp.int32) + offs).reshape(be)
    pad_e = be_pad - be
    src = jnp.pad(src, (0, pad_e), constant_values=-1)[:, None]     # (BE, 1)
    dst = jnp.pad(dst, (0, pad_e), constant_values=-1)[None, :]     # (1, BE)

    w_slab, b_slab = _pack_params(params)

    out = pl.pallas_call(
        functools.partial(fused_kernel, loss_type=loss_type),
        out_shape=jax.ShapeDtypeStruct((1, LANE), jnp.float32),
        in_specs=[pl.BlockSpec(memory_space=pltpu.MemorySpace.VMEM)] * 7,
        out_specs=pl.BlockSpec(memory_space=pltpu.MemorySpace.VMEM),
    )(src, dst, xm, lbl, msk, w_slab, b_slab)
    return out[0, 0]


# ------------------------------ reference ------------------------------------


def _ref_forward(x, edge_index, mask_tokens, params, loss_type="sce"):
    (emb, e1w1, e1b1, e1w2, e1b2, e2w1, e2b1, e2w2, e2b2,
     mask_emb, dw1, db1, dw2, db2, wout, bout) = params
    B, N, _ = x.shape
    preds, targets = [], []
    for b in range(B):
        adj = jnp.zeros((N, N), jnp.float32).at[edge_index[b, 1],
                                                edge_index[b, 0]].add(1.0)
        xm = jnp.where(mask_tokens[b], MASK_TOKEN, x[b, :, 0])
        x_oh = jax.nn.one_hot(xm, NUM_ATOM_TYPE, dtype=jnp.float32)

        def gin(h, w1, b1, w2, b2, act_last):
            agg = adj @ h + h
            z = jnp.maximum(agg @ w1 + b1, 0.0) @ w2 + b2
            return jnp.maximum(z, 0.0) if act_last else z

        h = x_oh @ emb
        h = gin(h, e1w1, e1b1, e1w2, e1b2, True)
        h = gin(h, e2w1, e2b1, e2w2, e2b2, False)
        m = mask_tokens[b].astype(jnp.float32)[:, None]
        h = h * (1.0 - m) + m * mask_emb
        h = gin(h, dw1, db1, dw2, db2, True)
        preds.append((h @ wout + bout)[mask_tokens[b]])
        targets.append(jax.nn.one_hot(x[b][mask_tokens[b]][:, 0], NUM_CLASSES,
                                      dtype=jnp.float32))
    g_pred = jnp.concatenate(preds, axis=0)
    g_nodes = jnp.concatenate(targets, axis=0)
    if loss_type == "sce":
        xn = g_nodes / jnp.maximum(
            jnp.linalg.norm(g_nodes, axis=-1, keepdims=True), 1e-12)
        yn = g_pred / jnp.maximum(
            jnp.linalg.norm(g_pred, axis=-1, keepdims=True), 1e-12)
        return jnp.mean(1.0 - jnp.sum(xn * yn, axis=-1))
    return jnp.mean((g_nodes - g_pred) ** 2)


# ------------------------------ main ------------------------------------------


def _init_params(key):
    def w(k, shape, scale=0.1):
        return scale * jax.random.normal(k, shape, jnp.float32)

    ks = jax.random.split(key, 16)
    d = EMB_DIM
    return (
        w(ks[0], (NUM_ATOM_TYPE, d)),                              # atom emb
        w(ks[1], (d, d)), w(ks[2], (1, d)), w(ks[3], (d, d)), w(ks[4], (1, d)),
        w(ks[5], (d, d)), w(ks[6], (1, d)), w(ks[7], (d, d)), w(ks[8], (1, d)),
        w(ks[9], (1, d)),                                          # mask emb
        w(ks[10], (d, d)), w(ks[11], (1, d)), w(ks[12], (d, d)), w(ks[13], (1, d)),
        w(ks[14], (d, NUM_CLASSES)), w(ks[15], (1, NUM_CLASSES)),  # out proj
    )


if __name__ == "__main__":
    key = jax.random.PRNGKey(0)
    k_data, k_edge, k_mask, k_param = jax.random.split(key, 4)

    B, N, E = 4, 32, 64
    # data.x : [B, N, 1] atom-type indices (batched graphs)
    x = jax.random.randint(k_data, (B, N, 1), 0, NUM_ATOM_TYPE - 1,
                           dtype=jnp.int32)
    # data.edge_index : [B, 2, E]
    edge_index = jax.random.randint(k_edge, (B, 2, E), 0, N, dtype=jnp.int32)
    # data.mask_tokens : [B, N] bool (ensure at least one masked node / graph)
    mask_tokens = jax.random.uniform(k_mask, (B, N)) < 0.25
    mask_tokens = mask_tokens.at[:, 0].set(True)

    params = _init_params(k_param)

    loss = graphmae_pretrainer_forward(x, edge_index, mask_tokens, params,
                                       loss_type="sce")
    loss = jax.block_until_ready(loss)

    ref = _ref_forward(x, edge_index, mask_tokens, params, loss_type="sce")
    # Tolerance loosened vs. the f32 reference because the kernel runs all
    # matmuls with bf16 inputs (f32 accumulation), per the perf review.
    assert jnp.allclose(loss, ref, rtol=3e-2, atol=1e-2), (loss, ref)

    print("KERNEL_OK")
</pallas_src>

<mosaic_0001>
module attributes {stable_mosaic.version = 11 : i64} {
  func.func @fused_kernel(%arg0: memref<256x1xi32, #tpu.memory_space<vmem>>, %arg1: memref<1x256xi32, #tpu.memory_space<vmem>>, %arg2: memref<128x1xi32, #tpu.memory_space<vmem>>, %arg3: memref<128x1xi32, #tpu.memory_space<vmem>>, %arg4: memref<128x1xf32, #tpu.memory_space<vmem>>, %arg5: memref<1024x128xbf16, #tpu.memory_space<vmem>>, %arg6: memref<8x128xf32, #tpu.memory_space<vmem>>, %arg7: memref<1x128xf32, #tpu.memory_space<vmem>>) attributes {dimension_semantics = [], scalar_prefetch = 0 : i64, scratch_operands = 0 : i64, tpu.core_type = #tpu.core_type<tc>} {
    %c0 = arith.constant 0 : index
    %c0_0 = arith.constant 0 : index
    %0 = vector.load %arg0[%c0, %c0_0] : memref<256x1xi32, #tpu.memory_space<vmem>>, vector<256x1xi32>
    %c0_1 = arith.constant 0 : index
    %c0_2 = arith.constant 0 : index
    %1 = vector.load %arg1[%c0_1, %c0_2] : memref<1x256xi32, #tpu.memory_space<vmem>>, vector<1x256xi32>
    %2 = tpu.iota {dimensions = array<i32: 1>} : vector<256x128xi32>
    %3 = tpu.iota {dimensions = array<i32: 0>} : vector<128x256xi32>
    %4 = vector.broadcast %0 : vector<256x1xi32> to vector<256x128xi32>
    %5 = arith.cmpi eq, %2, %4 : vector<256x128xi32>
    %6 = arith.extui %5 : vector<256x128xi1> to vector<256x128xi32>
    %7 = arith.sitofp %6 : vector<256x128xi32> to vector<256x128xf32>
    %8 = arith.truncf %7 : vector<256x128xf32> to vector<256x128xbf16>
    %9 = vector.broadcast %1 : vector<1x256xi32> to vector<128x256xi32>
    %10 = arith.cmpi eq, %3, %9 : vector<128x256xi32>
    %11 = arith.extui %10 : vector<128x256xi1> to vector<128x256xi32>
    %12 = arith.sitofp %11 : vector<128x256xi32> to vector<128x256xf32>
    %13 = arith.truncf %12 : vector<128x256xf32> to vector<128x256xbf16>
    %cst = arith.constant dense<0.000000e+00> : vector<128x128xf32>
    %14 = tpu.matmul %13, %8, %cst {dimension_numbers = #tpu.dot_dimension_numbers<[1], [0], [0], [1], [0, 0, 1, 1], [], []>} : vector<128x256xbf16>, vector<256x128xbf16>, vector<128x128xf32> -> vector<128x128xf32>
    %15 = arith.truncf %14 : vector<128x128xf32> to vector<128x128xbf16>
    %c0_3 = arith.constant 0 : index
    %c0_4 = arith.constant 0 : index
    %16 = vector.load %arg5[%c0_3, %c0_4] : memref<1024x128xbf16, #tpu.memory_space<vmem>>, vector<128x128xbf16>
    %c128 = arith.constant 128 : index
    %c0_5 = arith.constant 0 : index
    %17 = vector.load %arg5[%c128, %c0_5] : memref<1024x128xbf16, #tpu.memory_space<vmem>>, vector<128x128xbf16>
    %c256 = arith.constant 256 : index
    %c0_6 = arith.constant 0 : index
    %18 = vector.load %arg5[%c256, %c0_6] : memref<1024x128xbf16, #tpu.memory_space<vmem>>, vector<128x128xbf16>
    %c384 = arith.constant 384 : index
    %c0_7 = arith.constant 0 : index
    %19 = vector.load %arg5[%c384, %c0_7] : memref<1024x128xbf16, #tpu.memory_space<vmem>>, vector<128x128xbf16>
    %c512 = arith.constant 512 : index
    %c0_8 = arith.constant 0 : index
    %20 = vector.load %arg5[%c512, %c0_8] : memref<1024x128xbf16, #tpu.memory_space<vmem>>, vector<128x128xbf16>
    %c640 = arith.constant 640 : index
    %c0_9 = arith.constant 0 : index
    %21 = vector.load %arg5[%c640, %c0_9] : memref<1024x128xbf16, #tpu.memory_space<vmem>>, vector<128x128xbf16>
    %c768 = arith.constant 768 : index
    %c0_10 = arith.constant 0 : index
    %22 = vector.load %arg5[%c768, %c0_10] : memref<1024x128xbf16, #tpu.memory_space<vmem>>, vector<128x128xbf16>
    %c896 = arith.constant 896 : index
    %c0_11 = arith.constant 0 : index
    %23 = vector.load %arg5[%c896, %c0_11] : memref<1024x128xbf16, #tpu.memory_space<vmem>>, vector<128x128xbf16>
    %c0_12 = arith.constant 0 : index
    %c0_13 = arith.constant 0 : index
    %24 = vector.load %arg6[%c0_12, %c0_13] : memref<8x128xf32, #tpu.memory_space<vmem>>, vector<8x128xf32>
    %25 = vector.extract_strided_slice %24 {offsets = [0, 0], sizes = [1, 128], strides = [1, 1]} : vector<8x128xf32> to vector<1x128xf32>
    %26 = vector.extract_strided_slice %24 {offsets = [1, 0], sizes = [1, 128], strides = [1, 1]} : vector<8x128xf32> to vector<1x128xf32>
    %27 = vector.extract_strided_slice %24 {offsets = [2, 0], sizes = [1, 128], strides = [1, 1]} : vector<8x128xf32> to vector<1x128xf32>
    %28 = vector.extract_strided_slice %24 {offsets = [3, 0], sizes = [1, 128], strides = [1, 1]} : vector<8x128xf32> to vector<1x128xf32>
    %29 = vector.extract_strided_slice %24 {offsets = [4, 0], sizes = [1, 128], strides = [1, 1]} : vector<8x128xf32> to vector<1x128xf32>
    %30 = vector.extract_strided_slice %24 {offsets = [5, 0], sizes = [1, 128], strides = [1, 1]} : vector<8x128xf32> to vector<1x128xf32>
    %31 = vector.extract_strided_slice %24 {offsets = [6, 0], sizes = [1, 128], strides = [1, 1]} : vector<8x128xf32> to vector<1x128xf32>
    %32 = vector.extract_strided_slice %24 {offsets = [7, 0], sizes = [1, 128], strides = [1, 1]} : vector<8x128xf32> to vector<1x128xf32>
    %c0_14 = arith.constant 0 : index
    %c0_15 = arith.constant 0 : index
    %33 = vector.load %arg2[%c0_14, %c0_15] : memref<128x1xi32, #tpu.memory_space<vmem>>, vector<128x1xi32>
    %c0_16 = arith.constant 0 : index
    %c0_17 = arith.constant 0 : index
    %34 = vector.load %arg3[%c0_16, %c0_17] : memref<128x1xi32, #tpu.memory_space<vmem>>, vector<128x1xi32>
    %c0_18 = arith.constant 0 : index
    %c0_19 = arith.constant 0 : index
    %35 = vector.load %arg4[%c0_18, %c0_19] : memref<128x1xf32, #tpu.memory_space<vmem>>, vector<128x1xf32>
    %36 = tpu.iota {dimensions = array<i32: 1>} : vector<128x128xi32>
    %37 = vector.broadcast %33 : vector<128x1xi32> to vector<128x128xi32>
    %38 = arith.cmpi eq, %36, %37 : vector<128x128xi32>
    %39 = arith.extui %38 : vector<128x128xi1> to vector<128x128xi32>
    %40 = arith.sitofp %39 : vector<128x128xi32> to vector<128x128xf32>
    %41 = arith.truncf %40 : vector<128x128xf32> to vector<128x128xbf16>
    %cst_20 = arith.constant dense<0.000000e+00> : vector<128x128xf32>
    %42 = tpu.matmul %41, %16, %cst_20 {dimension_numbers = #tpu.dot_dimension_numbers<[1], [0], [0], [1], [0, 0, 1, 1], [], []>} : vector<128x128xbf16>, vector<128x128xbf16>, vector<128x128xf32> -> vector<128x128xf32>
    %43 = arith.truncf %42 : vector<128x128xf32> to vector<128x128xbf16>
    %cst_21 = arith.constant dense<0.000000e+00> : vector<128x128xf32>
    %44 = tpu.matmul %15, %43, %cst_21 {dimension_numbers = #tpu.dot_dimension_numbers<[1], [0], [0], [1], [0, 0, 1, 1], [], []>} : vector<128x128xbf16>, vector<128x128xbf16>, vector<128x128xf32> -> vector<128x128xf32>
    %45 = arith.addf %44, %42 : vector<128x128xf32>
    %46 = arith.truncf %45 : vector<128x128xf32> to vector<128x128xbf16>
    %cst_22 = arith.constant dense<0.000000e+00> : vector<128x128xf32>
    %47 = tpu.matmul %46, %17, %cst_22 {dimension_numbers = #tpu.dot_dimension_numbers<[1], [0], [0], [1], [0, 0, 1, 1], [], []>} : vector<128x128xbf16>, vector<128x128xbf16>, vector<128x128xf32> -> vector<128x128xf32>
    %48 = vector.broadcast %25 : vector<1x128xf32> to vector<128x128xf32>
    %49 = arith.addf %47, %48 : vector<128x128xf32>
    %cst_23 = arith.constant 0.000000e+00 : f32
    %50 = vector.broadcast %cst_23 : f32 to vector<128x128xf32>
    %51 = arith.maximumf %49, %50 : vector<128x128xf32>
    %52 = arith.truncf %51 : vector<128x128xf32> to vector<128x128xbf16>
    %cst_24 = arith.constant dense<0.000000e+00> : vector<128x128xf32>
    %53 = tpu.matmul %52, %18, %cst_24 {dimension_numbers = #tpu.dot_dimension_numbers<[1], [0], [0], [1], [0, 0, 1, 1], [], []>} : vector<128x128xbf16>, vector<128x128xbf16>, vector<128x128xf32> -> vector<128x128xf32>
    %54 = vector.broadcast %26 : vector<1x128xf32> to vector<128x128xf32>
    %55 = arith.addf %53, %54 : vector<128x128xf32>
    %cst_25 = arith.constant 0.000000e+00 : f32
    %56 = vector.broadcast %cst_25 : f32 to vector<128x128xf32>
    %57 = arith.maximumf %55, %56 : vector<128x128xf32>
    %58 = arith.truncf %57 : vector<128x128xf32> to vector<128x128xbf16>
    %cst_26 = arith.constant dense<0.000000e+00> : vector<128x128xf32>
    %59 = tpu.matmul %15, %58, %cst_26 {dimension_numbers = #tpu.dot_dimension_numbers<[1], [0], [0], [1], [0, 0, 1, 1], [], []>} : vector<128x128xbf16>, vector<128x128xbf16>, vector<128x128xf32> -> vector<128x128xf32>
    %60 = arith.addf %59, %57 : vector<128x128xf32>
    %61 = arith.truncf %60 : vector<128x128xf32> to vector<128x128xbf16>
    %cst_27 = arith.constant dense<0.000000e+00> : vector<128x128xf32>
    %62 = tpu.matmul %61, %19, %cst_27 {dimension_numbers = #tpu.dot_dimension_numbers<[1], [0], [0], [1], [0, 0, 1, 1], [], []>} : vector<128x128xbf16>, vector<128x128xbf16>, vector<128x128xf32> -> vector<128x128xf32>
    %63 = vector.broadcast %27 : vector<1x128xf32> to vector<128x128xf32>
    %64 = arith.addf %62, %63 : vector<128x128xf32>
    %cst_28 = arith.constant 0.000000e+00 : f32
    %65 = vector.broadcast %cst_28 : f32 to vector<128x128xf32>
    %66 = arith.maximumf %64, %65 : vector<128x128xf32>
    %67 = arith.truncf %66 : vector<128x128xf32> to vector<128x128xbf16>
    %cst_29 = arith.constant dense<0.000000e+00> : vector<128x128xf32>
    %68 = tpu.matmul %67, %20, %cst_29 {dimension_numbers = #tpu.dot_dimension_numbers<[1], [0], [0], [1], [0, 0, 1, 1], [], []>} : vector<128x128xbf16>, vector<128x128xbf16>, vector<128x128xf32> -> vector<128x128xf32>
    %69 = vector.broadcast %28 : vector<1x128xf32> to vector<128x128xf32>
    %70 = arith.addf %68, %69 : vector<128x128xf32>
    %cst_30 = arith.constant 1.000000e+00 : f32
    %71 = vector.broadcast %cst_30 : f32 to vector<128x1xf32>
    %72 = arith.subf %71, %35 : vector<128x1xf32>
    %73 = vector.broadcast %72 : vector<128x1xf32> to vector<128x128xf32>
    %74 = arith.mulf %70, %73 : vector<128x128xf32>
    %75 = vector.broadcast %35 : vector<128x1xf32> to vector<128x128xf32>
    %76 = vector.broadcast %31 : vector<1x128xf32> to vector<128x128xf32>
    %77 = arith.mulf %75, %76 : vector<128x128xf32>
    %78 = arith.addf %74, %77 : vector<128x128xf32>
    %79 = arith.truncf %78 : vector<128x128xf32> to vector<128x128xbf16>
    %cst_31 = arith.constant dense<0.000000e+00> : vector<128x128xf32>
    %80 = tpu.matmul %15, %79, %cst_31 {dimension_numbers = #tpu.dot_dimension_numbers<[1], [0], [0], [1], [0, 0, 1, 1], [], []>} : vector<128x128xbf16>, vector<128x128xbf16>, vector<128x128xf32> -> vector<128x128xf32>
    %81 = arith.addf %80, %78 : vector<128x128xf32>
    %82 = arith.truncf %81 : vector<128x128xf32> to vector<128x128xbf16>
    %cst_32 = arith.constant dense<0.000000e+00> : vector<128x128xf32>
    %83 = tpu.matmul %82, %21, %cst_32 {dimension_numbers = #tpu.dot_dimension_numbers<[1], [0], [0], [1], [0, 0, 1, 1], [], []>} : vector<128x128xbf16>, vector<128x128xbf16>, vector<128x128xf32> -> vector<128x128xf32>
    %84 = vector.broadcast %29 : vector<1x128xf32> to vector<128x128xf32>
    %85 = arith.addf %83, %84 : vector<128x128xf32>
    %cst_33 = arith.constant 0.000000e+00 : f32
    %86 = vector.broadcast %cst_33 : f32 to vector<128x128xf32>
    %87 = arith.maximumf %85, %86 : vector<128x128xf32>
    %88 = arith.truncf %87 : vector<128x128xf32> to vector<128x128xbf16>
    %cst_34 = arith.constant dense<0.000000e+00> : vector<128x128xf32>
    %89 = tpu.matmul %88, %22, %cst_34 {dimension_numbers = #tpu.dot_dimension_numbers<[1], [0], [0], [1], [0, 0, 1, 1], [], []>} : vector<128x128xbf16>, vector<128x128xbf16>, vector<128x128xf32> -> vector<128x128xf32>
    %90 = vector.broadcast %30 : vector<1x128xf32> to vector<128x128xf32>
    %91 = arith.addf %89, %90 : vector<128x128xf32>
    %cst_35 = arith.constant 0.000000e+00 : f32
    %92 = vector.broadcast %cst_35 : f32 to vector<128x128xf32>
    %93 = arith.maximumf %91, %92 : vector<128x128xf32>
    %94 = arith.truncf %93 : vector<128x128xf32> to vector<128x128xbf16>
    %cst_36 = arith.constant dense<0.000000e+00> : vector<128x128xf32>
    %95 = tpu.matmul %94, %23, %cst_36 {dimension_numbers = #tpu.dot_dimension_numbers<[1], [0], [0], [1], [0, 0, 1, 1], [], []>} : vector<128x128xbf16>, vector<128x128xbf16>, vector<128x128xf32> -> vector<128x128xf32>
    %96 = vector.broadcast %32 : vector<1x128xf32> to vector<128x128xf32>
    %97 = arith.addf %95, %96 : vector<128x128xf32>
    %98 = arith.mulf %97, %97 : vector<128x128xf32>
    %cst_37 = arith.constant dense<0.000000e+00> : vector<128xf32>
    %99 = vector.multi_reduction <add>, %98, %cst_37 [1] : vector<128x128xf32> to vector<128xf32>
    %100 = vector.shape_cast %99 : vector<128xf32> to vector<128x1xf32>
    %101 = vector.broadcast %34 : vector<128x1xi32> to vector<128x128xi32>
    %102 = arith.cmpi eq, %36, %101 : vector<128x128xi32>
    %cst_38 = arith.constant 0.000000e+00 : f32
    %103 = vector.broadcast %cst_38 : f32 to vector<128x128xf32>
    %104 = arith.select %102, %97, %103 : vector<128x128xi1>, vector<128x128xf32>
    %cst_39 = arith.constant dense<0.000000e+00> : vector<128xf32>
    %105 = vector.multi_reduction <add>, %104, %cst_39 [1] : vector<128x128xf32> to vector<128xf32>
    %106 = vector.shape_cast %105 : vector<128xf32> to vector<128x1xf32>
    %cst_40 = arith.constant 1.000000e-24 : f32
    %107 = vector.broadcast %cst_40 : f32 to vector<128x1xf32>
    %108 = arith.maximumf %100, %107 : vector<128x1xf32>
    %109 = math.rsqrt %108 : vector<128x1xf32>
    %110 = arith.mulf %106, %109 : vector<128x1xf32>
    %cst_41 = arith.constant 1.000000e+00 : f32
    %111 = vector.broadcast %cst_41 : f32 to vector<128x1xf32>
    %112 = arith.subf %111, %110 : vector<128x1xf32>
    %113 = arith.mulf %112, %35 : vector<128x1xf32>
    %114 = vector.shape_cast %113 : vector<128x1xf32> to vector<1x128x1xf32>
    %cst_42 = arith.constant dense<0.000000e+00> : vector<1xf32>
    %115 = vector.multi_reduction <add>, %114, %cst_42 [1, 2] : vector<1x128x1xf32> to vector<1xf32>
    %116 = vector.shape_cast %115 : vector<1xf32> to vector<1x1x1xf32>
    %117 = vector.extract %116[0, 0, 0] : f32 from vector<1x1x1xf32>
    %118 = vector.shape_cast %35 : vector<128x1xf32> to vector<1x128x1xf32>
    %cst_43 = arith.constant dense<0.000000e+00> : vector<1xf32>
    %119 = vector.multi_reduction <add>, %118, %cst_43 [1, 2] : vector<1x128x1xf32> to vector<1xf32>
    %120 = vector.shape_cast %119 : vector<1xf32> to vector<1x1x1xf32>
    %121 = vector.extract %120[0, 0, 0] : f32 from vector<1x1x1xf32>
    %cst_44 = arith.constant 1.000000e+00 : f32
    %122 = arith.maximumf %121, %cst_44 : f32
    %123 = arith.divf %117, %122 : f32
    %124 = vector.broadcast %123 : f32 to vector<1x128xf32>
    %c0_45 = arith.constant 0 : index
    %c0_46 = arith.constant 0 : index
    %125 = vector.load %arg7[%c0_45, %c0_46] : memref<1x128xf32, #tpu.memory_space<vmem>>, vector<1x128xf32>
    tpu.vector_store %arg7[%c0_45, %c0_46], %124 {strides = array<i32>} : memref<1x128xf32, #tpu.memory_space<vmem>>, vector<1x128xf32>,
    return
  }
}

</mosaic_0001>

<llo_original>
// kernel: graphmae_pretrainer_forward.1
$region0: #{graphmae_pretrainer_forward.1}
  #allocation0 [shape = 'u32[]', space=smem, size = 0x4, offset = 0x4, fixed_abs, tag = 'smem constant byte address 0x4 - core index']
  #allocation1 [shape = 'u32[144,128]{1,0:T(1,128)}', space=vmem, size = 0x12000, scoped, tag = 'internal scratch']
  %s0 = inlined_call_operand.vmem [shape: s32[256,1], index: 0, kind: input, shape index: {}]
  %s1 = inlined_call_operand.vmem [shape: s32[1,256], index: 1, kind: input, shape index: {}]
  %s2 = inlined_call_operand.vmem [shape: s32[128,1], index: 2, kind: input, shape index: {}]
  %s3 = inlined_call_operand.vmem [shape: s32[128,1], index: 3, kind: input, shape index: {}]
  %s4 = inlined_call_operand.vmem [shape: f32[128,1], index: 4, kind: input, shape index: {}]
  %s5 = inlined_call_operand.vmem [shape: bf16[1024,128], index: 5, kind: input, shape index: {}]
  %s6 = inlined_call_operand.vmem [shape: f32[8,128], index: 6, kind: input, shape index: {}]
  %s7 = inlined_call_operand.hbm [shape: f32[1,128], index: 7, kind: output, shape index: {}]
  %s8 = sld [smem:[#allocation0]]
  $region38: #{graphmae_pretrainer_forward.1} parent=0
    _
  %s10 = ssub.s32 1, %s8
  %s11 = scalar_select 0, %s10, %s8
  $region1: #{graphmae_pretrainer_forward.1} parent=0
    #allocation2 [shape = 'u8[512]{0}', space=vmem, size = 0x400, scoped, tag = 'output window, operand 0, single buffered']
    #allocation3 [shape = 's32[1]{0}', space=sflag, size = 0x4, scoped, tag = 'scoped memory for graphmae_pretrainer_forward.1']
    %12 = vsyncpa [#allocation3], 0
    // Predicated region
    $region2: #{graphmae_pretrainer_forward.1} parent=1 // pred_check
      _
    $region3: #{graphmae_pretrainer_forward.1} parent=1 // pred_check_branch
      %14 = sbr.rel (0) target = $region5
    $region4: #{graphmae_pretrainer_forward.1} parent=1 // pred_region
      _
    $region5: #{graphmae_pretrainer_forward.1} parent=1 // pred_fallthru
      _
    // Predicated region
    $region6: #{graphmae_pretrainer_forward.1} parent=1 // pred_check
      _
    $region7: #{graphmae_pretrainer_forward.1} parent=1 // pred_check_branch
      %16 = sbr.rel (0) target = $region9
    $region8: #{graphmae_pretrainer_forward.1} parent=1 // pred_region
      _
    $region9: #{graphmae_pretrainer_forward.1} parent=1 // pred_fallthru
      _
    // Predicated region
    $region10: #{graphmae_pretrainer_forward.1} parent=1 // pred_check
      _
    $region11: #{graphmae_pretrainer_forward.1} parent=1 // pred_check_branch
      %18 = sbr.rel (0) target = $region13
    $region12: #{graphmae_pretrainer_forward.1} parent=1 // pred_region
      _
    $region13: #{graphmae_pretrainer_forward.1} parent=1 // pred_fallthru
      _
    // Predicated region
    $region14: #{graphmae_pretrainer_forward.1} parent=1 // pred_check
      _
    $region15: #{graphmae_pretrainer_forward.1} parent=1 // pred_check_branch
      %20 = sbr.rel (0) target = $region17
    $region16: #{graphmae_pretrainer_forward.1} parent=1 // pred_region
      _
    $region17: #{graphmae_pretrainer_forward.1} parent=1 // pred_fallthru
      _
    // Predicated region
    $region18: #{graphmae_pretrainer_forward.1} parent=1 // pred_check
      _
    $region19: #{graphmae_pretrainer_forward.1} parent=1 // pred_check_branch
      %22 = sbr.rel (0) target = $region21
    $region20: #{graphmae_pretrainer_forward.1} parent=1 // pred_region
      _
    $region21: #{graphmae_pretrainer_forward.1} parent=1 // pred_fallthru
      _
    // Predicated region
    $region22: #{graphmae_pretrainer_forward.1} parent=1 // pred_check
      _
    $region23: #{graphmae_pretrainer_forward.1} parent=1 // pred_check_branch
      %24 = sbr.rel (0) target = $region25
    $region24: #{graphmae_pretrainer_forward.1} parent=1 // pred_region
      _
    $region25: #{graphmae_pretrainer_forward.1} parent=1 // pred_fallthru
      _
    // Predicated region
    $region26: #{graphmae_pretrainer_forward.1} parent=1 // pred_check
      _
    $region27: #{graphmae_pretrainer_forward.1} parent=1 // pred_check_branch
      %26 = sbr.rel (0) target = $region29
    $region28: #{graphmae_pretrainer_forward.1} parent=1 // pred_region
      _
    $region29: #{graphmae_pretrainer_forward.1} parent=1 // pred_fallthru
      _
    %v28 = vld [vmem:[%s0] sm:$0xff]
    %v29 = vld [vmem:[%s0 + $0x8] sm:$0xff]
    %v30 = vld [vmem:[%s0 + $0x10] sm:$0xff]
    %v31 = vld [vmem:[%s0 + $0x18] sm:$0xff]
    %v32 = vld [vmem:[%s0 + $0x20] sm:$0xff]
    %v33 = vld [vmem:[%s0 + $0x28] sm:$0xff]
    %v34 = vld [vmem:[%s0 + $0x30] sm:$0xff]
    %v35 = vld [vmem:[%s0 + $0x38] sm:$0xff]
    %v36 = vld [vmem:[%s0 + $0x40] sm:$0xff]
    %v37 = vld [vmem:[%s0 + $0x48] sm:$0xff]
    %v38 = vld [vmem:[%s0 + $0x50] sm:$0xff]
    %v39 = vld [vmem:[%s0 + $0x58] sm:$0xff]
    %v40 = vld [vmem:[%s0 + $0x60] sm:$0xff]
    %v41 = vld [vmem:[%s0 + $0x68] sm:$0xff]
    %v42 = vld [vmem:[%s0 + $0x70] sm:$0xff]
    %v43 = vld [vmem:[%s0 + $0x78] sm:$0xff]
    %v44 = vld [vmem:[%s0 + $0x80] sm:$0xff]
    %v45 = vld [vmem:[%s0 + $0x88] sm:$0xff]
    %v46 = vld [vmem:[%s0 + $0x90] sm:$0xff]
    %v47 = vld [vmem:[%s0 + $0x98] sm:$0xff]
    %v48 = vld [vmem:[%s0 + $0xa0] sm:$0xff]
    %v49 = vld [vmem:[%s0 + $0xa8] sm:$0xff]
    %v50 = vld [vmem:[%s0 + $0xb0] sm:$0xff]
    %v51 = vld [vmem:[%s0 + $0xb8] sm:$0xff]
    %v52 = vld [vmem:[%s0 + $0xc0] sm:$0xff]
    %v53 = vld [vmem:[%s0 + $0xc8] sm:$0xff]
    %v54 = vld [vmem:[%s0 + $0xd0] sm:$0xff]
    %v55 = vld [vmem:[%s0 + $0xd8] sm:$0xff]
    %v56 = vld [vmem:[%s0 + $0xe0] sm:$0xff]
    %v57 = vld [vmem:[%s0 + $0xe8] sm:$0xff]
    %v58 = vld [vmem:[%s0 + $0xf0] sm:$0xff]
    %v59 = vld [vmem:[%s0 + $0xf8] sm:$0xff]
    %v60 = vld [vmem:[%s1] sm:$0x3]
    %v61 = vlaneseq
    %v62 = vand.u32 %v61, 127
    %v63 = vlaneseq
    %v64 = vshrl.u32 %v63, 7
    %v65 = vadd.s32 %v64, 8
    %v66 = vadd.s32 %v64, 16
    %v67 = vadd.s32 %v64, 24
    %v68 = vadd.s32 %v64, 32
    %v69 = vadd.s32 %v64, 40
    %v70 = vadd.s32 %v64, 48
    %v71 = vadd.s32 %v64, 56
    %v72 = vadd.s32 %v64, 64
    %v73 = vadd.s32 %v64, 72
    %v74 = vadd.s32 %v64, 80
    %v75 = vadd.s32 %v64, 88
    %v76 = vadd.s32 %v64, 96
    %v77 = vadd.s32 %v64, 104
    %v78 = vadd.s32 %v64, 112
    %v79 = vadd.s32 %v64, 120
    %80 = vset.pattern.permute.xlu0 0
    %81 = vperm.xlu0 %80, %v28
    %v82 = vpop.permute.xlu0 %81
    %83 = vset.pattern.permute.xlu0 0
    %84 = vperm.xlu0 %83, %v29
    %v85 = vpop.permute.xlu0 %84
    %86 = vset.pattern.permute.xlu0 0
    %87 = vperm.xlu0 %86, %v30
    %v88 = vpop.permute.xlu0 %87
    %89 = vset.pattern.permute.xlu0 0
    %90 = vperm.xlu0 %89, %v31
    %v91 = vpop.permute.xlu0 %90
    %92 = vset.pattern.permute.xlu0 0
    %93 = vperm.xlu0 %92, %v32
    %v94 = vpop.permute.xlu0 %93
    %95 = vset.pattern.permute.xlu0 0
    %96 = vperm.xlu0 %95, %v33
    %v97 = vpop.permute.xlu0 %96
    %98 = vset.pattern.permute.xlu0 0
    %99 = vperm.xlu0 %98, %v34
    %v100 = vpop.permute.xlu0 %99
    %101 = vset.pattern.permute.xlu0 0
    %102 = vperm.xlu0 %101, %v35
    %v103 = vpop.permute.xlu0 %102
    %104 = vset.pattern.permute.xlu0 0
    %105 = vperm.xlu0 %104, %v36
    %v106 = vpop.permute.xlu0 %105
    %107 = vset.pattern.permute.xlu0 0
    %108 = vperm.xlu0 %107, %v37
    %v109 = vpop.permute.xlu0 %108
    %110 = vset.pattern.permute.xlu0 0
    %111 = vperm.xlu0 %110, %v38
    %v112 = vpop.permute.xlu0 %111
    %113 = vset.pattern.permute.xlu0 0
    %114 = vperm.xlu0 %113, %v39
    %v115 = vpop.permute.xlu0 %114
    %116 = vset.pattern.permute.xlu0 0
    %117 = vperm.xlu0 %116, %v40
    %v118 = vpop.permute.xlu0 %117
    %119 = vset.pattern.permute.xlu0 0
    %120 = vperm.xlu0 %119, %v41
    %v121 = vpop.permute.xlu0 %120
    %122 = vset.pattern.permute.xlu0 0
    %123 = vperm.xlu0 %122, %v42
    %v124 = vpop.permute.xlu0 %123
    %125 = vset.pattern.permute.xlu0 0
    %126 = vperm.xlu0 %125, %v43
    %v127 = vpop.permute.xlu0 %126
    %128 = vset.pattern.permute.xlu0 0
    %129 = vperm.xlu0 %128, %v44
    %v130 = vpop.permute.xlu0 %129
    %131 = vset.pattern.permute.xlu0 0
    %132 = vperm.xlu0 %131, %v45
    %v133 = vpop.permute.xlu0 %132
    %134 = vset.pattern.permute.xlu0 0
    %135 = vperm.xlu0 %134, %v46
    %v136 = vpop.permute.xlu0 %135
    %137 = vset.pattern.permute.xlu0 0
    %138 = vperm.xlu0 %137, %v47
    %v139 = vpop.permute.xlu0 %138
    %140 = vset.pattern.permute.xlu0 0
    %141 = vperm.xlu0 %140, %v48
    %v142 = vpop.permute.xlu0 %141
    %143 = vset.pattern.permute.xlu0 0
    %144 = vperm.xlu0 %143, %v49
    %v145 = vpop.permute.xlu0 %144
    %146 = vset.pattern.permute.xlu0 0
    %147 = vperm.xlu0 %146, %v50
    %v148 = vpop.permute.xlu0 %147
    %149 = vset.pattern.permute.xlu0 0
    %150 = vperm.xlu0 %149, %v51
    %v151 = vpop.permute.xlu0 %150
    %152 = vset.pattern.permute.xlu0 0
    %153 = vperm.xlu0 %152, %v52
    %v154 = vpop.permute.xlu0 %153
    %155 = vset.pattern.permute.xlu0 0
    %156 = vperm.xlu0 %155, %v53
    %v157 = vpop.permute.xlu0 %156
    %158 = vset.pattern.permute.xlu0 0
    %159 = vperm.xlu0 %158, %v54
    %v160 = vpop.permute.xlu0 %159
    %161 = vset.pattern.permute.xlu0 0
    %162 = vperm.xlu0 %161, %v55
    %v163 = vpop.permute.xlu0 %162
    %164 = vset.pattern.permute.xlu0 0
    %165 = vperm.xlu0 %164, %v56
    %v166 = vpop.permute.xlu0 %165
    %167 = vset.pattern.permute.xlu0 0
    %168 = vperm.xlu0 %167, %v57
    %v169 = vpop.permute.xlu0 %168
    %170 = vset.pattern.permute.xlu0 0
    %171 = vperm.xlu0 %170, %v58
    %v172 = vpop.permute.xlu0 %171
    %173 = vset.pattern.permute.xlu0 0
    %174 = vperm.xlu0 %173, %v59
    %v175 = vpop.permute.xlu0 %174
    %vm176 = vcmp.eq.s32.totalorder %v62, %v82
    %vm177 = vcmp.eq.s32.totalorder %v62, %v85
    %vm178 = vcmp.eq.s32.totalorder %v62, %v88
    %vm179 = vcmp.eq.s32.totalorder %v62, %v91
    %vm180 = vcmp.eq.s32.totalorder %v62, %v94
    %vm181 = vcmp.eq.s32.totalorder %v62, %v97
    %vm182 = vcmp.eq.s32.totalorder %v62, %v100
    %vm183 = vcmp.eq.s32.totalorder %v62, %v103
    %vm184 = vcmp.eq.s32.totalorder %v62, %v106
    %vm185 = vcmp.eq.s32.totalorder %v62, %v109
    %vm186 = vcmp.eq.s32.totalorder %v62, %v112
    %vm187 = vcmp.eq.s32.totalorder %v62, %v115
    %vm188 = vcmp.eq.s32.totalorder %v62, %v118
    %vm189 = vcmp.eq.s32.totalorder %v62, %v121
    %vm190 = vcmp.eq.s32.totalorder %v62, %v124
    %vm191 = vcmp.eq.s32.totalorder %v62, %v127
    %vm192 = vcmp.eq.s32.totalorder %v62, %v130
    %vm193 = vcmp.eq.s32.totalorder %v62, %v133
    %vm194 = vcmp.eq.s32.totalorder %v62, %v136
    %vm195 = vcmp.eq.s32.totalorder %v62, %v139
    %vm196 = vcmp.eq.s32.totalorder %v62, %v142
    %vm197 = vcmp.eq.s32.totalorder %v62, %v145
    %vm198 = vcmp.eq.s32.totalorder %v62, %v148
    %vm199 = vcmp.eq.s32.totalorder %v62, %v151
    %vm200 = vcmp.eq.s32.totalorder %v62, %v154
    %vm201 = vcmp.eq.s32.totalorder %v62, %v157
    %vm202 = vcmp.eq.s32.totalorder %v62, %v160
    %vm203 = vcmp.eq.s32.totalorder %v62, %v163
    %vm204 = vcmp.eq.s32.totalorder %v62, %v166
    %vm205 = vcmp.eq.s32.totalorder %v62, %v169
    %vm206 = vcmp.eq.s32.totalorder %v62, %v172
    %vm207 = vcmp.eq.s32.totalorder %v62, %v175
    %v208 = vsel %vm176, 1, 0
    %v209 = vsel %vm177, 1, 0
    %v210 = vsel %vm178, 1, 0
    %v211 = vsel %vm179, 1, 0
    %v212 = vsel %vm180, 1, 0
    %v213 = vsel %vm181, 1, 0
    %v214 = vsel %vm182, 1, 0
    %v215 = vsel %vm183, 1, 0
    %v216 = vsel %vm184, 1, 0
    %v217 = vsel %vm185, 1, 0
    %v218 = vsel %vm186, 1, 0
    %v219 = vsel %vm187, 1, 0
    %v220 = vsel %vm188, 1, 0
    %v221 = vsel %vm189, 1, 0
    %v222 = vsel %vm190, 1, 0
    %v223 = vsel %vm191, 1, 0
    %v224 = vsel %vm192, 1, 0
    %v225 = vsel %vm193, 1, 0
    %v226 = vsel %vm194, 1, 0
    %v227 = vsel %vm195, 1, 0
    %v228 = vsel %vm196, 1, 0
    %v229 = vsel %vm197, 1, 0
    %v230 = vsel %vm198, 1, 0
    %v231 = vsel %vm199, 1, 0
    %v232 = vsel %vm200, 1, 0
    %v233 = vsel %vm201, 1, 0
    %v234 = vsel %vm202, 1, 0
    %v235 = vsel %vm203, 1, 0
    %v236 = vsel %vm204, 1, 0
    %v237 = vsel %vm205, 1, 0
    %v238 = vsel %vm206, 1, 0
    %v239 = vsel %vm207, 1, 0
    %v240 = vcvt.s32.f32 %v208
    %v241 = vcvt.s32.f32 %v209
    %v242 = vcvt.s32.f32 %v210
    %v243 = vcvt.s32.f32 %v211
    %v244 = vcvt.s32.f32 %v212
    %v245 = vcvt.s32.f32 %v213
    %v246 = vcvt.s32.f32 %v214
    %v247 = vcvt.s32.f32 %v215
    %v248 = vcvt.s32.f32 %v216
    %v249 = vcvt.s32.f32 %v217
    %v250 = vcvt.s32.f32 %v218
    %v251 = vcvt.s32.f32 %v219
    %v252 = vcvt.s32.f32 %v220
    %v253 = vcvt.s32.f32 %v221
    %v254 = vcvt.s32.f32 %v222
    %v255 = vcvt.s32.f32 %v223
    %v256 = vcvt.s32.f32 %v224
    %v257 = vcvt.s32.f32 %v225
    %v258 = vcvt.s32.f32 %v226
    %v259 = vcvt.s32.f32 %v227
    %v260 = vcvt.s32.f32 %v228
    %v261 = vcvt.s32.f32 %v229
    %v262 = vcvt.s32.f32 %v230
    %v263 = vcvt.s32.f32 %v231
    %v264 = vcvt.s32.f32 %v232
    %v265 = vcvt.s32.f32 %v233
    %v266 = vcvt.s32.f32 %v234
    %v267 = vcvt.s32.f32 %v235
    %v268 = vcvt.s32.f32 %v236
    %v269 = vcvt.s32.f32 %v237
    %v270 = vcvt.s32.f32 %v238
    %v271 = vcvt.s32.f32 %v239
    %v272 = vpack.c.bf16 %v241, %v240
    %v273 = vpack.c.bf16 %v243, %v242
    %v274 = vpack.c.bf16 %v245, %v244
    %v275 = vpack.c.bf16 %v247, %v246
    %v276 = vpack.c.bf16 %v249, %v248
    %v277 = vpack.c.bf16 %v251, %v250
    %v278 = vpack.c.bf16 %v253, %v252
    %v279 = vpack.c.bf16 %v255, %v254
    %v280 = vpack.c.bf16 %v257, %v256
    %v281 = vpack.c.bf16 %v259, %v258
    %v282 = vpack.c.bf16 %v261, %v260
    %v283 = vpack.c.bf16 %v263, %v262
    %v284 = vpack.c.bf16 %v265, %v264
    %v285 = vpack.c.bf16 %v267, %v266
    %v286 = vpack.c.bf16 %v269, %v268
    %v287 = vpack.c.bf16 %v271, %v270
    %v288 = vlaneseq
    %v289 = vshrl.u32 %v288, 7
    %v290 = vsub.s32 0, %v289
    %v291 = vrot.slane %v60, %v290
    %v292 = vlaneseq
    %v293 = vshrl.u32 %v292, 7
    %v294 = vsub.s32 1, %v293
    %v295 = vrot.slane %v60, %v294
    %vm296 = vcmp.eq.s32.totalorder %v64, %v291
    %vm297 = vcmp.eq.s32.totalorder %v64, %v295
    %vm298 = vcmp.eq.s32.totalorder %v65, %v291
    %vm299 = vcmp.eq.s32.totalorder %v65, %v295
    %vm300 = vcmp.eq.s32.totalorder %v66, %v291
    %vm301 = vcmp.eq.s32.totalorder %v66, %v295
    %vm302 = vcmp.eq.s32.totalorder %v67, %v291
    %vm303 = vcmp.eq.s32.totalorder %v67, %v295
    %vm304 = vcmp.eq.s32.totalorder %v68, %v291
    %vm305 = vcmp.eq.s32.totalorder %v68, %v295
    %vm306 = vcmp.eq.s32.totalorder %v69, %v291
    %vm307 = vcmp.eq.s32.totalorder %v69, %v295
    %vm308 = vcmp.eq.s32.totalorder %v70, %v291
    %vm309 = vcmp.eq.s32.totalorder %v70, %v295
    %vm310 = vcmp.eq.s32.totalorder %v71, %v291
    %vm311 = vcmp.eq.s32.totalorder %v71, %v295
    %vm312 = vcmp.eq.s32.totalorder %v72, %v291
    %vm313 = vcmp.eq.s32.totalorder %v72, %v295
    %vm314 = vcmp.eq.s32.totalorder %v73, %v291
    %vm315 = vcmp.eq.s32.totalorder %v73, %v295
    %vm316 = vcmp.eq.s32.totalorder %v74, %v291
    %vm317 = vcmp.eq.s32.totalorder %v74, %v295
    %vm318 = vcmp.eq.s32.totalorder %v75, %v291
    %vm319 = vcmp.eq.s32.totalorder %v75, %v295
    %vm320 = vcmp.eq.s32.totalorder %v76, %v291
    %vm321 = vcmp.eq.s32.totalorder %v76, %v295
    %vm322 = vcmp.eq.s32.totalorder %v77, %v291
    %vm323 = vcmp.eq.s32.totalorder %v77, %v295
    %vm324 = vcmp.eq.s32.totalorder %v78, %v291
    %vm325 = vcmp.eq.s32.totalorder %v78, %v295
    %vm326 = vcmp.eq.s32.totalorder %v79, %v291
    %vm327 = vcmp.eq.s32.totalorder %v79, %v295
    %v328 = vsel %vm296, 1, 0
    %v329 = vsel %vm297, 1, 0
    %v330 = vsel %vm298, 1, 0
    %v331 = vsel %vm299, 1, 0
    %v332 = vsel %vm300, 1, 0
    %v333 = vsel %vm301, 1, 0
    %v334 = vsel %vm302, 1, 0
    %v335 = vsel %vm303, 1, 0
    %v336 = vsel %vm304, 1, 0
    %v337 = vsel %vm305, 1, 0
    %v338 = vsel %vm306, 1, 0
    %v339 = vsel %vm307, 1, 0
    %v340 = vsel %vm308, 1, 0
    %v341 = vsel %vm309, 1, 0
    %v342 = vsel %vm310, 1, 0
    %v343 = vsel %vm311, 1, 0
    %v344 = vsel %vm312, 1, 0
    %v345 = vsel %vm313, 1, 0
    %v346 = vsel %vm314, 1, 0
    %v347 = vsel %vm315, 1, 0
    %v348 = vsel %vm316, 1, 0
    %v349 = vsel %vm317, 1, 0
    %v350 = vsel %vm318, 1, 0
    %v351 = vsel %vm319, 1, 0
    %v352 = vsel %vm320, 1, 0
    %v353 = vsel %vm321, 1, 0
    %v354 = vsel %vm322, 1, 0
    %v355 = vsel %vm323, 1, 0
    %v356 = vsel %vm324, 1, 0
    %v357 = vsel %vm325, 1, 0
    %v358 = vsel %vm326, 1, 0
    %v359 = vsel %vm327, 1, 0
    %v360 = vcvt.s32.f32 %v328
    %v361 = vcvt.s32.f32 %v329
    %v362 = vcvt.s32.f32 %v330
    %v363 = vcvt.s32.f32 %v331
    %v364 = vcvt.s32.f32 %v332
    %v365 = vcvt.s32.f32 %v333
    %v366 = vcvt.s32.f32 %v334
    %v367 = vcvt.s32.f32 %v335
    %v368 = vcvt.s32.f32 %v336
    %v369 = vcvt.s32.f32 %v337
    %v370 = vcvt.s32.f32 %v338
    %v371 = vcvt.s32.f32 %v339
    %v372 = vcvt.s32.f32 %v340
    %v373 = vcvt.s32.f32 %v341
    %v374 = vcvt.s32.f32 %v342
    %v375 = vcvt.s32.f32 %v343
    %v376 = vcvt.s32.f32 %v344
    %v377 = vcvt.s32.f32 %v345
    %v378 = vcvt.s32.f32 %v346
    %v379 = vcvt.s32.f32 %v347
    %v380 = vcvt.s32.f32 %v348
    %v381 = vcvt.s32.f32 %v349
    %v382 = vcvt.s32.f32 %v350
    %v383 = vcvt.s32.f32 %v351
    %v384 = vcvt.s32.f32 %v352
    %v385 = vcvt.s32.f32 %v353
    %v386 = vcvt.s32.f32 %v354
    %v387 = vcvt.s32.f32 %v355
    %v388 = vcvt.s32.f32 %v356
    %v389 = vcvt.s32.f32 %v357
    %v390 = vcvt.s32.f32 %v358
    %v391 = vcvt.s32.f32 %v359
    %v392 = vpack.c.bf16 %v362, %v360
    %v393 = vpack.c.bf16 %v363, %v361
    %v394 = vpack.c.bf16 %v366, %v364
    %v395 = vpack.c.bf16 %v367, %v365
    %v396 = vpack.c.bf16 %v370, %v368
    %v397 = vpack.c.bf16 %v371, %v369
    %v398 = vpack.c.bf16 %v374, %v372
    %v399 = vpack.c.bf16 %v375, %v373
    %v400 = vpack.c.bf16 %v378, %v376
    %v401 = vpack.c.bf16 %v379, %v377
    %v402 = vpack.c.bf16 %v382, %v380
    %v403 = vpack.c.bf16 %v383, %v381
    %v404 = vpack.c.bf16 %v386, %v384
    %v405 = vpack.c.bf16 %v387, %v385
    %v406 = vpack.c.bf16 %v390, %v388
    %v407 = vpack.c.bf16 %v391, %v389
    %408 = vmatprep.subr.bf16.mxu0 0
    %409 = vmatpush1.bf16.msra.mxu0 %v272
    %410 = vmatprep.subr.bf16.mxu0 0
    %411 = vmatpush1.bf16.msra.mxu0 %v273
    %412 = vmatprep.subr.bf16.mxu0 0
    %413 = vmatpush1.bf16.msra.mxu0 %v274
    %414 = vmatprep.subr.bf16.mxu0 0
    %415 = vmatpush1.bf16.msra.mxu0 %v275
    %416 = vmatprep.subr.bf16.mxu0 0
    %417 = vmatpush1.bf16.msra.mxu0 %v276
    %418 = vmatprep.subr.bf16.mxu0 0
    %419 = vmatpush1.bf16.msra.mxu0 %v277
    %420 = vmatprep.subr.bf16.mxu0 0
    %421 = vmatpush1.bf16.msra.mxu0 %v278
    %422 = vmatprep.subr.bf16.mxu0 0
    %423 = vmatpush1.bf16.msra.mxu0 %v279
    %424 = vmatprep.subr.bf16.mxu0 0
    %425 = vmatpush1.bf16.msra.mxu0 %v280
    %426 = vmatprep.subr.bf16.mxu0 0
    %427 = vmatpush1.bf16.msra.mxu0 %v281
    %428 = vmatprep.subr.bf16.mxu0 0
    %429 = vmatpush1.bf16.msra.mxu0 %v282
    %430 = vmatprep.subr.bf16.mxu0 0
    %431 = vmatpush1.bf16.msra.mxu0 %v283
    %432 = vmatprep.subr.bf16.mxu0 0
    %433 = vmatpush1.bf16.msra.mxu0 %v284
    %434 = vmatprep.subr.bf16.mxu0 0
    %435 = vmatpush1.bf16.msra.mxu0 %v285
    %436 = vmatprep.subr.bf16.mxu0 0
    %437 = vmatpush1.bf16.msra.mxu0 %v286
    %438 = vmatprep.subr.bf16.mxu0 0
    %439 = vmatpush1.bf16.msra.mxu0 %v287
    %440 = vmatprep.mubr.bf16.mxu0 %v393
    %441 = vmatmul.mubr.bf16.gmra.mrb[0].mxu0 %v392
    %v442 = vpop.f32.mrb[0].mxu0
    %v443 = vadd.f32 0.0, %v442
    %v444 = vpop.f32.mrb[0].mxu0
    %v445 = vpop.f32.mrb[0].mxu0
    %v446 = vadd.f32 0.0, %v445
    %v447 = vpop.f32.mrb[0].mxu0
    %448 = vmatprep.mubr.bf16.mxu0 %v395
    %449 = vmatmul.mubr.bf16.gmra.mrb[0].mxu0 %v394
    %v450 = vpop.f32.mrb[0].mxu0
    %v451 = vadd.f32 0.0, %v450
    %v452 = vpop.f32.mrb[0].mxu0
    %v453 = vpop.f32.mrb[0].mxu0
    %v454 = vadd.f32 0.0, %v453
    %v455 = vpop.f32.mrb[0].mxu0
    %456 = vmatprep.mubr.bf16.mxu0 %v397
    %457 = vmatmul.mubr.bf16.gmra.mrb[0].mxu0 %v396
    %v458 = vpop.f32.mrb[0].mxu0
    %v459 = vadd.f32 0.0, %v458
    %v460 = vpop.f32.mrb[0].mxu0
    %v461 = vpop.f32.mrb[0].mxu0
    %v462 = vadd.f32 0.0, %v461
    %v463 = vpop.f32.mrb[0].mxu0
    %464 = vmatprep.mubr.bf16.mxu0 %v399
    %465 = vmatmul.mubr.bf16.gmra.mrb[0].mxu0 %v398
    %v466 = vpop.f32.mrb[0].mxu0
    %v467 = vadd.f32 0.0, %v466
    %v468 = vpop.f32.mrb[0].mxu0
    %v469 = vpop.f32.mrb[0].mxu0
    %v470 = vadd.f32 0.0, %v469
    %v471 = vpop.f32.mrb[0].mxu0
    %472 = vmatprep.mubr.bf16.mxu0 %v401
    %473 = vmatmul.mubr.bf16.gmra.mrb[0].mxu0 %v400
    %v474 = vpop.f32.mrb[0].mxu0
    %v475 = vadd.f32 0.0, %v474
    %v476 = vpop.f32.mrb[0].mxu0
    %v477 = vpop.f32.mrb[0].mxu0
    %v478 = vadd.f32 0.0, %v477
    %v479 = vpop.f32.mrb[0].mxu0
    %480 = vmatprep.mubr.bf16.mxu0 %v403
    %481 = vmatmul.mubr.bf16.gmra.mrb[0].mxu0 %v402
    %v482 = vpop.f32.mrb[0].mxu0
    %v483 = vadd.f32 0.0, %v482
    %v484 = vpop.f32.mrb[0].mxu0
    %v485 = vpop.f32.mrb[0].mxu0
    %v486 = vadd.f32 0.0, %v485
    %v487 = vpop.f32.mrb[0].mxu0
    %488 = vmatprep.mubr.bf16.mxu0 %v405
    %489 = vmatmul.mubr.bf16.gmra.mrb[0].mxu0 %v404
    %v490 = vpop.f32.mrb[0].mxu0
    %v491 = vadd.f32 0.0, %v490
    %v492 = vpop.f32.mrb[0].mxu0
    %v493 = vpop.f32.mrb[0].mxu0
    %v494 = vadd.f32 0.0, %v493
    %v495 = vpop.f32.mrb[0].mxu0
    %496 = vmatprep.mubr.bf16.mxu0 %v407
    %497 = vmatmul.mubr.bf16.gmra.mrb[0].mxu0 %v406
    %v498 = vpop.f32.mrb[0].mxu0
    %v499 = vadd.f32 0.0, %v498
    %v500 = vpop.f32.mrb[0].mxu0
    %v501 = vpop.f32.mrb[0].mxu0
    %v502 = vadd.f32 0.0, %v501
    %v503 = vpop.f32.mrb[0].mxu0
    %504 = vdwg.mxu0
    %v505 = vpack.c.bf16 %v446, %v443
    %v506 = vpack.c.bf16 %v454, %v451
    %v507 = vpack.c.bf16 %v462, %v459
    %v508 = vpack.c.bf16 %v470, %v467
    %v509 = vpack.c.bf16 %v478, %v475
    %v510 = vpack.c.bf16 %v486, %v483
    %v511 = vpack.c.bf16 %v494, %v491
    %v512 = vpack.c.bf16 %v502, %v499
    %v513 = vld [vmem:[%s5] sm:$0xf]
    %v514 = vld [vmem:[%s5 + $0x4] sm:$0xf]
    %v515 = vld [vmem:[%s5 + $0x8] sm:$0xf]
    %v516 = vld [vmem:[%s5 + $0xc] sm:$0xf]
    %v517 = vld [vmem:[%s5 + $0x10] sm:$0xf]
    %v518 = vld [vmem:[%s5 + $0x14] sm:$0xf]
    %v519 = vld [vmem:[%s5 + $0x18] sm:$0xf]
    %v520 = vld [vmem:[%s5 + $0x1c] sm:$0xf]
    %v521 = vld [vmem:[%s5 + $0x20] sm:$0xf]
    %v522 = vld [vmem:[%s5 + $0x24] sm:$0xf]
    %v523 = vld [vmem:[%s5 + $0x28] sm:$0xf]
    %v524 = vld [vmem:[%s5 + $0x2c] sm:$0xf]
    %v525 = vld [vmem:[%s5 + $0x30] sm:$0xf]
    %v526 = vld [vmem:[%s5 + $0x34] sm:$0xf]
    %v527 = vld [vmem:[%s5 + $0x38] sm:$0xf]
    %v528 = vld [vmem:[%s5 + $0x3c] sm:$0xf]
    %v529 = vld [vmem:[%s5 + $0x40] sm:$0xf]
    %v530 = vld [vmem:[%s5 + $0x44] sm:$0xf]
    %v531 = vld [vmem:[%s5 + $0x48] sm:$0xf]
    %v532 = vld [vmem:[%s5 + $0x4c] sm:$0xf]
    %v533 = vld [vmem:[%s5 + $0x50] sm:$0xf]
    %v534 = vld [vmem:[%s5 + $0x54] sm:$0xf]
    %v535 = vld [vmem:[%s5 + $0x58] sm:$0xf]
    %v536 = vld [vmem:[%s5 + $0x5c] sm:$0xf]
    %v537 = vld [vmem:[%s5 + $0x60] sm:$0xf]
    %v538 = vld [vmem:[%s5 + $0x64] sm:$0xf]
    %v539 = vld [vmem:[%s5 + $0x68] sm:$0xf]
    %v540 = vld [vmem:[%s5 + $0x6c] sm:$0xf]
    %v541 = vld [vmem:[%s5 + $0x70] sm:$0xf]
    %v542 = vld [vmem:[%s5 + $0x74] sm:$0xf]
    %v543 = vld [vmem:[%s5 + $0x78] sm:$0xf]
    %v544 = vld [vmem:[%s5 + $0x7c] sm:$0xf]
    %v545 = vld [vmem:[%s5 + $0x80] sm:$0xf]
    %v546 = vld [vmem:[%s5 + $0x84] sm:$0xf]
    %v547 = vld [vmem:[%s5 + $0x88] sm:$0xf]
    %v548 = vld [vmem:[%s5 + $0x8c] sm:$0xf]
    %v549 = vld [vmem:[%s5 + $0x90] sm:$0xf]
    %v550 = vld [vmem:[%s5 + $0x94] sm:$0xf]
    %v551 = vld [vmem:[%s5 + $0x98] sm:$0xf]
    %v552 = vld [vmem:[%s5 + $0x9c] sm:$0xf]
    %v553 = vld [vmem:[%s5 + $0xa0] sm:$0xf]
    %v554 = vld [vmem:[%s5 + $0xa4] sm:$0xf]
    %v555 = vld [vmem:[%s5 + $0xa8] sm:$0xf]
    %v556 = vld [vmem:[%s5 + $0xac] sm:$0xf]
    %v557 = vld [vmem:[%s5 + $0xb0] sm:$0xf]
    %v558 = vld [vmem:[%s5 + $0xb4] sm:$0xf]
    %v559 = vld [vmem:[%s5 + $0xb8] sm:$0xf]
    %v560 = vld [vmem:[%s5 + $0xbc] sm:$0xf]
    %v561 = vld [vmem:[%s5 + $0xc0] sm:$0xf]
    %v562 = vld [vmem:[%s5 + $0xc4] sm:$0xf]
    %v563 = vld [vmem:[%s5 + $0xc8] sm:$0xf]
    %v564 = vld [vmem:[%s5 + $0xcc] sm:$0xf]
    %v565 = vld [vmem:[%s5 + $0xd0] sm:$0xf]
    %v566 = vld [vmem:[%s5 + $0xd4] sm:$0xf]
    %v567 = vld [vmem:[%s5 + $0xd8] sm:$0xf]
    %v568 = vld [vmem:[%s5 + $0xdc] sm:$0xf]
    %v569 = vld [vmem:[%s5 + $0xe0] sm:$0xf]
    %v570 = vld [vmem:[%s5 + $0xe4] sm:$0xf]
    %v571 = vld [vmem:[%s5 + $0xe8] sm:$0xf]
    %v572 = vld [vmem:[%s5 + $0xec] sm:$0xf]
    %v573 = vld [vmem:[%s5 + $0xf0] sm:$0xf]
    %v574 = vld [vmem:[%s5 + $0xf4] sm:$0xf]
    %v575 = vld [vmem:[%s5 + $0xf8] sm:$0xf]
    %v576 = vld [vmem:[%s5 + $0xfc] sm:$0xf]
    %v577 = vld [vmem:[%s5 + $0x100] sm:$0xf]
    %v578 = vld [vmem:[%s5 + $0x104] sm:$0xf]
    %v579 = vld [vmem:[%s5 + $0x108] sm:$0xf]
    %v580 = vld [vmem:[%s5 + $0x10c] sm:$0xf]
    %v581 = vld [vmem:[%s5 + $0x110] sm:$0xf]
    %v582 = vld [vmem:[%s5 + $0x114] sm:$0xf]
    %v583 = vld [vmem:[%s5 + $0x118] sm:$0xf]
    %v584 = vld [vmem:[%s5 + $0x11c] sm:$0xf]
    %v585 = vld [vmem:[%s5 + $0x120] sm:$0xf]
    %v586 = vld [vmem:[%s5 + $0x124] sm:$0xf]
    %v587 = vld [vmem:[%s5 + $0x128] sm:$0xf]
    %v588 = vld [vmem:[%s5 + $0x12c] sm:$0xf]
    %v589 = vld [vmem:[%s5 + $0x130] sm:$0xf]
    %v590 = vld [vmem:[%s5 + $0x134] sm:$0xf]
    %v591 = vld [vmem:[%s5 + $0x138] sm:$0xf]
    %v592 = vld [vmem:[%s5 + $0x13c] sm:$0xf]
    %v593 = vld [vmem:[%s5 + $0x140] sm:$0xf]
    %v594 = vld [vmem:[%s5 + $0x144] sm:$0xf]
    %v595 = vld [vmem:[%s5 + $0x148] sm:$0xf]
    %v596 = vld [vmem:[%s5 + $0x14c] sm:$0xf]
    %v597 = vld [vmem:[%s5 + $0x150] sm:$0xf]
    %v598 = vld [vmem:[%s5 + $0x154] sm:$0xf]
    %v599 = vld [vmem:[%s5 + $0x158] sm:$0xf]
    %v600 = vld [vmem:[%s5 + $0x15c] sm:$0xf]
    %v601 = vld [vmem:[%s5 + $0x160] sm:$0xf]
    %v602 = vld [vmem:[%s5 + $0x164] sm:$0xf]
    %v603 = vld [vmem:[%s5 + $0x168] sm:$0xf]
    %v604 = vld [vmem:[%s5 + $0x16c] sm:$0xf]
    %v605 = vld [vmem:[%s5 + $0x170] sm:$0xf]
    %v606 = vld [vmem:[%s5 + $0x174] sm:$0xf]
    %v607 = vld [vmem:[%s5 + $0x178] sm:$0xf]
    %v608 = vld [vmem:[%s5 + $0x17c] sm:$0xf]
    %v609 = vld [vmem:[%s5 + $0x180] sm:$0xf]
    %v610 = vld [vmem:[%s5 + $0x184] sm:$0xf]
    %v611 = vld [vmem:[%s5 + $0x188] sm:$0xf]
    %v612 = vld [vmem:[%s5 + $0x18c] sm:$0xf]
    %v613 = vld [vmem:[%s5 + $0x190] sm:$0xf]
    %v614 = vld [vmem:[%s5 + $0x194] sm:$0xf]
    %v615 = vld [vmem:[%s5 + $0x198] sm:$0xf]
    %v616 = vld [vmem:[%s5 + $0x19c] sm:$0xf]
    %v617 = vld [vmem:[%s5 + $0x1a0] sm:$0xf]
    %v618 = vld [vmem:[%s5 + $0x1a4] sm:$0xf]
    %v619 = vld [vmem:[%s5 + $0x1a8] sm:$0xf]
    %v620 = vld [vmem:[%s5 + $0x1ac] sm:$0xf]
    %v621 = vld [vmem:[%s5 + $0x1b0] sm:$0xf]
    %v622 = vld [vmem:[%s5 + $0x1b4] sm:$0xf]
    %v623 = vld [vmem:[%s5 + $0x1b8] sm:$0xf]
    %v624 = vld [vmem:[%s5 + $0x1bc] sm:$0xf]
    %v625 = vld [vmem:[%s5 + $0x1c0] sm:$0xf]
    %v626 = vld [vmem:[%s5 + $0x1c4] sm:$0xf]
    %v627 = vld [vmem:[%s5 + $0x1c8] sm:$0xf]
    %v628 = vld [vmem:[%s5 + $0x1cc] sm:$0xf]
    %v629 = vld [vmem:[%s5 + $0x1d0] sm:$0xf]
    %v630 = vld [vmem:[%s5 + $0x1d4] sm:$0xf]
    %v631 = vld [vmem:[%s5 + $0x1d8] sm:$0xf]
    %v632 = vld [vmem:[%s5 + $0x1dc] sm:$0xf]
    %v633 = vld [vmem:[%s5 + $0x1e0] sm:$0xf]
    %v634 = vld [vmem:[%s5 + $0x1e4] sm:$0xf]
    %v635 = vld [vmem:[%s5 + $0x1e8] sm:$0xf]
    %v636 = vld [vmem:[%s5 + $0x1ec] sm:$0xf]
    %v637 = vld [vmem:[%s5 + $0x1f0] sm:$0xf]
    %v638 = vld [vmem:[%s5 + $0x1f4] sm:$0xf]
    %v639 = vld [vmem:[%s5 + $0x1f8] sm:$0xf]
    %v640 = vld [vmem:[%s5 + $0x1fc] sm:$0xf]
    %v641 = vld [vmem:[%s6] sm:$0xff]
    %v642 = vld [vmem:[%s2] sm:$0xff]
    %v643 = vld [vmem:[%s2 + $0x8] sm:$0xff]
    %v644 = vld [vmem:[%s2 + $0x10] sm:$0xff]
    %v645 = vld [vmem:[%s2 + $0x18] sm:$0xff]
    %v646 = vld [vmem:[%s2 + $0x20] sm:$0xff]
    %v647 = vld [vmem:[%s2 + $0x28] sm:$0xff]
    %v648 = vld [vmem:[%s2 + $0x30] sm:$0xff]
    %v649 = vld [vmem:[%s2 + $0x38] sm:$0xff]
    %v650 = vld [vmem:[%s2 + $0x40] sm:$0xff]
    %v651 = vld [vmem:[%s2 + $0x48] sm:$0xff]
    %v652 = vld [vmem:[%s2 + $0x50] sm:$0xff]
    %v653 = vld [vmem:[%s2 + $0x58] sm:$0xff]
    %v654 = vld [vmem:[%s2 + $0x60] sm:$0xff]
    %v655 = vld [vmem:[%s2 + $0x68] sm:$0xff]
    %v656 = vld [vmem:[%s2 + $0x70] sm:$0xff]
    %v657 = vld [vmem:[%s2 + $0x78] sm:$0xff]
    %v658 = vld [vmem:[%s3] sm:$0xff]
    %v659 = vld [vmem:[%s3 + $0x8] sm:$0xff]
    %v660 = vld [vmem:[%s3 + $0x10] sm:$0xff]
    %v661 = vld [vmem:[%s3 + $0x18] sm:$0xff]
    %v662 = vld [vmem:[%s3 + $0x20] sm:$0xff]
    %v663 = vld [vmem:[%s3 + $0x28] sm:$0xff]
    %v664 = vld [vmem:[%s3 + $0x30] sm:$0xff]
    %v665 = vld [vmem:[%s3 + $0x38] sm:$0xff]
    %v666 = vld [vmem:[%s3 + $0x40] sm:$0xff]
    %v667 = vld [vmem:[%s3 + $0x48] sm:$0xff]
    %v668 = vld [vmem:[%s3 + $0x50] sm:$0xff]
    %v669 = vld [vmem:[%s3 + $0x58] sm:$0xff]
    %v670 = vld [vmem:[%s3 + $0x60] sm:$0xff]
    %v671 = vld [vmem:[%s3 + $0x68] sm:$0xff]
    %v672 = vld [vmem:[%s3 + $0x70] sm:$0xff]
    %v673 = vld [vmem:[%s3 + $0x78] sm:$0xff]
    %v674 = vld [vmem:[%s4] sm:$0xff]
    %v675 = vld [vmem:[%s4 + $0x8] sm:$0xff]
    %v676 = vld [vmem:[%s4 + $0x10] sm:$0xff]
    %v677 = vld [vmem:[%s4 + $0x18] sm:$0xff]
    %v678 = vld [vmem:[%s4 + $0x20] sm:$0xff]
    %v679 = vld [vmem:[%s4 + $0x28] sm:$0xff]
    %v680 = vld [vmem:[%s4 + $0x30] sm:$0xff]
    %v681 = vld [vmem:[%s4 + $0x38] sm:$0xff]
    %v682 = vld [vmem:[%s4 + $0x40] sm:$0xff]
    %v683 = vld [vmem:[%s4 + $0x48] sm:$0xff]
    %v684 = vld [vmem:[%s4 + $0x50] sm:$0xff]
    %v685 = vld [vmem:[%s4 + $0x58] sm:$0xff]
    %v686 = vld [vmem:[%s4 + $0x60] sm:$0xff]
    %v687 = vld [vmem:[%s4 + $0x68] sm:$0xff]
    %v688 = vld [vmem:[%s4 + $0x70] sm:$0xff]
    %v689 = vld [vmem:[%s4 + $0x78] sm:$0xff]
    %690 = vset.pattern.permute.xlu0 0
    %691 = vperm.xlu0 %690, %v642
    %v692 = vpop.permute.xlu0 %691
    %693 = vset.pattern.permute.xlu0 0
    %694 = vperm.xlu0 %693, %v643
    %v695 = vpop.permute.xlu0 %694
    %696 = vset.pattern.permute.xlu0 0
    %697 = vperm.xlu0 %696, %v644
    %v698 = vpop.permute.xlu0 %697
    %699 = vset.pattern.permute.xlu0 0
    %700 = vperm.xlu0 %699, %v645
    %v701 = vpop.permute.xlu0 %700
    %702 = vset.pattern.permute.xlu0 0
    %703 = vperm.xlu0 %702, %v646
    %v704 = vpop.permute.xlu0 %703
    %705 = vset.pattern.permute.xlu0 0
    %706 = vperm.xlu0 %705, %v647
    %v707 = vpop.permute.xlu0 %706
    %708 = vset.pattern.permute.xlu0 0
    %709 = vperm.xlu0 %708, %v648
    %v710 = vpop.permute.xlu0 %709
    %711 = vset.pattern.permute.xlu0 0
    %712 = vperm.xlu0 %711, %v649
    %v713 = vpop.permute.xlu0 %712
    %714 = vset.pattern.permute.xlu0 0
    %715 = vperm.xlu0 %714, %v650
    %v716 = vpop.permute.xlu0 %715
    %717 = vset.pattern.permute.xlu0 0
    %718 = vperm.xlu0 %717, %v651
    %v719 = vpop.permute.xlu0 %718
    %720 = vset.pattern.permute.xlu0 0
    %721 = vperm.xlu0 %720, %v652
    %v722 = vpop.permute.xlu0 %721
    %723 = vset.pattern.permute.xlu0 0
    %724 = vperm.xlu0 %723, %v653
    %v725 = vpop.permute.xlu0 %724
    %726 = vset.pattern.permute.xlu0 0
    %727 = vperm.xlu0 %726, %v654
    %v728 = vpop.permute.xlu0 %727
    %729 = vset.pattern.permute.xlu0 0
    %730 = vperm.xlu0 %729, %v655
    %v731 = vpop.permute.xlu0 %730
    %732 = vset.pattern.permute.xlu0 0
    %733 = vperm.xlu0 %732, %v656
    %v734 = vpop.permute.xlu0 %733
    %735 = vset.pattern.permute.xlu0 0
    %736 = vperm.xlu0 %735, %v657
    %v737 = vpop.permute.xlu0 %736
    %vm738 = vcmp.eq.s32.totalorder %v62, %v692
    %vm739 = vcmp.eq.s32.totalorder %v62, %v695
    %vm740 = vcmp.eq.s32.totalorder %v62, %v698
    %vm741 = vcmp.eq.s32.totalorder %v62, %v701
    %vm742 = vcmp.eq.s32.totalorder %v62, %v704
    %vm743 = vcmp.eq.s32.totalorder %v62, %v707
    %vm744 = vcmp.eq.s32.totalorder %v62, %v710
    %vm745 = vcmp.eq.s32.totalorder %v62, %v713
    %vm746 = vcmp.eq.s32.totalorder %v62, %v716
    %vm747 = vcmp.eq.s32.totalorder %v62, %v719
    %vm748 = vcmp.eq.s32.totalorder %v62, %v722
    %vm749 = vcmp.eq.s32.totalorder %v62, %v725
    %vm750 = vcmp.eq.s32.totalorder %v62, %v728
    %vm751 = vcmp.eq.s32.totalorder %v62, %v731
    %vm752 = vcmp.eq.s32.totalorder %v62, %v734
    %vm753 = vcmp.eq.s32.totalorder %v62, %v737
    %v754 = vsel %vm738, 1, 0
    %v755 = vsel %vm739, 1, 0
    %v756 = vsel %vm740, 1, 0
    %v757 = vsel %vm741, 1, 0
    %v758 = vsel %vm742, 1, 0
    %v759 = vsel %vm743, 1, 0
    %v760 = vsel %vm744, 1, 0
    %v761 = vsel %vm745, 1, 0
    %v762 = vsel %vm746, 1, 0
    %v763 = vsel %vm747, 1, 0
    %v764 = vsel %vm748, 1, 0
    %v765 = vsel %vm749, 1, 0
    %v766 = vsel %vm750, 1, 0
    %v767 = vsel %vm751, 1, 0
    %v768 = vsel %vm752, 1, 0
    %v769 = vsel %vm753, 1, 0
    %v770 = vcvt.s32.f32 %v754
    %v771 = vcvt.s32.f32 %v755
    %v772 = vcvt.s32.f32 %v756
    %v773 = vcvt.s32.f32 %v757
    %v774 = vcvt.s32.f32 %v758
    %v775 = vcvt.s32.f32 %v759
    %v776 = vcvt.s32.f32 %v760
    %v777 = vcvt.s32.f32 %v761
    %v778 = vcvt.s32.f32 %v762
    %v779 = vcvt.s32.f32 %v763
    %v780 = vcvt.s32.f32 %v764
    %v781 = vcvt.s32.f32 %v765
    %v782 = vcvt.s32.f32 %v766
    %v783 = vcvt.s32.f32 %v767
    %v784 = vcvt.s32.f32 %v768
    %v785 = vcvt.s32.f32 %v769
    %v786 = vpack.c.bf16 %v771, %v770
    %v787 = vpack.c.bf16 %v773, %v772
    %v788 = vpack.c.bf16 %v775, %v774
    %v789 = vpack.c.bf16 %v777, %v776
    %v790 = vpack.c.bf16 %v779, %v778
    %v791 = vpack.c.bf16 %v781, %v780
    %v792 = vpack.c.bf16 %v783, %v782
    %v793 = vpack.c.bf16 %v785, %v784
    %v810 = vunpack.c.l.b16 %v513
    %v811 = vunpack.c.l.b16 %v514
    %v812 = vunpack.c.l.b16 %v515
    %v813 = vunpack.c.l.b16 %v516
    %v814 = vunpack.c.l.b16 %v517
    %v815 = vunpack.c.l.b16 %v518
    %v816 = vunpack.c.l.b16 %v519
    %v817 = vunpack.c.l.b16 %v520
    %v818 = vunpack.c.l.b16 %v521
    %v819 = vunpack.c.l.b16 %v522
    %v820 = vunpack.c.l.b16 %v523
    %v821 = vunpack.c.l.b16 %v524
    %v822 = vunpack.c.l.b16 %v525
    %v823 = vunpack.c.l.b16 %v526
    %v824 = vunpack.c.l.b16 %v527
    %v825 = vunpack.c.l.b16 %v528
    %v826 = vpack.c.b16 %v811, %v810
    %v827 = vpack.c.b16 %v813, %v812
    %v828 = vpack.c.b16 %v815, %v814
    %v829 = vpack.c.b16 %v817, %v816
    %v830 = vpack.c.b16 %v819, %v818
    %v831 = vpack.c.b16 %v821, %v820
    %v832 = vpack.c.b16 %v823, %v822
    %v833 = vpack.c.b16 %v825, %v824
    %842 = vmatprep.subr.bf16.mxu0 0
    %843 = vmatpush1.bf16.msra.mxu0 %v826
    %844 = vmatprep.subr.bf16.mxu0 0
    %845 = vmatpush1.bf16.msra.mxu0 %v827
    %846 = vmatprep.subr.bf16.mxu0 0
    %847 = vmatpush1.bf16.msra.mxu0 %v828
    %848 = vmatprep.subr.bf16.mxu0 0
    %849 = vmatpush1.bf16.msra.mxu0 %v829
    %850 = vmatprep.subr.bf16.mxu0 0
    %851 = vmatpush1.bf16.msra.mxu0 %v830
    %852 = vmatprep.subr.bf16.mxu0 0
    %853 = vmatpush1.bf16.msra.mxu0 %v831
    %854 = vmatprep.subr.bf16.mxu0 0
    %855 = vmatpush1.bf16.msra.mxu0 %v832
    %856 = vmatprep.subr.bf16.mxu0 0
    %857 = vmatpush1.bf16.msra.mxu0 %v833
    %858 = vmatprep.subr.bf16.mxu0 0
    %859 = vmatpush1.bf16.msra.mxu0 0
    %860 = vmatprep.subr.bf16.mxu0 0
    %861 = vmatpush1.bf16.msra.mxu0 0
    %862 = vmatprep.subr.bf16.mxu0 0
    %863 = vmatpush1.bf16.msra.mxu0 0
    %864 = vmatprep.subr.bf16.mxu0 0
    %865 = vmatpush1.bf16.msra.mxu0 0
    %866 = vmatprep.subr.bf16.mxu0 0
    %867 = vmatpush1.bf16.msra.mxu0 0
    %868 = vmatprep.subr.bf16.mxu0 0
    %869 = vmatpush1.bf16.msra.mxu0 0
    %870 = vmatprep.subr.bf16.mxu0 0
    %871 = vmatpush1.bf16.msra.mxu0 0
    %872 = vmatprep.subr.bf16.mxu0 0
    %873 = vmatpush1.bf16.msra.mxu0 0
    %874 = vmatprep.mubr.bf16.mxu0 0
    %875 = vmatmul.mubr.bf16.gmra.mrb[0].mxu0 %v786
    %v876 = vpop.f32.mrb[0].mxu0
    %v877 = vadd.f32 0.0, %v876
    %v878 = vpop.f32.mrb[0].mxu0
    %v879 = vpop.f32.mrb[0].mxu0
    %v880 = vadd.f32 0.0, %v879
    %v881 = vpop.f32.mrb[0].mxu0
    %882 = vmatprep.mubr.bf16.mxu0 0
    %883 = vmatmul.mubr.bf16.gmra.mrb[0].mxu0 %v787
    %v884 = vpop.f32.mrb[0].mxu0
    %v885 = vadd.f32 0.0, %v884
    %v886 = vpop.f32.mrb[0].mxu0
    %v887 = vpop.f32.mrb[0].mxu0
    %v888 = vadd.f32 0.0, %v887
    %v889 = vpop.f32.mrb[0].mxu0
    %890 = vmatprep.mubr.bf16.mxu0 0
    %891 = vmatmul.mubr.bf16.gmra.mrb[0].mxu0 %v788
    %v892 = vpop.f32.mrb[0].mxu0
    %v893 = vadd.f32 0.0, %v892
    %v894 = vpop.f32.mrb[0].mxu0
    %v895 = vpop.f32.mrb[0].mxu0
    %v896 = vadd.f32 0.0, %v895
    %v897 = vpop.f32.mrb[0].mxu0
    %898 = vmatprep.mubr.bf16.mxu0 0
    %899 = vmatmul.mubr.bf16.gmra.mrb[0].mxu0 %v789
    %v900 = vpop.f32.mrb[0].mxu0
    %v901 = vadd.f32 0.0, %v900
    %v902 = vpop.f32.mrb[0].mxu0
    %v903 = vpop.f32.mrb[0].mxu0
    %v904 = vadd.f32 0.0, %v903
    %v905 = vpop.f32.mrb[0].mxu0
    %906 = vmatprep.mubr.bf16.mxu0 0
    %907 = vmatmul.mubr.bf16.gmra.mrb[0].mxu0 %v790
    %v908 = vpop.f32.mrb[0].mxu0
    %v909 = vadd.f32 0.0, %v908
    %v910 = vpop.f32.mrb[0].mxu0
    %v911 = vpop.f32.mrb[0].mxu0
    %v912 = vadd.f32 0.0, %v911
    %v913 = vpop.f32.mrb[0].mxu0
    %914 = vmatprep.mubr.bf16.mxu0 0
    %915 = vmatmul.mubr.bf16.gmra.mrb[0].mxu0 %v791
    %v916 = vpop.f32.mrb[0].mxu0
    %v917 = vadd.f32 0.0, %v916
    %v918 = vpop.f32.mrb[0].mxu0
    %v919 = vpop.f32.mrb[0].mxu0
    %v920 = vadd.f32 0.0, %v919
    %v921 = vpop.f32.mrb[0].mxu0
    %922 = vmatprep.mubr.bf16.mxu0 0
    %923 = vmatmul.mubr.bf16.gmra.mrb[0].mxu0 %v792
    %v924 = vpop.f32.mrb[0].mxu0
    %v925 = vadd.f32 0.0, %v924
    %v926 = vpop.f32.mrb[0].mxu0
    %v927 = vpop.f32.mrb[0].mxu0
    %v928 = vadd.f32 0.0, %v927
    %v929 = vpop.f32.mrb[0].mxu0
    %930 = vmatprep.mubr.bf16.mxu0 0
    %931 = vmatmul.mubr.bf16.gmra.mrb[0].mxu0 %v793
    %v932 = vpop.f32.mrb[0].mxu0
    %v933 = vadd.f32 0.0, %v932
    %v934 = vpop.f32.mrb[0].mxu0
    %v935 = vpop.f32.mrb[0].mxu0
    %v936 = vadd.f32 0.0, %v935
    %v937 = vpop.f32.mrb[0].mxu0
    %938 = vdwg.mxu0
    %v939 = vpack.c.bf16 %v880, %v877
    %v940 = vpack.c.bf16 %v888, %v885
    %v941 = vpack.c.bf16 %v896, %v893
    %v942 = vpack.c.bf16 %v904, %v901
    %v943 = vpack.c.bf16 %v912, %v909
    %v944 = vpack.c.bf16 %v920, %v917
    %v945 = vpack.c.bf16 %v928, %v925
    %v946 = vpack.c.bf16 %v936, %v933
    %947 = vmatprep.subr.bf16.mxu0 0
    %948 = vmatpush1.bf16.msra.mxu0 %v939
    %949 = vmatprep.subr.bf16.mxu0 0
    %950 = vmatpush1.bf16.msra.mxu0 %v940
    %951 = vmatprep.subr.bf16.mxu0 0
    %952 = vmatpush1.bf16.msra.mxu0 %v941
    %953 = vmatprep.subr.bf16.mxu0 0
    %954 = vmatpush1.bf16.msra.mxu0 %v942
    %955 = vmatprep.subr.bf16.mxu0 0
    %956 = vmatpush1.bf16.msra.mxu0 %v943
    %957 = vmatprep.subr.bf16.mxu0 0
    %958 = vmatpush1.bf16.msra.mxu0 %v944
    %959 = vmatprep.subr.bf16.mxu0 0
    %960 = vmatpush1.bf16.msra.mxu0 %v945
    %961 = vmatprep.subr.bf16.mxu0 0
    %962 = vmatpush1.bf16.msra.mxu0 %v946
    %963 = vmatprep.subr.bf16.mxu0 0
    %964 = vmatpush1.bf16.msra.mxu0 0
    %965 = vmatprep.subr.bf16.mxu0 0
    %966 = vmatpush1.bf16.msra.mxu0 0
    %967 = vmatprep.subr.bf16.mxu0 0
    %968 = vmatpush1.bf16.msra.mxu0 0
    %969 = vmatprep.subr.bf16.mxu0 0
    %970 = vmatpush1.bf16.msra.mxu0 0
    %971 = vmatprep.subr.bf16.mxu0 0
    %972 = vmatpush1.bf16.msra.mxu0 0
    %973 = vmatprep.subr.bf16.mxu0 0
    %974 = vmatpush1.bf16.msra.mxu0 0
    %975 = vmatprep.subr.bf16.mxu0 0
    %976 = vmatpush1.bf16.msra.mxu0 0
    %977 = vmatprep.subr.bf16.mxu0 0
    %978 = vmatpush1.bf16.msra.mxu0 0
    %979 = vmatprep.mubr.bf16.mxu0 0
    %980 = vmatmul.mubr.bf16.gmra.mrb[0].mxu0 %v505
    %v981 = vpop.f32.mrb[0].mxu0
    %v982 = vadd.f32 %v877, %v981
    %v983 = vpop.f32.mrb[0].mxu0
    %v984 = vpop.f32.mrb[0].mxu0
    %v985 = vadd.f32 %v880, %v984
    %v986 = vpop.f32.mrb[0].mxu0
    %987 = vmatprep.mubr.bf16.mxu0 0
    %988 = vmatmul.mubr.bf16.gmra.mrb[0].mxu0 %v506
    %v989 = vpop.f32.mrb[0].mxu0
    %v990 = vadd.f32 %v885, %v989
    %v991 = vpop.f32.mrb[0].mxu0
    %v992 = vpop.f32.mrb[0].mxu0
    %v993 = vadd.f32 %v888, %v992
    %v994 = vpop.f32.mrb[0].mxu0
    %995 = vmatprep.mubr.bf16.mxu0 0
    %996 = vmatmul.mubr.bf16.gmra.mrb[0].mxu0 %v507
    %v997 = vpop.f32.mrb[0].mxu0
    %v998 = vadd.f32 %v893, %v997
    %v999 = vpop.f32.mrb[0].mxu0
    %v1000 = vpop.f32.mrb[0].mxu0
    %v1001 = vadd.f32 %v896, %v1000
    %v1002 = vpop.f32.mrb[0].mxu0
    %1003 = vmatprep.mubr.bf16.mxu0 0
    %1004 = vmatmul.mubr.bf16.gmra.mrb[0].mxu0 %v508
    %v1005 = vpop.f32.mrb[0].mxu0
    %v1006 = vadd.f32 %v901, %v1005
    %v1007 = vpop.f32.mrb[0].mxu0
    %v1008 = vpop.f32.mrb[0].mxu0
    %v1009 = vadd.f32 %v904, %v1008
    %v1010 = vpop.f32.mrb[0].mxu0
    %1011 = vmatprep.mubr.bf16.mxu0 0
    %1012 = vmatmul.mubr.bf16.gmra.mrb[0].mxu0 %v509
    %v1013 = vpop.f32.mrb[0].mxu0
    %v1014 = vadd.f32 %v909, %v1013
    %v1015 = vpop.f32.mrb[0].mxu0
    %v1016 = vpop.f32.mrb[0].mxu0
    %v1017 = vadd.f32 %v912, %v1016
    %v1018 = vpop.f32.mrb[0].mxu0
    %1019 = vmatprep.mubr.bf16.mxu0 0
    %1020 = vmatmul.mubr.bf16.gmra.mrb[0].mxu0 %v510
    %v1021 = vpop.f32.mrb[0].mxu0
    %v1022 = vadd.f32 %v917, %v1021
    %v1023 = vpop.f32.mrb[0].mxu0
    %v1024 = vpop.f32.mrb[0].mxu0
    %v1025 = vadd.f32 %v920, %v1024
    %v1026 = vpop.f32.mrb[0].mxu0
    %1027 = vmatprep.mubr.bf16.mxu0 0
    %1028 = vmatmul.mubr.bf16.gmra.mrb[0].mxu0 %v511
    %v1029 = vpop.f32.mrb[0].mxu0
    %v1030 = vadd.f32 %v925, %v1029
    %v1031 = vpop.f32.mrb[0].mxu0
    %v1032 = vpop.f32.mrb[0].mxu0
    %v1033 = vadd.f32 %v928, %v1032
    %v1034 = vpop.f32.mrb[0].mxu0
    %1035 = vmatprep.mubr.bf16.mxu0 0
    %1036 = vmatmul.mubr.bf16.gmra.mrb[0].mxu0 %v512
    %v1037 = vpop.f32.mrb[0].mxu0
    %v1038 = vadd.f32 %v933, %v1037
    %v1039 = vpop.f32.mrb[0].mxu0
    %v1040 = vpop.f32.mrb[0].mxu0
    %v1041 = vadd.f32 %v936, %v1040
    %v1042 = vpop.f32.mrb[0].mxu0
    %1043 = vdwg.mxu0
    %v1044 = vpack.c.bf16 %v985, %v982
    %v1045 = vpack.c.bf16 %v993, %v990
    %v1046 = vpack.c.bf16 %v1001, %v998
    %v1047 = vpack.c.bf16 %v1009, %v1006
    %v1048 = vpack.c.bf16 %v1017, %v1014
    %v1049 = vpack.c.bf16 %v1025, %v1022
    %v1050 = vpack.c.bf16 %v1033, %v1030
    %v1051 = vpack.c.bf16 %v1041, %v1038
    %v1052 = vlaneseq
    %v1053 = vshrl.u32 %v1052, 7
    %v1054 = vsub.s32 0, %v1053
    %v1055 = vrot.slane %v641, %v1054
    %v1072 = vunpack.c.l.b16 %v529
    %v1073 = vunpack.c.l.b16 %v530
    %v1074 = vunpack.c.l.b16 %v531
    %v1075 = vunpack.c.l.b16 %v532
    %v1076 = vunpack.c.l.b16 %v533
    %v1077 = vunpack.c.l.b16 %v534
    %v1078 = vunpack.c.l.b16 %v535
    %v1079 = vunpack.c.l.b16 %v536
    %v1080 = vunpack.c.l.b16 %v537
    %v1081 = vunpack.c.l.b16 %v538
    %v1082 = vunpack.c.l.b16 %v539
    %v1083 = vunpack.c.l.b16 %v540
    %v1084 = vunpack.c.l.b16 %v541
    %v1085 = vunpack.c.l.b16 %v542
    %v1086 = vunpack.c.l.b16 %v543
    %v1087 = vunpack.c.l.b16 %v544
    %v1088 = vpack.c.b16 %v1073, %v1072
    %v1089 = vpack.c.b16 %v1075, %v1074
    %v1090 = vpack.c.b16 %v1077, %v1076
    %v1091 = vpack.c.b16 %v1079, %v1078
    %v1092 = vpack.c.b16 %v1081, %v1080
    %v1093 = vpack.c.b16 %v1083, %v1082
    %v1094 = vpack.c.b16 %v1085, %v1084
    %v1095 = vpack.c.b16 %v1087, %v1086
    %1104 = vmatprep.subr.bf16.mxu0 0
    %1105 = vmatpush1.bf16.msra.mxu0 %v1088
    %1106 = vmatprep.subr.bf16.mxu0 0
    %1107 = vmatpush1.bf16.msra.mxu0 %v1089
    %1108 = vmatprep.subr.bf16.mxu0 0
    %1109 = vmatpush1.bf16.msra.mxu0 %v1090
    %1110 = vmatprep.subr.bf16.mxu0 0
    %1111 = vmatpush1.bf16.msra.mxu0 %v1091
    %1112 = vmatprep.subr.bf16.mxu0 0
    %1113 = vmatpush1.bf16.msra.mxu0 %v1092
    %1114 = vmatprep.subr.bf16.mxu0 0
    %1115 = vmatpush1.bf16.msra.mxu0 %v1093
    %1116 = vmatprep.subr.bf16.mxu0 0
    %1117 = vmatpush1.bf16.msra.mxu0 %v1094
    %1118 = vmatprep.subr.bf16.mxu0 0
    %1119 = vmatpush1.bf16.msra.mxu0 %v1095
    %1120 = vmatprep.subr.bf16.mxu0 0
    %1121 = vmatpush1.bf16.msra.mxu0 0
    %1122 = vmatprep.subr.bf16.mxu0 0
    %1123 = vmatpush1.bf16.msra.mxu0 0
    %1124 = vmatprep.subr.bf16.mxu0 0
    %1125 = vmatpush1.bf16.msra.mxu0 0
    %1126 = vmatprep.subr.bf16.mxu0 0
    %1127 = vmatpush1.bf16.msra.mxu0 0
    %1128 = vmatprep.subr.bf16.mxu0 0
    %1129 = vmatpush1.bf16.msra.mxu0 0
    %1130 = vmatprep.subr.bf16.mxu0 0
    %1131 = vmatpush1.bf16.msra.mxu0 0
    %1132 = vmatprep.subr.bf16.mxu0 0
    %1133 = vmatpush1.bf16.msra.mxu0 0
    %1134 = vmatprep.subr.bf16.mxu0 0
    %1135 = vmatpush1.bf16.msra.mxu0 0
    %1136 = vmatprep.mubr.bf16.mxu0 0
    %1137 = vmatmul.mubr.bf16.gmra.mrb[0].mxu0 %v1044
    %v1138 = vpop.f32.mrb[0].mxu0
    %v1139 = vadd.f32 %v1055, %v1138
    %v1140 = vpop.f32.mrb[0].mxu0
    %v1141 = vpop.f32.mrb[0].mxu0
    %v1142 = vadd.f32 %v1055, %v1141
    %v1143 = vpop.f32.mrb[0].mxu0
    %1144 = vmatprep.mubr.bf16.mxu0 0
    %1145 = vmatmul.mubr.bf16.gmra.mrb[0].mxu0 %v1045
    %v1146 = vpop.f32.mrb[0].mxu0
    %v1147 = vadd.f32 %v1055, %v1146
    %v1148 = vpop.f32.mrb[0].mxu0
    %v1149 = vpop.f32.mrb[0].mxu0
    %v1150 = vadd.f32 %v1055, %v1149
    %v1151 = vpop.f32.mrb[0].mxu0
    %1152 = vmatprep.mubr.bf16.mxu0 0
    %1153 = vmatmul.mubr.bf16.gmra.mrb[0].mxu0 %v1046
    %v1154 = vpop.f32.mrb[0].mxu0
    %v1155 = vadd.f32 %v1055, %v1154
    %v1156 = vpop.f32.mrb[0].mxu0
    %v1157 = vpop.f32.mrb[0].mxu0
    %v1158 = vadd.f32 %v1055, %v1157
    %v1159 = vpop.f32.mrb[0].mxu0
    %1160 = vmatprep.mubr.bf16.mxu0 0
    %1161 = vmatmul.mubr.bf16.gmra.mrb[0].mxu0 %v1047
    %v1162 = vpop.f32.mrb[0].mxu0
    %v1163 = vadd.f32 %v1055, %v1162
    %v1164 = vpop.f32.mrb[0].mxu0
    %v1165 = vpop.f32.mrb[0].mxu0
    %v1166 = vadd.f32 %v1055, %v1165
    %v1167 = vpop.f32.mrb[0].mxu0
    %1168 = vmatprep.mubr.bf16.mxu0 0
    %1169 = vmatmul.mubr.bf16.gmra.mrb[0].mxu0 %v1048
    %v1170 = vpop.f32.mrb[0].mxu0
    %v1171 = vadd.f32 %v1055, %v1170
    %v1172 = vpop.f32.mrb[0].mxu0
    %v1173 = vpop.f32.mrb[0].mxu0
    %v1174 = vadd.f32 %v1055, %v1173
    %v1175 = vpop.f32.mrb[0].mxu0
    %1176 = vmatprep.mubr.bf16.mxu0 0
    %1177 = vmatmul.mubr.bf16.gmra.mrb[0].mxu0 %v1049
    %v1178 = vpop.f32.mrb[0].mxu0
    %v1179 = vadd.f32 %v1055, %v1178
    %v1180 = vpop.f32.mrb[0].mxu0
    %v1181 = vpop.f32.mrb[0].mxu0
    %v1182 = vadd.f32 %v1055, %v1181
    %v1183 = vpop.f32.mrb[0].mxu0
    %1184 = vmatprep.mubr.bf16.mxu0 0
    %1185 = vmatmul.mubr.bf16.gmra.mrb[0].mxu0 %v1050
    %v1186 = vpop.f32.mrb[0].mxu0
    %v1187 = vadd.f32 %v1055, %v1186
    %v1188 = vpop.f32.mrb[0].mxu0
    %v1189 = vpop.f32.mrb[0].mxu0
    %v1190 = vadd.f32 %v1055, %v1189
    %v1191 = vpop.f32.mrb[0].mxu0
    %1192 = vmatprep.mubr.bf16.mxu0 0
    %1193 = vmatmul.mubr.bf16.gmra.mrb[0].mxu0 %v1051
    %v1194 = vpop.f32.mrb[0].mxu0
    %v1195 = vadd.f32 %v1055, %v1194
    %v1196 = vpop.f32.mrb[0].mxu0
    %v1197 = vpop.f32.mrb[0].mxu0
    %v1198 = vadd.f32 %v1055, %v1197
    %v1199 = vpop.f32.mrb[0].mxu0
    %1200 = vdwg.mxu0
    %v1201 = vmax.f32 %v1139, 0.0
    %v1202 = vmax.f32 %v1142, 0.0
    %v1203 = vmax.f32 %v1147, 0.0
    %v1204 = vmax.f32 %v1150, 0.0
    %v1205 = vmax.f32 %v1155, 0.0
    %v1206 = vmax.f32 %v1158, 0.0
    %v1207 = vmax.f32 %v1163, 0.0
    %v1208 = vmax.f32 %v1166, 0.0
    %v1209 = vmax.f32 %v1171, 0.0
    %v1210 = vmax.f32 %v1174, 0.0
    %v1211 = vmax.f32 %v1179, 0.0
    %v1212 = vmax.f32 %v1182, 0.0
    %v1213 = vmax.f32 %v1187, 0.0
    %v1214 = vmax.f32 %v1190, 0.0
    %v1215 = vmax.f32 %v1195, 0.0
    %v1216 = vmax.f32 %v1198, 0.0
    %v1217 = vpack.c.bf16 %v1202, %v1201
    %v1218 = vpack.c.bf16 %v1204, %v1203
    %v1219 = vpack.c.bf16 %v1206, %v1205
    %v1220 = vpack.c.bf16 %v1208, %v1207
    %v1221 = vpack.c.bf16 %v1210, %v1209
    %v1222 = vpack.c.bf16 %v1212, %v1211
    %v1223 = vpack.c.bf16 %v1214, %v1213
    %v1224 = vpack.c.bf16 %v1216, %v1215
    %v1225 = vlaneseq
    %v1226 = vshrl.u32 %v1225, 7
    %v1227 = vsub.s32 1, %v1226
    %v1228 = vrot.slane %v641, %v1227
    %v1245 = vunpack.c.l.b16 %v545
    %v1246 = vunpack.c.l.b16 %v546
    %v1247 = vunpack.c.l.b16 %v547
    %v1248 = vunpack.c.l.b16 %v548
    %v1249 = vunpack.c.l.b16 %v549
    %v1250 = vunpack.c.l.b16 %v550
    %v1251 = vunpack.c.l.b16 %v551
    %v1252 = vunpack.c.l.b16 %v552
    %v1253 = vunpack.c.l.b16 %v553
    %v1254 = vunpack.c.l.b16 %v554
    %v1255 = vunpack.c.l.b16 %v555
    %v1256 = vunpack.c.l.b16 %v556
    %v1257 = vunpack.c.l.b16 %v557
    %v1258 = vunpack.c.l.b16 %v558
    %v1259 = vunpack.c.l.b16 %v559
    %v1260 = vunpack.c.l.b16 %v560
    %v1261 = vpack.c.b16 %v1246, %v1245
    %v1262 = vpack.c.b16 %v1248, %v1247
    %v1263 = vpack.c.b16 %v1250, %v1249
    %v1264 = vpack.c.b16 %v1252, %v1251
    %v1265 = vpack.c.b16 %v1254, %v1253
    %v1266 = vpack.c.b16 %v1256, %v1255
    %v1267 = vpack.c.b16 %v1258, %v1257
    %v1268 = vpack.c.b16 %v1260, %v1259
    %1277 = vmatprep.subr.bf16.mxu0 0
    %1278 = vmatpush1.bf16.msra.mxu0 %v1261
    %1279 = vmatprep.subr.bf16.mxu0 0
    %1280 = vmatpush1.bf16.msra.mxu0 %v1262
    %1281 = vmatprep.subr.bf16.mxu0 0
    %1282 = vmatpush1.bf16.msra.mxu0 %v1263
    %1283 = vmatprep.subr.bf16.mxu0 0
    %1284 = vmatpush1.bf16.msra.mxu0 %v1264
    %1285 = vmatprep.subr.bf16.mxu0 0
    %1286 = vmatpush1.bf16.msra.mxu0 %v1265
    %1287 = vmatprep.subr.bf16.mxu0 0
    %1288 = vmatpush1.bf16.msra.mxu0 %v1266
    %1289 = vmatprep.subr.bf16.mxu0 0
    %1290 = vmatpush1.bf16.msra.mxu0 %v1267
    %1291 = vmatprep.subr.bf16.mxu0 0
    %1292 = vmatpush1.bf16.msra.mxu0 %v1268
    %1293 = vmatprep.subr.bf16.mxu0 0
    %1294 = vmatpush1.bf16.msra.mxu0 0
    %1295 = vmatprep.subr.bf16.mxu0 0
    %1296 = vmatpush1.bf16.msra.mxu0 0
    %1297 = vmatprep.subr.bf16.mxu0 0
    %1298 = vmatpush1.bf16.msra.mxu0 0
    %1299 = vmatprep.subr.bf16.mxu0 0
    %1300 = vmatpush1.bf16.msra.mxu0 0
    %1301 = vmatprep.subr.bf16.mxu0 0
    %1302 = vmatpush1.bf16.msra.mxu0 0
    %1303 = vmatprep.subr.bf16.mxu0 0
    %1304 = vmatpush1.bf16.msra.mxu0 0
    %1305 = vmatprep.subr.bf16.mxu0 0
    %1306 = vmatpush1.bf16.msra.mxu0 0
    %1307 = vmatprep.subr.bf16.mxu0 0
    %1308 = vmatpush1.bf16.msra.mxu0 0
    %1309 = vmatprep.mubr.bf16.mxu0 0
    %1310 = vmatmul.mubr.bf16.gmra.mrb[0].mxu0 %v1217
    %v1311 = vpop.f32.mrb[0].mxu0
    %v1312 = vadd.f32 %v1228, %v1311
    %v1313 = vpop.f32.mrb[0].mxu0
    %v1314 = vpop.f32.mrb[0].mxu0
    %v1315 = vadd.f32 %v1228, %v1314
    %v1316 = vpop.f32.mrb[0].mxu0
    %1317 = vmatprep.mubr.bf16.mxu0 0
    %1318 = vmatmul.mubr.bf16.gmra.mrb[0].mxu0 %v1218
    %v1319 = vpop.f32.mrb[0].mxu0
    %v1320 = vadd.f32 %v1228, %v1319
    %v1321 = vpop.f32.mrb[0].mxu0
    %v1322 = vpop.f32.mrb[0].mxu0
    %v1323 = vadd.f32 %v1228, %v1322
    %v1324 = vpop.f32.mrb[0].mxu0
    %1325 = vmatprep.mubr.bf16.mxu0 0
    %1326 = vmatmul.mubr.bf16.gmra.mrb[0].mxu0 %v1219
    %v1327 = vpop.f32.mrb[0].mxu0
    %v1328 = vadd.f32 %v1228, %v1327
    %v1329 = vpop.f32.mrb[0].mxu0
    %v1330 = vpop.f32.mrb[0].mxu0
    %v1331 = vadd.f32 %v1228, %v1330
    %v1332 = vpop.f32.mrb[0].mxu0
    %1333 = vmatprep.mubr.bf16.mxu0 0
    %1334 = vmatmul.mubr.bf16.gmra.mrb[0].mxu0 %v1220
    %v1335 = vpop.f32.mrb[0].mxu0
    %v1336 = vadd.f32 %v1228, %v1335
    %v1337 = vpop.f32.mrb[0].mxu0
    %v1338 = vpop.f32.mrb[0].mxu0
    %v1339 = vadd.f32 %v1228, %v1338
    %v1340 = vpop.f32.mrb[0].mxu0
    %1341 = vmatprep.mubr.bf16.mxu0 0
    %1342 = vmatmul.mubr.bf16.gmra.mrb[0].mxu0 %v1221
    %v1343 = vpop.f32.mrb[0].mxu0
    %v1344 = vadd.f32 %v1228, %v1343
    %v1345 = vpop.f32.mrb[0].mxu0
    %v1346 = vpop.f32.mrb[0].mxu0
    %v1347 = vadd.f32 %v1228, %v1346
    %v1348 = vpop.f32.mrb[0].mxu0
    %1349 = vmatprep.mubr.bf16.mxu0 0
    %1350 = vmatmul.mubr.bf16.gmra.mrb[0].mxu0 %v1222
    %v1351 = vpop.f32.mrb[0].mxu0
    %v1352 = vadd.f32 %v1228, %v1351
    %v1353 = vpop.f32.mrb[0].mxu0
    %v1354 = vpop.f32.mrb[0].mxu0
    %v1355 = vadd.f32 %v1228, %v1354
    %v1356 = vpop.f32.mrb[0].mxu0
    %1357 = vmatprep.mubr.bf16.mxu0 0
    %1358 = vmatmul.mubr.bf16.gmra.mrb[0].mxu0 %v1223
    %v1359 = vpop.f32.mrb[0].mxu0
    %v1360 = vadd.f32 %v1228, %v1359
    %v1361 = vpop.f32.mrb[0].mxu0
    %v1362 = vpop.f32.mrb[0].mxu0
    %v1363 = vadd.f32 %v1228, %v1362
    %v1364 = vpop.f32.mrb[0].mxu0
    %1365 = vmatprep.mubr.bf16.mxu0 0
    %1366 = vmatmul.mubr.bf16.gmra.mrb[0].mxu0 %v1224
    %v1367 = vpop.f32.mrb[0].mxu0
    %v1368 = vadd.f32 %v1228, %v1367
    %v1369 = vpop.f32.mrb[0].mxu0
    %v1370 = vpop.f32.mrb[0].mxu0
    %v1371 = vadd.f32 %v1228, %v1370
    %v1372 = vpop.f32.mrb[0].mxu0
    %1373 = vdwg.mxu0
    %v1374 = vmax.f32 %v1312, 0.0
    %v1375 = vmax.f32 %v1315, 0.0
    %v1376 = vmax.f32 %v1320, 0.0
    %v1377 = vmax.f32 %v1323, 0.0
    %v1378 = vmax.f32 %v1328, 0.0
    %v1379 = vmax.f32 %v1331, 0.0
    %v1380 = vmax.f32 %v1336, 0.0
    %v1381 = vmax.f32 %v1339, 0.0
    %v1382 = vmax.f32 %v1344, 0.0
    %v1383 = vmax.f32 %v1347, 0.0
    %v1384 = vmax.f32 %v1352, 0.0
    %v1385 = vmax.f32 %v1355, 0.0
    %v1386 = vmax.f32 %v1360, 0.0
    %v1387 = vmax.f32 %v1363, 0.0
    %v1388 = vmax.f32 %v1368, 0.0
    %v1389 = vmax.f32 %v1371, 0.0
    %v1390 = vpack.c.bf16 %v1375, %v1374
    %v1391 = vpack.c.bf16 %v1377, %v1376
    %v1392 = vpack.c.bf16 %v1379, %v1378
    %v1393 = vpack.c.bf16 %v1381, %v1380
    %v1394 = vpack.c.bf16 %v1383, %v1382
    %v1395 = vpack.c.bf16 %v1385, %v1384
    %v1396 = vpack.c.bf16 %v1387, %v1386
    %v1397 = vpack.c.bf16 %v1389, %v1388
    %1398 = vmatprep.subr.bf16.mxu0 0
    %1399 = vmatpush1.bf16.msra.mxu0 %v1390
    %1400 = vmatprep.subr.bf16.mxu0 0
    %1401 = vmatpush1.bf16.msra.mxu0 %v1391
    %1402 = vmatprep.subr.bf16.mxu0 0
    %1403 = vmatpush1.bf16.msra.mxu0 %v1392
    %1404 = vmatprep.subr.bf16.mxu0 0
    %1405 = vmatpush1.bf16.msra.mxu0 %v1393
    %1406 = vmatprep.subr.bf16.mxu0 0
    %1407 = vmatpush1.bf16.msra.mxu0 %v1394
    %1408 = vmatprep.subr.bf16.mxu0 0
    %1409 = vmatpush1.bf16.msra.mxu0 %v1395
    %1410 = vmatprep.subr.bf16.mxu0 0
    %1411 = vmatpush1.bf16.msra.mxu0 %v1396
    %1412 = vmatprep.subr.bf16.mxu0 0
    %1413 = vmatpush1.bf16.msra.mxu0 %v1397
    %1414 = vmatprep.subr.bf16.mxu0 0
    %1415 = vmatpush1.bf16.msra.mxu0 0
    %1416 = vmatprep.subr.bf16.mxu0 0
    %1417 = vmatpush1.bf16.msra.mxu0 0
    %1418 = vmatprep.subr.bf16.mxu0 0
    %1419 = vmatpush1.bf16.msra.mxu0 0
    %1420 = vmatprep.subr.bf16.mxu0 0
    %1421 = vmatpush1.bf16.msra.mxu0 0
    %1422 = vmatprep.subr.bf16.mxu0 0
    %1423 = vmatpush1.bf16.msra.mxu0 0
    %1424 = vmatprep.subr.bf16.mxu0 0
    %1425 = vmatpush1.bf16.msra.mxu0 0
    %1426 = vmatprep.subr.bf16.mxu0 0
    %1427 = vmatpush1.bf16.msra.mxu0 0
    %1428 = vmatprep.subr.bf16.mxu0 0
    %1429 = vmatpush1.bf16.msra.mxu0 0
    %1430 = vmatprep.mubr.bf16.mxu0 0
    %1431 = vmatmul.mubr.bf16.gmra.mrb[0].mxu0 %v505
    %v1432 = vpop.f32.mrb[0].mxu0
    %v1433 = vadd.f32 %v1374, %v1432
    %v1434 = vpop.f32.mrb[0].mxu0
    %v1435 = vpop.f32.mrb[0].mxu0
    %v1436 = vadd.f32 %v1375, %v1435
    %v1437 = vpop.f32.mrb[0].mxu0
    %1438 = vmatprep.mubr.bf16.mxu0 0
    %1439 = vmatmul.mubr.bf16.gmra.mrb[0].mxu0 %v506
    %v1440 = vpop.f32.mrb[0].mxu0
    %v1441 = vadd.f32 %v1376, %v1440
    %v1442 = vpop.f32.mrb[0].mxu0
    %v1443 = vpop.f32.mrb[0].mxu0
    %v1444 = vadd.f32 %v1377, %v1443
    %v1445 = vpop.f32.mrb[0].mxu0
    %1446 = vmatprep.mubr.bf16.mxu0 0
    %1447 = vmatmul.mubr.bf16.gmra.mrb[0].mxu0 %v507
    %v1448 = vpop.f32.mrb[0].mxu0
    %v1449 = vadd.f32 %v1378, %v1448
    %v1450 = vpop.f32.mrb[0].mxu0
    %v1451 = vpop.f32.mrb[0].mxu0
    %v1452 = vadd.f32 %v1379, %v1451
    %v1453 = vpop.f32.mrb[0].mxu0
    %1454 = vmatprep.mubr.bf16.mxu0 0
    %1455 = vmatmul.mubr.bf16.gmra.mrb[0].mxu0 %v508
    %v1456 = vpop.f32.mrb[0].mxu0
    %v1457 = vadd.f32 %v1380, %v1456
    %v1458 = vpop.f32.mrb[0].mxu0
    %v1459 = vpop.f32.mrb[0].mxu0
    %v1460 = vadd.f32 %v1381, %v1459
    %v1461 = vpop.f32.mrb[0].mxu0
    %1462 = vmatprep.mubr.bf16.mxu0 0
    %1463 = vmatmul.mubr.bf16.gmra.mrb[0].mxu0 %v509
    %v1464 = vpop.f32.mrb[0].mxu0
    %v1465 = vadd.f32 %v1382, %v1464
    %v1466 = vpop.f32.mrb[0].mxu0
    %v1467 = vpop.f32.mrb[0].mxu0
    %v1468 = vadd.f32 %v1383, %v1467
    %v1469 = vpop.f32.mrb[0].mxu0
    %1470 = vmatprep.mubr.bf16.mxu0 0
    %1471 = vmatmul.mubr.bf16.gmra.mrb[0].mxu0 %v510
    %v1472 = vpop.f32.mrb[0].mxu0
    %v1473 = vadd.f32 %v1384, %v1472
    %v1474 = vpop.f32.mrb[0].mxu0
    %v1475 = vpop.f32.mrb[0].mxu0
    %v1476 = vadd.f32 %v1385, %v1475
    %v1477 = vpop.f32.mrb[0].mxu0
    %1478 = vmatprep.mubr.bf16.mxu0 0
    %1479 = vmatmul.mubr.bf16.gmra.mrb[0].mxu0 %v511
    %v1480 = vpop.f32.mrb[0].mxu0
    %v1481 = vadd.f32 %v1386, %v1480
    %v1482 = vpop.f32.mrb[0].mxu0
    %v1483 = vpop.f32.mrb[0].mxu0
    %v1484 = vadd.f32 %v1387, %v1483
    %v1485 = vpop.f32.mrb[0].mxu0
    %1486 = vmatprep.mubr.bf16.mxu0 0
    %1487 = vmatmul.mubr.bf16.gmra.mrb[0].mxu0 %v512
    %v1488 = vpop.f32.mrb[0].mxu0
    %v1489 = vadd.f32 %v1388, %v1488
    %v1490 = vpop.f32.mrb[0].mxu0
    %v1491 = vpop.f32.mrb[0].mxu0
    %v1492 = vadd.f32 %v1389, %v1491
    %v1493 = vpop.f32.mrb[0].mxu0
    %1494 = vdwg.mxu0
    %v1495 = vpack.c.bf16 %v1436, %v1433
    %v1496 = vpack.c.bf16 %v1444, %v1441
    %v1497 = vpack.c.bf16 %v1452, %v1449
    %v1498 = vpack.c.bf16 %v1460, %v1457
    %v1499 = vpack.c.bf16 %v1468, %v1465
    %v1500 = vpack.c.bf16 %v1476, %v1473
    %v1501 = vpack.c.bf16 %v1484, %v1481
    %v1502 = vpack.c.bf16 %v1492, %v1489
    %v1503 = vlaneseq
    %v1504 = vshrl.u32 %v1503, 7
    %v1505 = vsub.s32 2, %v1504
    %v1506 = vrot.slane %v641, %v1505
    %v1523 = vunpack.c.l.b16 %v561
    %v1524 = vunpack.c.l.b16 %v562
    %v1525 = vunpack.c.l.b16 %v563
    %v1526 = vunpack.c.l.b16 %v564
    %v1527 = vunpack.c.l.b16 %v565
    %v1528 = vunpack.c.l.b16 %v566
    %v1529 = vunpack.c.l.b16 %v567
    %v1530 = vunpack.c.l.b16 %v568
    %v1531 = vunpack.c.l.b16 %v569
    %v1532 = vunpack.c.l.b16 %v570
    %v1533 = vunpack.c.l.b16 %v571
    %v1534 = vunpack.c.l.b16 %v572
    %v1535 = vunpack.c.l.b16 %v573
    %v1536 = vunpack.c.l.b16 %v574
    %v1537 = vunpack.c.l.b16 %v575
    %v1538 = vunpack.c.l.b16 %v576
    %v1539 = vpack.c.b16 %v1524, %v1523
    %v1540 = vpack.c.b16 %v1526, %v1525
    %v1541 = vpack.c.b16 %v1528, %v1527
    %v1542 = vpack.c.b16 %v1530, %v1529
    %v1543 = vpack.c.b16 %v1532, %v1531
    %v1544 = vpack.c.b16 %v1534, %v1533
    %v1545 = vpack.c.b16 %v1536, %v1535
    %v1546 = vpack.c.b16 %v1538, %v1537
    %1555 = vmatprep.subr.bf16.mxu0 0
    %1556 = vmatpush1.bf16.msra.mxu0 %v1539
    %1557 = vmatprep.subr.bf16.mxu0 0
    %1558 = vmatpush1.bf16.msra.mxu0 %v1540
    %1559 = vmatprep.subr.bf16.mxu0 0
    %1560 = vmatpush1.bf16.msra.mxu0 %v1541
    %1561 = vmatprep.subr.bf16.mxu0 0
    %1562 = vmatpush1.bf16.msra.mxu0 %v1542
    %1563 = vmatprep.subr.bf16.mxu0 0
    %1564 = vmatpush1.bf16.msra.mxu0 %v1543
    %1565 = vmatprep.subr.bf16.mxu0 0
    %1566 = vmatpush1.bf16.msra.mxu0 %v1544
    %1567 = vmatprep.subr.bf16.mxu0 0
    %1568 = vmatpush1.bf16.msra.mxu0 %v1545
    %1569 = vmatprep.subr.bf16.mxu0 0
    %1570 = vmatpush1.bf16.msra.mxu0 %v1546
    %1571 = vmatprep.subr.bf16.mxu0 0
    %1572 = vmatpush1.bf16.msra.mxu0 0
    %1573 = vmatprep.subr.bf16.mxu0 0
    %1574 = vmatpush1.bf16.msra.mxu0 0
    %1575 = vmatprep.subr.bf16.mxu0 0
    %1576 = vmatpush1.bf16.msra.mxu0 0
    %1577 = vmatprep.subr.bf16.mxu0 0
    %1578 = vmatpush1.bf16.msra.mxu0 0
    %1579 = vmatprep.subr.bf16.mxu0 0
    %1580 = vmatpush1.bf16.msra.mxu0 0
    %1581 = vmatprep.subr.bf16.mxu0 0
    %1582 = vmatpush1.bf16.msra.mxu0 0
    %1583 = vmatprep.subr.bf16.mxu0 0
    %1584 = vmatpush1.bf16.msra.mxu0 0
    %1585 = vmatprep.subr.bf16.mxu0 0
    %1586 = vmatpush1.bf16.msra.mxu0 0
    %1587 = vmatprep.mubr.bf16.mxu0 0
    %1588 = vmatmul.mubr.bf16.gmra.mrb[0].mxu0 %v1495
    %v1589 = vpop.f32.mrb[0].mxu0
    %v1590 = vadd.f32 %v1506, %v1589
    %v1591 = vpop.f32.mrb[0].mxu0
    %v1592 = vpop.f32.mrb[0].mxu0
    %v1593 = vadd.f32 %v1506, %v1592
    %v1594 = vpop.f32.mrb[0].mxu0
    %1595 = vmatprep.mubr.bf16.mxu0 0
    %1596 = vmatmul.mubr.bf16.gmra.mrb[0].mxu0 %v1496
    %v1597 = vpop.f32.mrb[0].mxu0
    %v1598 = vadd.f32 %v1506, %v1597
    %v1599 = vpop.f32.mrb[0].mxu0
    %v1600 = vpop.f32.mrb[0].mxu0
    %v1601 = vadd.f32 %v1506, %v1600
    %v1602 = vpop.f32.mrb[0].mxu0
    %1603 = vmatprep.mubr.bf16.mxu0 0
    %1604 = vmatmul.mubr.bf16.gmra.mrb[0].mxu0 %v1497
    %v1605 = vpop.f32.mrb[0].mxu0
    %v1606 = vadd.f32 %v1506, %v1605
    %v1607 = vpop.f32.mrb[0].mxu0
    %v1608 = vpop.f32.mrb[0].mxu0
    %v1609 = vadd.f32 %v1506, %v1608
    %v1610 = vpop.f32.mrb[0].mxu0
    %1611 = vmatprep.mubr.bf16.mxu0 0
    %1612 = vmatmul.mubr.bf16.gmra.mrb[0].mxu0 %v1498
    %v1613 = vpop.f32.mrb[0].mxu0
    %v1614 = vadd.f32 %v1506, %v1613
    %v1615 = vpop.f32.mrb[0].mxu0
    %v1616 = vpop.f32.mrb[0].mxu0
    %v1617 = vadd.f32 %v1506, %v1616
    %v1618 = vpop.f32.mrb[0].mxu0
    %1619 = vmatprep.mubr.bf16.mxu0 0
    %1620 = vmatmul.mubr.bf16.gmra.mrb[0].mxu0 %v1499
    %v1621 = vpop.f32.mrb[0].mxu0
    %v1622 = vadd.f32 %v1506, %v1621
    %v1623 = vpop.f32.mrb[0].mxu0
    %v1624 = vpop.f32.mrb[0].mxu0
    %v1625 = vadd.f32 %v1506, %v1624
    %v1626 = vpop.f32.mrb[0].mxu0
    %1627 = vmatprep.mubr.bf16.mxu0 0
    %1628 = vmatmul.mubr.bf16.gmra.mrb[0].mxu0 %v1500
    %v1629 = vpop.f32.mrb[0].mxu0
    %v1630 = vadd.f32 %v1506, %v1629
    %v1631 = vpop.f32.mrb[0].mxu0
    %v1632 = vpop.f32.mrb[0].mxu0
    %v1633 = vadd.f32 %v1506, %v1632
    %v1634 = vpop.f32.mrb[0].mxu0
    %1635 = vmatprep.mubr.bf16.mxu0 0
    %1636 = vmatmul.mubr.bf16.gmra.mrb[0].mxu0 %v1501
    %v1637 = vpop.f32.mrb[0].mxu0
    %v1638 = vadd.f32 %v1506, %v1637
    %v1639 = vpop.f32.mrb[0].mxu0
    %v1640 = vpop.f32.mrb[0].mxu0
    %v1641 = vadd.f32 %v1506, %v1640
    %v1642 = vpop.f32.mrb[0].mxu0
    %1643 = vmatprep.mubr.bf16.mxu0 0
    %1644 = vmatmul.mubr.bf16.gmra.mrb[0].mxu0 %v1502
    %v1645 = vpop.f32.mrb[0].mxu0
    %v1646 = vadd.f32 %v1506, %v1645
    %v1647 = vpop.f32.mrb[0].mxu0
    %v1648 = vpop.f32.mrb[0].mxu0
    %v1649 = vadd.f32 %v1506, %v1648
    %v1650 = vpop.f32.mrb[0].mxu0
    %1651 = vdwg.mxu0
    %v1652 = vmax.f32 %v1590, 0.0
    %v1653 = vmax.f32 %v1593, 0.0
    %v1654 = vmax.f32 %v1598, 0.0
    %v1655 = vmax.f32 %v1601, 0.0
    %v1656 = vmax.f32 %v1606, 0.0
    %v1657 = vmax.f32 %v1609, 0.0
    %v1658 = vmax.f32 %v1614, 0.0
    %v1659 = vmax.f32 %v1617, 0.0
    %v1660 = vmax.f32 %v1622, 0.0
    %v1661 = vmax.f32 %v1625, 0.0
    %v1662 = vmax.f32 %v1630, 0.0
    %v1663 = vmax.f32 %v1633, 0.0
    %v1664 = vmax.f32 %v1638, 0.0
    %v1665 = vmax.f32 %v1641, 0.0
    %v1666 = vmax.f32 %v1646, 0.0
    %v1667 = vmax.f32 %v1649, 0.0
    %v1668 = vpack.c.bf16 %v1653, %v1652
    %v1669 = vpack.c.bf16 %v1655, %v1654
    %v1670 = vpack.c.bf16 %v1657, %v1656
    %v1671 = vpack.c.bf16 %v1659, %v1658
    %v1672 = vpack.c.bf16 %v1661, %v1660
    %v1673 = vpack.c.bf16 %v1663, %v1662
    %v1674 = vpack.c.bf16 %v1665, %v1664
    %v1675 = vpack.c.bf16 %v1667, %v1666
    %v1676 = vlaneseq
    %v1677 = vshrl.u32 %v1676, 7
    %v1678 = vsub.s32 3, %v1677
    %v1679 = vrot.slane %v641, %v1678
    %v1696 = vunpack.c.l.b16 %v577
    %v1697 = vunpack.c.l.b16 %v578
    %v1698 = vunpack.c.l.b16 %v579
    %v1699 = vunpack.c.l.b16 %v580
    %v1700 = vunpack.c.l.b16 %v581
    %v1701 = vunpack.c.l.b16 %v582
    %v1702 = vunpack.c.l.b16 %v583
    %v1703 = vunpack.c.l.b16 %v584
    %v1704 = vunpack.c.l.b16 %v585
    %v1705 = vunpack.c.l.b16 %v586
    %v1706 = vunpack.c.l.b16 %v587
    %v1707 = vunpack.c.l.b16 %v588
    %v1708 = vunpack.c.l.b16 %v589
    %v1709 = vunpack.c.l.b16 %v590
    %v1710 = vunpack.c.l.b16 %v591
    %v1711 = vunpack.c.l.b16 %v592
    %v1712 = vpack.c.b16 %v1697, %v1696
    %v1713 = vpack.c.b16 %v1699, %v1698
    %v1714 = vpack.c.b16 %v1701, %v1700
    %v1715 = vpack.c.b16 %v1703, %v1702
    %v1716 = vpack.c.b16 %v1705, %v1704
    %v1717 = vpack.c.b16 %v1707, %v1706
    %v1718 = vpack.c.b16 %v1709, %v1708
    %v1719 = vpack.c.b16 %v1711, %v1710
    %1728 = vmatprep.subr.bf16.mxu0 0
    %1729 = vmatpush1.bf16.msra.mxu0 %v1712
    %1730 = vmatprep.subr.bf16.mxu0 0
    %1731 = vmatpush1.bf16.msra.mxu0 %v1713
    %1732 = vmatprep.subr.bf16.mxu0 0
    %1733 = vmatpush1.bf16.msra.mxu0 %v1714
    %1734 = vmatprep.subr.bf16.mxu0 0
    %1735 = vmatpush1.bf16.msra.mxu0 %v1715
    %1736 = vmatprep.subr.bf16.mxu0 0
    %1737 = vmatpush1.bf16.msra.mxu0 %v1716
    %1738 = vmatprep.subr.bf16.mxu0 0
    %1739 = vmatpush1.bf16.msra.mxu0 %v1717
    %1740 = vmatprep.subr.bf16.mxu0 0
    %1741 = vmatpush1.bf16.msra.mxu0 %v1718
    %1742 = vmatprep.subr.bf16.mxu0 0
    %1743 = vmatpush1.bf16.msra.mxu0 %v1719
    %1744 = vmatprep.subr.bf16.mxu0 0
    %1745 = vmatpush1.bf16.msra.mxu0 0
    %1746 = vmatprep.subr.bf16.mxu0 0
    %1747 = vmatpush1.bf16.msra.mxu0 0
    %1748 = vmatprep.subr.bf16.mxu0 0
    %1749 = vmatpush1.bf16.msra.mxu0 0
    %1750 = vmatprep.subr.bf16.mxu0 0
    %1751 = vmatpush1.bf16.msra.mxu0 0
    %1752 = vmatprep.subr.bf16.mxu0 0
    %1753 = vmatpush1.bf16.msra.mxu0 0
    %1754 = vmatprep.subr.bf16.mxu0 0
    %1755 = vmatpush1.bf16.msra.mxu0 0
    %1756 = vmatprep.subr.bf16.mxu0 0
    %1757 = vmatpush1.bf16.msra.mxu0 0
    %1758 = vmatprep.subr.bf16.mxu0 0
    %1759 = vmatpush1.bf16.msra.mxu0 0
    %1760 = vmatprep.mubr.bf16.mxu0 0
    %1761 = vmatmul.mubr.bf16.gmra.mrb[0].mxu0 %v1668
    %v1762 = vpop.f32.mrb[0].mxu0
    %v1763 = vadd.f32 %v1679, %v1762
    %v1764 = vpop.f32.mrb[0].mxu0
    %v1765 = vpop.f32.mrb[0].mxu0
    %v1766 = vadd.f32 %v1679, %v1765
    %v1767 = vpop.f32.mrb[0].mxu0
    %1768 = vmatprep.mubr.bf16.mxu0 0
    %1769 = vmatmul.mubr.bf16.gmra.mrb[0].mxu0 %v1669
    %v1770 = vpop.f32.mrb[0].mxu0
    %v1771 = vadd.f32 %v1679, %v1770
    %v1772 = vpop.f32.mrb[0].mxu0
    %v1773 = vpop.f32.mrb[0].mxu0
    %v1774 = vadd.f32 %v1679, %v1773
    %v1775 = vpop.f32.mrb[0].mxu0
    %1776 = vmatprep.mubr.bf16.mxu0 0
    %1777 = vmatmul.mubr.bf16.gmra.mrb[0].mxu0 %v1670
    %v1778 = vpop.f32.mrb[0].mxu0
    %v1779 = vadd.f32 %v1679, %v1778
    %v1780 = vpop.f32.mrb[0].mxu0
    %v1781 = vpop.f32.mrb[0].mxu0
    %v1782 = vadd.f32 %v1679, %v1781
    %v1783 = vpop.f32.mrb[0].mxu0
    %1784 = vmatprep.mubr.bf16.mxu0 0
    %1785 = vmatmul.mubr.bf16.gmra.mrb[0].mxu0 %v1671
    %v1786 = vpop.f32.mrb[0].mxu0
    %v1787 = vadd.f32 %v1679, %v1786
    %v1788 = vpop.f32.mrb[0].mxu0
    %v1789 = vpop.f32.mrb[0].mxu0
    %v1790 = vadd.f32 %v1679, %v1789
    %v1791 = vpop.f32.mrb[0].mxu0
    %1792 = vmatprep.mubr.bf16.mxu0 0
    %1793 = vmatmul.mubr.bf16.gmra.mrb[0].mxu0 %v1672
    %v1794 = vpop.f32.mrb[0].mxu0
    %v1795 = vadd.f32 %v1679, %v1794
    %v1796 = vpop.f32.mrb[0].mxu0
    %v1797 = vpop.f32.mrb[0].mxu0
    %v1798 = vadd.f32 %v1679, %v1797
    %v1799 = vpop.f32.mrb[0].mxu0
    %1800 = vmatprep.mubr.bf16.mxu0 0
    %1801 = vmatmul.mubr.bf16.gmra.mrb[0].mxu0 %v1673
    %v1802 = vpop.f32.mrb[0].mxu0
    %v1803 = vadd.f32 %v1679, %v1802
    %v1804 = vpop.f32.mrb[0].mxu0
    %v1805 = vpop.f32.mrb[0].mxu0
    %v1806 = vadd.f32 %v1679, %v1805
    %v1807 = vpop.f32.mrb[0].mxu0
    %1808 = vmatprep.mubr.bf16.mxu0 0
    %1809 = vmatmul.mubr.bf16.gmra.mrb[0].mxu0 %v1674
    %v1810 = vpop.f32.mrb[0].mxu0
    %v1811 = vadd.f32 %v1679, %v1810
    %v1812 = vpop.f32.mrb[0].mxu0
    %v1813 = vpop.f32.mrb[0].mxu0
    %v1814 = vadd.f32 %v1679, %v1813
    %v1815 = vpop.f32.mrb[0].mxu0
    %1816 = vmatprep.mubr.bf16.mxu0 0
    %1817 = vmatmul.mubr.bf16.gmra.mrb[0].mxu0 %v1675
    %v1818 = vpop.f32.mrb[0].mxu0
    %v1819 = vadd.f32 %v1679, %v1818
    %v1820 = vpop.f32.mrb[0].mxu0
    %v1821 = vpop.f32.mrb[0].mxu0
    %v1822 = vadd.f32 %v1679, %v1821
    %v1823 = vpop.f32.mrb[0].mxu0
    %1824 = vdwg.mxu0
    %v1825 = vsub.f32 1.0, %v674
    %v1826 = vsub.f32 1.0, %v675
    %v1827 = vsub.f32 1.0, %v676
    %v1828 = vsub.f32 1.0, %v677
    %v1829 = vsub.f32 1.0, %v678
    %v1830 = vsub.f32 1.0, %v679
    %v1831 = vsub.f32 1.0, %v680
    %v1832 = vsub.f32 1.0, %v681
    %v1833 = vsub.f32 1.0, %v682
    %v1834 = vsub.f32 1.0, %v683
    %v1835 = vsub.f32 1.0, %v684
    %v1836 = vsub.f32 1.0, %v685
    %v1837 = vsub.f32 1.0, %v686
    %v1838 = vsub.f32 1.0, %v687
    %v1839 = vsub.f32 1.0, %v688
    %v1840 = vsub.f32 1.0, %v689
    %1842 = vset.pattern.permute.xlu0 0
    %1843 = vperm.xlu0 %1842, %v1825
    %v1844 = vpop.permute.xlu0 %1843
    %1847 = vset.pattern.permute.xlu0 0
    %1848 = vperm.xlu0 %1847, %v1826
    %v1849 = vpop.permute.xlu0 %1848
    %1852 = vset.pattern.permute.xlu0 0
    %1853 = vperm.xlu0 %1852, %v1827
    %v1854 = vpop.permute.xlu0 %1853
    %1857 = vset.pattern.permute.xlu0 0
    %1858 = vperm.xlu0 %1857, %v1828
    %v1859 = vpop.permute.xlu0 %1858
    %1862 = vset.pattern.permute.xlu0 0
    %1863 = vperm.xlu0 %1862, %v1829
    %v1864 = vpop.permute.xlu0 %1863
    %1867 = vset.pattern.permute.xlu0 0
    %1868 = vperm.xlu0 %1867, %v1830
    %v1869 = vpop.permute.xlu0 %1868
    %1872 = vset.pattern.permute.xlu0 0
    %1873 = vperm.xlu0 %1872, %v1831
    %v1874 = vpop.permute.xlu0 %1873
    %1877 = vset.pattern.permute.xlu0 0
    %1878 = vperm.xlu0 %1877, %v1832
    %v1879 = vpop.permute.xlu0 %1878
    %1882 = vset.pattern.permute.xlu0 0
    %1883 = vperm.xlu0 %1882, %v1833
    %v1884 = vpop.permute.xlu0 %1883
    %1887 = vset.pattern.permute.xlu0 0
    %1888 = vperm.xlu0 %1887, %v1834
    %v1889 = vpop.permute.xlu0 %1888
    %1892 = vset.pattern.permute.xlu0 0
    %1893 = vperm.xlu0 %1892, %v1835
    %v1894 = vpop.permute.xlu0 %1893
    %1897 = vset.pattern.permute.xlu0 0
    %1898 = vperm.xlu0 %1897, %v1836
    %v1899 = vpop.permute.xlu0 %1898
    %1902 = vset.pattern.permute.xlu0 0
    %1903 = vperm.xlu0 %1902, %v1837
    %v1904 = vpop.permute.xlu0 %1903
    %1907 = vset.pattern.permute.xlu0 0
    %1908 = vperm.xlu0 %1907, %v1838
    %v1909 = vpop.permute.xlu0 %1908
    %1912 = vset.pattern.permute.xlu0 0
    %1913 = vperm.xlu0 %1912, %v1839
    %v1914 = vpop.permute.xlu0 %1913
    %1917 = vset.pattern.permute.xlu0 0
    %1918 = vperm.xlu0 %1917, %v1840
    %v1919 = vpop.permute.xlu0 %1918
    %v1921 = vmul.f32 %v1763, %v1844
    %v1922 = vmul.f32 %v1766, %v1849
    %v1923 = vmul.f32 %v1771, %v1854
    %v1924 = vmul.f32 %v1774, %v1859
    %v1925 = vmul.f32 %v1779, %v1864
    %v1926 = vmul.f32 %v1782, %v1869
    %v1927 = vmul.f32 %v1787, %v1874
    %v1928 = vmul.f32 %v1790, %v1879
    %v1929 = vmul.f32 %v1795, %v1884
    %v1930 = vmul.f32 %v1798, %v1889
    %v1931 = vmul.f32 %v1803, %v1894
    %v1932 = vmul.f32 %v1806, %v1899
    %v1933 = vmul.f32 %v1811, %v1904
    %v1934 = vmul.f32 %v1814, %v1909
    %v1935 = vmul.f32 %v1819, %v1914
    %v1936 = vmul.f32 %v1822, %v1919
    %1938 = vset.pattern.permute.xlu0 0
    %1939 = vperm.xlu0 %1938, %v674
    %v1940 = vpop.permute.xlu0 %1939
    %1943 = vset.pattern.permute.xlu0 0
    %1944 = vperm.xlu0 %1943, %v675
    %v1945 = vpop.permute.xlu0 %1944
    %1948 = vset.pattern.permute.xlu0 0
    %1949 = vperm.xlu0 %1948, %v676
    %v1950 = vpop.permute.xlu0 %1949
    %1953 = vset.pattern.permute.xlu0 0
    %1954 = vperm.xlu0 %1953, %v677
    %v1955 = vpop.permute.xlu0 %1954
    %1958 = vset.pattern.permute.xlu0 0
    %1959 = vperm.xlu0 %1958, %v678
    %v1960 = vpop.permute.xlu0 %1959
    %1963 = vset.pattern.permute.xlu0 0
    %1964 = vperm.xlu0 %1963, %v679
    %v1965 = vpop.permute.xlu0 %1964
    %1968 = vset.pattern.permute.xlu0 0
    %1969 = vperm.xlu0 %1968, %v680
    %v1970 = vpop.permute.xlu0 %1969
    %1973 = vset.pattern.permute.xlu0 0
    %1974 = vperm.xlu0 %1973, %v681
    %v1975 = vpop.permute.xlu0 %1974
    %1978 = vset.pattern.permute.xlu0 0
    %1979 = vperm.xlu0 %1978, %v682
    %v1980 = vpop.permute.xlu0 %1979
    %1983 = vset.pattern.permute.xlu0 0
    %1984 = vperm.xlu0 %1983, %v683
    %v1985 = vpop.permute.xlu0 %1984
    %1988 = vset.pattern.permute.xlu0 0
    %1989 = vperm.xlu0 %1988, %v684
    %v1990 = vpop.permute.xlu0 %1989
    %1993 = vset.pattern.permute.xlu0 0
    %1994 = vperm.xlu0 %1993, %v685
    %v1995 = vpop.permute.xlu0 %1994
    %1998 = vset.pattern.permute.xlu0 0
    %1999 = vperm.xlu0 %1998, %v686
    %v2000 = vpop.permute.xlu0 %1999
    %2003 = vset.pattern.permute.xlu0 0
    %2004 = vperm.xlu0 %2003, %v687
    %v2005 = vpop.permute.xlu0 %2004
    %2008 = vset.pattern.permute.xlu0 0
    %2009 = vperm.xlu0 %2008, %v688
    %v2010 = vpop.permute.xlu0 %2009
    %2013 = vset.pattern.permute.xlu0 0
    %2014 = vperm.xlu0 %2013, %v689
    %v2015 = vpop.permute.xlu0 %2014
    %v2017 = vlaneseq
    %v2018 = vshrl.u32 %v2017, 7
    %v2019 = vsub.s32 6, %v2018
    %v2020 = vrot.slane %v641, %v2019
    %v2021 = vmul.f32 %v1940, %v2020
    %v2022 = vmul.f32 %v1945, %v2020
    %v2023 = vmul.f32 %v1950, %v2020
    %v2024 = vmul.f32 %v1955, %v2020
    %v2025 = vmul.f32 %v1960, %v2020
    %v2026 = vmul.f32 %v1965, %v2020
    %v2027 = vmul.f32 %v1970, %v2020
    %v2028 = vmul.f32 %v1975, %v2020
    %v2029 = vmul.f32 %v1980, %v2020
    %v2030 = vmul.f32 %v1985, %v2020
    %v2031 = vmul.f32 %v1990, %v2020
    %v2032 = vmul.f32 %v1995, %v2020
    %v2033 = vmul.f32 %v2000, %v2020
    %v2034 = vmul.f32 %v2005, %v2020
    %v2035 = vmul.f32 %v2010, %v2020
    %v2036 = vmul.f32 %v2015, %v2020
    %v2037 = vadd.f32 %v1921, %v2021
    %v2038 = vadd.f32 %v1922, %v2022
    %v2039 = vadd.f32 %v1923, %v2023
    %v2040 = vadd.f32 %v1924, %v2024
    %v2041 = vadd.f32 %v1925, %v2025
    %v2042 = vadd.f32 %v1926, %v2026
    %v2043 = vadd.f32 %v1927, %v2027
    %v2044 = vadd.f32 %v1928, %v2028
    %v2045 = vadd.f32 %v1929, %v2029
    %v2046 = vadd.f32 %v1930, %v2030
    %v2047 = vadd.f32 %v1931, %v2031
    %v2048 = vadd.f32 %v1932, %v2032
    %v2049 = vadd.f32 %v1933, %v2033
    %v2050 = vadd.f32 %v1934, %v2034
    %v2051 = vadd.f32 %v1935, %v2035
    %v2052 = vadd.f32 %v1936, %v2036
    %v2053 = vpack.c.bf16 %v2038, %v2037
    %v2054 = vpack.c.bf16 %v2040, %v2039
    %v2055 = vpack.c.bf16 %v2042, %v2041
    %v2056 = vpack.c.bf16 %v2044, %v2043
    %v2057 = vpack.c.bf16 %v2046, %v2045
    %v2058 = vpack.c.bf16 %v2048, %v2047
    %v2059 = vpack.c.bf16 %v2050, %v2049
    %v2060 = vpack.c.bf16 %v2052, %v2051
    %2061 = vmatprep.subr.bf16.mxu0 0
    %2062 = vmatpush1.bf16.msra.mxu0 %v2053
    %2063 = vmatprep.subr.bf16.mxu0 0
    %2064 = vmatpush1.bf16.msra.mxu0 %v2054
    %2065 = vmatprep.subr.bf16.mxu0 0
    %2066 = vmatpush1.bf16.msra.mxu0 %v2055
    %2067 = vmatprep.subr.bf16.mxu0 0
    %2068 = vmatpush1.bf16.msra.mxu0 %v2056
    %2069 = vmatprep.subr.bf16.mxu0 0
    %2070 = vmatpush1.bf16.msra.mxu0 %v2057
    %2071 = vmatprep.subr.bf16.mxu0 0
    %2072 = vmatpush1.bf16.msra.mxu0 %v2058
    %2073 = vmatprep.subr.bf16.mxu0 0
    %2074 = vmatpush1.bf16.msra.mxu0 %v2059
    %2075 = vmatprep.subr.bf16.mxu0 0
    %2076 = vmatpush1.bf16.msra.mxu0 %v2060
    %2077 = vmatprep.subr.bf16.mxu0 0
    %2078 = vmatpush1.bf16.msra.mxu0 0
    %2079 = vmatprep.subr.bf16.mxu0 0
    %2080 = vmatpush1.bf16.msra.mxu0 0
    %2081 = vmatprep.subr.bf16.mxu0 0
    %2082 = vmatpush1.bf16.msra.mxu0 0
    %2083 = vmatprep.subr.bf16.mxu0 0
    %2084 = vmatpush1.bf16.msra.mxu0 0
    %2085 = vmatprep.subr.bf16.mxu0 0
    %2086 = vmatpush1.bf16.msra.mxu0 0
    %2087 = vmatprep.subr.bf16.mxu0 0
    %2088 = vmatpush1.bf16.msra.mxu0 0
    %2089 = vmatprep.subr.bf16.mxu0 0
    %2090 = vmatpush1.bf16.msra.mxu0 0
    %2091 = vmatprep.subr.bf16.mxu0 0
    %2092 = vmatpush1.bf16.msra.mxu0 0
    %2093 = vmatprep.mubr.bf16.mxu0 0
    %2094 = vmatmul.mubr.bf16.gmra.mrb[0].mxu0 %v505
    %v2095 = vpop.f32.mrb[0].mxu0
    %v2096 = vadd.f32 %v2037, %v2095
    %v2097 = vpop.f32.mrb[0].mxu0
    %v2098 = vpop.f32.mrb[0].mxu0
    %v2099 = vadd.f32 %v2038, %v2098
    %v2100 = vpop.f32.mrb[0].mxu0
    %2101 = vmatprep.mubr.bf16.mxu0 0
    %2102 = vmatmul.mubr.bf16.gmra.mrb[0].mxu0 %v506
    %v2103 = vpop.f32.mrb[0].mxu0
    %v2104 = vadd.f32 %v2039, %v2103
    %v2105 = vpop.f32.mrb[0].mxu0
    %v2106 = vpop.f32.mrb[0].mxu0
    %v2107 = vadd.f32 %v2040, %v2106
    %v2108 = vpop.f32.mrb[0].mxu0
    %2109 = vmatprep.mubr.bf16.mxu0 0
    %2110 = vmatmul.mubr.bf16.gmra.mrb[0].mxu0 %v507
    %v2111 = vpop.f32.mrb[0].mxu0
    %v2112 = vadd.f32 %v2041, %v2111
    %v2113 = vpop.f32.mrb[0].mxu0
    %v2114 = vpop.f32.mrb[0].mxu0
    %v2115 = vadd.f32 %v2042, %v2114
    %v2116 = vpop.f32.mrb[0].mxu0
    %2117 = vmatprep.mubr.bf16.mxu0 0
    %2118 = vmatmul.mubr.bf16.gmra.mrb[0].mxu0 %v508
    %v2119 = vpop.f32.mrb[0].mxu0
    %v2120 = vadd.f32 %v2043, %v2119
    %v2121 = vpop.f32.mrb[0].mxu0
    %v2122 = vpop.f32.mrb[0].mxu0
    %v2123 = vadd.f32 %v2044, %v2122
    %v2124 = vpop.f32.mrb[0].mxu0
    %2125 = vmatprep.mubr.bf16.mxu0 0
    %2126 = vmatmul.mubr.bf16.gmra.mrb[0].mxu0 %v509
    %v2127 = vpop.f32.mrb[0].mxu0
    %v2128 = vadd.f32 %v2045, %v2127
    %v2129 = vpop.f32.mrb[0].mxu0
    %v2130 = vpop.f32.mrb[0].mxu0
    %v2131 = vadd.f32 %v2046, %v2130
    %v2132 = vpop.f32.mrb[0].mxu0
    %2133 = vmatprep.mubr.bf16.mxu0 0
    %2134 = vmatmul.mubr.bf16.gmra.mrb[0].mxu0 %v510
    %v2135 = vpop.f32.mrb[0].mxu0
    %v2136 = vadd.f32 %v2047, %v2135
    %v2137 = vpop.f32.mrb[0].mxu0
    %v2138 = vpop.f32.mrb[0].mxu0
    %v2139 = vadd.f32 %v2048, %v2138
    %v2140 = vpop.f32.mrb[0].mxu0
    %2141 = vmatprep.mubr.bf16.mxu0 0
    %2142 = vmatmul.mubr.bf16.gmra.mrb[0].mxu0 %v511
    %v2143 = vpop.f32.mrb[0].mxu0
    %v2144 = vadd.f32 %v2049, %v2143
    %v2145 = vpop.f32.mrb[0].mxu0
    %v2146 = vpop.f32.mrb[0].mxu0
    %v2147 = vadd.f32 %v2050, %v2146
    %v2148 = vpop.f32.mrb[0].mxu0
    %2149 = vmatprep.mubr.bf16.mxu0 0
    %2150 = vmatmul.mubr.bf16.gmra.mrb[0].mxu0 %v512
    %v2151 = vpop.f32.mrb[0].mxu0
    %v2152 = vadd.f32 %v2051, %v2151
    %v2153 = vpop.f32.mrb[0].mxu0
    %v2154 = vpop.f32.mrb[0].mxu0
    %v2155 = vadd.f32 %v2052, %v2154
    %v2156 = vpop.f32.mrb[0].mxu0
    %2157 = vdwg.mxu0
    %v2158 = vpack.c.bf16 %v2099, %v2096
    %v2159 = vpack.c.bf16 %v2107, %v2104
    %v2160 = vpack.c.bf16 %v2115, %v2112
    %v2161 = vpack.c.bf16 %v2123, %v2120
    %v2162 = vpack.c.bf16 %v2131, %v2128
    %v2163 = vpack.c.bf16 %v2139, %v2136
    %v2164 = vpack.c.bf16 %v2147, %v2144
    %v2165 = vpack.c.bf16 %v2155, %v2152
    %v2166 = vlaneseq
    %v2167 = vshrl.u32 %v2166, 7
    %v2168 = vsub.s32 4, %v2167
    %v2169 = vrot.slane %v641, %v2168
    %v2186 = vunpack.c.l.b16 %v593
    %v2187 = vunpack.c.l.b16 %v594
    %v2188 = vunpack.c.l.b16 %v595
    %v2189 = vunpack.c.l.b16 %v596
    %v2190 = vunpack.c.l.b16 %v597
    %v2191 = vunpack.c.l.b16 %v598
    %v2192 = vunpack.c.l.b16 %v599
    %v2193 = vunpack.c.l.b16 %v600
    %v2194 = vunpack.c.l.b16 %v601
    %v2195 = vunpack.c.l.b16 %v602
    %v2196 = vunpack.c.l.b16 %v603
    %v2197 = vunpack.c.l.b16 %v604
    %v2198 = vunpack.c.l.b16 %v605
    %v2199 = vunpack.c.l.b16 %v606
    %v2200 = vunpack.c.l.b16 %v607
    %v2201 = vunpack.c.l.b16 %v608
    %v2202 = vpack.c.b16 %v2187, %v2186
    %v2203 = vpack.c.b16 %v2189, %v2188
    %v2204 = vpack.c.b16 %v2191, %v2190
    %v2205 = vpack.c.b16 %v2193, %v2192
    %v2206 = vpack.c.b16 %v2195, %v2194
    %v2207 = vpack.c.b16 %v2197, %v2196
    %v2208 = vpack.c.b16 %v2199, %v2198
    %v2209 = vpack.c.b16 %v2201, %v2200
    %2218 = vmatprep.subr.bf16.mxu0 0
    %2219 = vmatpush1.bf16.msra.mxu0 %v2202
    %2220 = vmatprep.subr.bf16.mxu0 0
    %2221 = vmatpush1.bf16.msra.mxu0 %v2203
    %2222 = vmatprep.subr.bf16.mxu0 0
    %2223 = vmatpush1.bf16.msra.mxu0 %v2204
    %2224 = vmatprep.subr.bf16.mxu0 0
    %2225 = vmatpush1.bf16.msra.mxu0 %v2205
    %2226 = vmatprep.subr.bf16.mxu0 0
    %2227 = vmatpush1.bf16.msra.mxu0 %v2206
    %2228 = vmatprep.subr.bf16.mxu0 0
    %2229 = vmatpush1.bf16.msra.mxu0 %v2207
    %2230 = vmatprep.subr.bf16.mxu0 0
    %2231 = vmatpush1.bf16.msra.mxu0 %v2208
    %2232 = vmatprep.subr.bf16.mxu0 0
    %2233 = vmatpush1.bf16.msra.mxu0 %v2209
    %2234 = vmatprep.subr.bf16.mxu0 0
    %2235 = vmatpush1.bf16.msra.mxu0 0
    %2236 = vmatprep.subr.bf16.mxu0 0
    %2237 = vmatpush1.bf16.msra.mxu0 0
    %2238 = vmatprep.subr.bf16.mxu0 0
    %2239 = vmatpush1.bf16.msra.mxu0 0
    %2240 = vmatprep.subr.bf16.mxu0 0
    %2241 = vmatpush1.bf16.msra.mxu0 0
    %2242 = vmatprep.subr.bf16.mxu0 0
    %2243 = vmatpush1.bf16.msra.mxu0 0
    %2244 = vmatprep.subr.bf16.mxu0 0
    %2245 = vmatpush1.bf16.msra.mxu0 0
    %2246 = vmatprep.subr.bf16.mxu0 0
    %2247 = vmatpush1.bf16.msra.mxu0 0
    %2248 = vmatprep.subr.bf16.mxu0 0
    %2249 = vmatpush1.bf16.msra.mxu0 0
    %2250 = vmatprep.mubr.bf16.mxu0 0
    %2251 = vmatmul.mubr.bf16.gmra.mrb[0].mxu0 %v2158
    %v2252 = vpop.f32.mrb[0].mxu0
    %v2253 = vadd.f32 %v2169, %v2252
    %v2254 = vpop.f32.mrb[0].mxu0
    %v2255 = vpop.f32.mrb[0].mxu0
    %v2256 = vadd.f32 %v2169, %v2255
    %v2257 = vpop.f32.mrb[0].mxu0
    %2258 = vmatprep.mubr.bf16.mxu0 0
    %2259 = vmatmul.mubr.bf16.gmra.mrb[0].mxu0 %v2159
    %v2260 = vpop.f32.mrb[0].mxu0
    %v2261 = vadd.f32 %v2169, %v2260
    %v2262 = vpop.f32.mrb[0].mxu0
    %v2263 = vpop.f32.mrb[0].mxu0
    %v2264 = vadd.f32 %v2169, %v2263
    %v2265 = vpop.f32.mrb[0].mxu0
    %2266 = vmatprep.mubr.bf16.mxu0 0
    %2267 = vmatmul.mubr.bf16.gmra.mrb[0].mxu0 %v2160
    %v2268 = vpop.f32.mrb[0].mxu0
    %v2269 = vadd.f32 %v2169, %v2268
    %v2270 = vpop.f32.mrb[0].mxu0
    %v2271 = vpop.f32.mrb[0].mxu0
    %v2272 = vadd.f32 %v2169, %v2271
    %v2273 = vpop.f32.mrb[0].mxu0
    %2274 = vmatprep.mubr.bf16.mxu0 0
    %2275 = vmatmul.mubr.bf16.gmra.mrb[0].mxu0 %v2161
    %v2276 = vpop.f32.mrb[0].mxu0
    %v2277 = vadd.f32 %v2169, %v2276
    %v2278 = vpop.f32.mrb[0].mxu0
    %v2279 = vpop.f32.mrb[0].mxu0
    %v2280 = vadd.f32 %v2169, %v2279
    %v2281 = vpop.f32.mrb[0].mxu0
    %2282 = vmatprep.mubr.bf16.mxu0 0
    %2283 = vmatmul.mubr.bf16.gmra.mrb[0].mxu0 %v2162
    %v2284 = vpop.f32.mrb[0].mxu0
    %v2285 = vadd.f32 %v2169, %v2284
    %v2286 = vpop.f32.mrb[0].mxu0
    %v2287 = vpop.f32.mrb[0].mxu0
    %v2288 = vadd.f32 %v2169, %v2287
    %v2289 = vpop.f32.mrb[0].mxu0
    %2290 = vmatprep.mubr.bf16.mxu0 0
    %2291 = vmatmul.mubr.bf16.gmra.mrb[0].mxu0 %v2163
    %v2292 = vpop.f32.mrb[0].mxu0
    %v2293 = vadd.f32 %v2169, %v2292
    %v2294 = vpop.f32.mrb[0].mxu0
    %v2295 = vpop.f32.mrb[0].mxu0
    %v2296 = vadd.f32 %v2169, %v2295
    %v2297 = vpop.f32.mrb[0].mxu0
    %2298 = vmatprep.mubr.bf16.mxu0 0
    %2299 = vmatmul.mubr.bf16.gmra.mrb[0].mxu0 %v2164
    %v2300 = vpop.f32.mrb[0].mxu0
    %v2301 = vadd.f32 %v2169, %v2300
    %v2302 = vpop.f32.mrb[0].mxu0
    %v2303 = vpop.f32.mrb[0].mxu0
    %v2304 = vadd.f32 %v2169, %v2303
    %v2305 = vpop.f32.mrb[0].mxu0
    %2306 = vmatprep.mubr.bf16.mxu0 0
    %2307 = vmatmul.mubr.bf16.gmra.mrb[0].mxu0 %v2165
    %v2308 = vpop.f32.mrb[0].mxu0
    %v2309 = vadd.f32 %v2169, %v2308
    %v2310 = vpop.f32.mrb[0].mxu0
    %v2311 = vpop.f32.mrb[0].mxu0
    %v2312 = vadd.f32 %v2169, %v2311
    %v2313 = vpop.f32.mrb[0].mxu0
    %2314 = vdwg.mxu0
    %v2315 = vmax.f32 %v2253, 0.0
    %v2316 = vmax.f32 %v2256, 0.0
    %v2317 = vmax.f32 %v2261, 0.0
    %v2318 = vmax.f32 %v2264, 0.0
    %v2319 = vmax.f32 %v2269, 0.0
    %v2320 = vmax.f32 %v2272, 0.0
    %v2321 = vmax.f32 %v2277, 0.0
    %v2322 = vmax.f32 %v2280, 0.0
    %v2323 = vmax.f32 %v2285, 0.0
    %v2324 = vmax.f32 %v2288, 0.0
    %v2325 = vmax.f32 %v2293, 0.0
    %v2326 = vmax.f32 %v2296, 0.0
    %v2327 = vmax.f32 %v2301, 0.0
    %v2328 = vmax.f32 %v2304, 0.0
    %v2329 = vmax.f32 %v2309, 0.0
    %v2330 = vmax.f32 %v2312, 0.0
    %v2331 = vpack.c.bf16 %v2316, %v2315
    %v2332 = vpack.c.bf16 %v2318, %v2317
    %v2333 = vpack.c.bf16 %v2320, %v2319
    %v2334 = vpack.c.bf16 %v2322, %v2321
    %v2335 = vpack.c.bf16 %v2324, %v2323
    %v2336 = vpack.c.bf16 %v2326, %v2325
    %v2337 = vpack.c.bf16 %v2328, %v2327
    %v2338 = vpack.c.bf16 %v2330, %v2329
    %v2339 = vlaneseq
    %v2340 = vshrl.u32 %v2339, 7
    %v2341 = vsub.s32 5, %v2340
    %v2342 = vrot.slane %v641, %v2341
    %v2359 = vunpack.c.l.b16 %v609
    %v2360 = vunpack.c.l.b16 %v610
    %v2361 = vunpack.c.l.b16 %v611
    %v2362 = vunpack.c.l.b16 %v612
    %v2363 = vunpack.c.l.b16 %v613
    %v2364 = vunpack.c.l.b16 %v614
    %v2365 = vunpack.c.l.b16 %v615
    %v2366 = vunpack.c.l.b16 %v616
    %v2367 = vunpack.c.l.b16 %v617
    %v2368 = vunpack.c.l.b16 %v618
    %v2369 = vunpack.c.l.b16 %v619
    %v2370 = vunpack.c.l.b16 %v620
    %v2371 = vunpack.c.l.b16 %v621
    %v2372 = vunpack.c.l.b16 %v622
    %v2373 = vunpack.c.l.b16 %v623
    %v2374 = vunpack.c.l.b16 %v624
    %v2375 = vpack.c.b16 %v2360, %v2359
    %v2376 = vpack.c.b16 %v2362, %v2361
    %v2377 = vpack.c.b16 %v2364, %v2363
    %v2378 = vpack.c.b16 %v2366, %v2365
    %v2379 = vpack.c.b16 %v2368, %v2367
    %v2380 = vpack.c.b16 %v2370, %v2369
    %v2381 = vpack.c.b16 %v2372, %v2371
    %v2382 = vpack.c.b16 %v2374, %v2373
    %2391 = vmatprep.subr.bf16.mxu0 0
    %2392 = vmatpush1.bf16.msra.mxu0 %v2375
    %2393 = vmatprep.subr.bf16.mxu0 0
    %2394 = vmatpush1.bf16.msra.mxu0 %v2376
    %2395 = vmatprep.subr.bf16.mxu0 0
    %2396 = vmatpush1.bf16.msra.mxu0 %v2377
    %2397 = vmatprep.subr.bf16.mxu0 0
    %2398 = vmatpush1.bf16.msra.mxu0 %v2378
    %2399 = vmatprep.subr.bf16.mxu0 0
    %2400 = vmatpush1.bf16.msra.mxu0 %v2379
    %2401 = vmatprep.subr.bf16.mxu0 0
    %2402 = vmatpush1.bf16.msra.mxu0 %v2380
    %2403 = vmatprep.subr.bf16.mxu0 0
    %2404 = vmatpush1.bf16.msra.mxu0 %v2381
    %2405 = vmatprep.subr.bf16.mxu0 0
    %2406 = vmatpush1.bf16.msra.mxu0 %v2382
    %2407 = vmatprep.subr.bf16.mxu0 0
    %2408 = vmatpush1.bf16.msra.mxu0 0
    %2409 = vmatprep.subr.bf16.mxu0 0
    %2410 = vmatpush1.bf16.msra.mxu0 0
    %2411 = vmatprep.subr.bf16.mxu0 0
    %2412 = vmatpush1.bf16.msra.mxu0 0
    %2413 = vmatprep.subr.bf16.mxu0 0
    %2414 = vmatpush1.bf16.msra.mxu0 0
    %2415 = vmatprep.subr.bf16.mxu0 0
    %2416 = vmatpush1.bf16.msra.mxu0 0
    %2417 = vmatprep.subr.bf16.mxu0 0
    %2418 = vmatpush1.bf16.msra.mxu0 0
    %2419 = vmatprep.subr.bf16.mxu0 0
    %2420 = vmatpush1.bf16.msra.mxu0 0
    %2421 = vmatprep.subr.bf16.mxu0 0
    %2422 = vmatpush1.bf16.msra.mxu0 0
    %2423 = vmatprep.mubr.bf16.mxu0 0
    %2424 = vmatmul.mubr.bf16.gmra.mrb[0].mxu0 %v2331
    %v2425 = vpop.f32.mrb[0].mxu0
    %v2426 = vadd.f32 %v2342, %v2425
    %v2427 = vpop.f32.mrb[0].mxu0
    %v2428 = vpop.f32.mrb[0].mxu0
    %v2429 = vadd.f32 %v2342, %v2428
    %v2430 = vpop.f32.mrb[0].mxu0
    %2431 = vmatprep.mubr.bf16.mxu0 0
    %2432 = vmatmul.mubr.bf16.gmra.mrb[0].mxu0 %v2332
    %v2433 = vpop.f32.mrb[0].mxu0
    %v2434 = vadd.f32 %v2342, %v2433
    %v2435 = vpop.f32.mrb[0].mxu0
    %v2436 = vpop.f32.mrb[0].mxu0
    %v2437 = vadd.f32 %v2342, %v2436
    %v2438 = vpop.f32.mrb[0].mxu0
    %2439 = vmatprep.mubr.bf16.mxu0 0
    %2440 = vmatmul.mubr.bf16.gmra.mrb[0].mxu0 %v2333
    %v2441 = vpop.f32.mrb[0].mxu0
    %v2442 = vadd.f32 %v2342, %v2441
    %v2443 = vpop.f32.mrb[0].mxu0
    %v2444 = vpop.f32.mrb[0].mxu0
    %v2445 = vadd.f32 %v2342, %v2444
    %v2446 = vpop.f32.mrb[0].mxu0
    %2447 = vmatprep.mubr.bf16.mxu0 0
    %2448 = vmatmul.mubr.bf16.gmra.mrb[0].mxu0 %v2334
    %v2449 = vpop.f32.mrb[0].mxu0
    %v2450 = vadd.f32 %v2342, %v2449
    %v2451 = vpop.f32.mrb[0].mxu0
    %v2452 = vpop.f32.mrb[0].mxu0
    %v2453 = vadd.f32 %v2342, %v2452
    %v2454 = vpop.f32.mrb[0].mxu0
    %2455 = vmatprep.mubr.bf16.mxu0 0
    %2456 = vmatmul.mubr.bf16.gmra.mrb[0].mxu0 %v2335
    %v2457 = vpop.f32.mrb[0].mxu0
    %v2458 = vadd.f32 %v2342, %v2457
    %v2459 = vpop.f32.mrb[0].mxu0
    %v2460 = vpop.f32.mrb[0].mxu0
    %v2461 = vadd.f32 %v2342, %v2460
    %v2462 = vpop.f32.mrb[0].mxu0
    %2463 = vmatprep.mubr.bf16.mxu0 0
    %2464 = vmatmul.mubr.bf16.gmra.mrb[0].mxu0 %v2336
    %v2465 = vpop.f32.mrb[0].mxu0
    %v2466 = vadd.f32 %v2342, %v2465
    %v2467 = vpop.f32.mrb[0].mxu0
    %v2468 = vpop.f32.mrb[0].mxu0
    %v2469 = vadd.f32 %v2342, %v2468
    %v2470 = vpop.f32.mrb[0].mxu0
    %2471 = vmatprep.mubr.bf16.mxu0 0
    %2472 = vmatmul.mubr.bf16.gmra.mrb[0].mxu0 %v2337
    %v2473 = vpop.f32.mrb[0].mxu0
    %v2474 = vadd.f32 %v2342, %v2473
    %v2475 = vpop.f32.mrb[0].mxu0
    %v2476 = vpop.f32.mrb[0].mxu0
    %v2477 = vadd.f32 %v2342, %v2476
    %v2478 = vpop.f32.mrb[0].mxu0
    %2479 = vmatprep.mubr.bf16.mxu0 0
    %2480 = vmatmul.mubr.bf16.gmra.mrb[0].mxu0 %v2338
    %v2481 = vpop.f32.mrb[0].mxu0
    %v2482 = vadd.f32 %v2342, %v2481
    %v2483 = vpop.f32.mrb[0].mxu0
    %v2484 = vpop.f32.mrb[0].mxu0
    %v2485 = vadd.f32 %v2342, %v2484
    %v2486 = vpop.f32.mrb[0].mxu0
    %2487 = vdwg.mxu0
    %v2488 = vmax.f32 %v2426, 0.0
    %v2489 = vmax.f32 %v2429, 0.0
    %v2490 = vmax.f32 %v2434, 0.0
    %v2491 = vmax.f32 %v2437, 0.0
    %v2492 = vmax.f32 %v2442, 0.0
    %v2493 = vmax.f32 %v2445, 0.0
    %v2494 = vmax.f32 %v2450, 0.0
    %v2495 = vmax.f32 %v2453, 0.0
    %v2496 = vmax.f32 %v2458, 0.0
    %v2497 = vmax.f32 %v2461, 0.0
    %v2498 = vmax.f32 %v2466, 0.0
    %v2499 = vmax.f32 %v2469, 0.0
    %v2500 = vmax.f32 %v2474, 0.0
    %v2501 = vmax.f32 %v2477, 0.0
    %v2502 = vmax.f32 %v2482, 0.0
    %v2503 = vmax.f32 %v2485, 0.0
    %v2504 = vpack.c.bf16 %v2489, %v2488
    %v2505 = vpack.c.bf16 %v2491, %v2490
    %v2506 = vpack.c.bf16 %v2493, %v2492
    %v2507 = vpack.c.bf16 %v2495, %v2494
    %v2508 = vpack.c.bf16 %v2497, %v2496
    %v2509 = vpack.c.bf16 %v2499, %v2498
    %v2510 = vpack.c.bf16 %v2501, %v2500
    %v2511 = vpack.c.bf16 %v2503, %v2502
    %v2512 = vlaneseq
    %v2513 = vshrl.u32 %v2512, 7
    %v2514 = vsub.s32 7, %v2513
    %v2515 = vrot.slane %v641, %v2514
    %v2532 = vunpack.c.l.b16 %v625
    %v2533 = vunpack.c.l.b16 %v626
    %v2534 = vunpack.c.l.b16 %v627
    %v2535 = vunpack.c.l.b16 %v628
    %v2536 = vunpack.c.l.b16 %v629
    %v2537 = vunpack.c.l.b16 %v630
    %v2538 = vunpack.c.l.b16 %v631
    %v2539 = vunpack.c.l.b16 %v632
    %v2540 = vunpack.c.l.b16 %v633
    %v2541 = vunpack.c.l.b16 %v634
    %v2542 = vunpack.c.l.b16 %v635
    %v2543 = vunpack.c.l.b16 %v636
    %v2544 = vunpack.c.l.b16 %v637
    %v2545 = vunpack.c.l.b16 %v638
    %v2546 = vunpack.c.l.b16 %v639
    %v2547 = vunpack.c.l.b16 %v640
    %v2548 = vpack.c.b16 %v2533, %v2532
    %v2549 = vpack.c.b16 %v2535, %v2534
    %v2550 = vpack.c.b16 %v2537, %v2536
    %v2551 = vpack.c.b16 %v2539, %v2538
    %v2552 = vpack.c.b16 %v2541, %v2540
    %v2553 = vpack.c.b16 %v2543, %v2542
    %v2554 = vpack.c.b16 %v2545, %v2544
    %v2555 = vpack.c.b16 %v2547, %v2546
    %2564 = vmatprep.subr.bf16.mxu0 0
    %2565 = vmatpush1.bf16.msra.mxu0 %v2548
    %2566 = vmatprep.subr.bf16.mxu0 0
    %2567 = vmatpush1.bf16.msra.mxu0 %v2549
    %2568 = vmatprep.subr.bf16.mxu0 0
    %2569 = vmatpush1.bf16.msra.mxu0 %v2550
    %2570 = vmatprep.subr.bf16.mxu0 0
    %2571 = vmatpush1.bf16.msra.mxu0 %v2551
    %2572 = vmatprep.subr.bf16.mxu0 0
    %2573 = vmatpush1.bf16.msra.mxu0 %v2552
    %2574 = vmatprep.subr.bf16.mxu0 0
    %2575 = vmatpush1.bf16.msra.mxu0 %v2553
    %2576 = vmatprep.subr.bf16.mxu0 0
    %2577 = vmatpush1.bf16.msra.mxu0 %v2554
    %2578 = vmatprep.subr.bf16.mxu0 0
    %2579 = vmatpush1.bf16.msra.mxu0 %v2555
    %2580 = vmatprep.subr.bf16.mxu0 0
    %2581 = vmatpush1.bf16.msra.mxu0 0
    %2582 = vmatprep.subr.bf16.mxu0 0
    %2583 = vmatpush1.bf16.msra.mxu0 0
    %2584 = vmatprep.subr.bf16.mxu0 0
    %2585 = vmatpush1.bf16.msra.mxu0 0
    %2586 = vmatprep.subr.bf16.mxu0 0
    %2587 = vmatpush1.bf16.msra.mxu0 0
    %2588 = vmatprep.subr.bf16.mxu0 0
    %2589 = vmatpush1.bf16.msra.mxu0 0
    %2590 = vmatprep.subr.bf16.mxu0 0
    %2591 = vmatpush1.bf16.msra.mxu0 0
    %2592 = vmatprep.subr.bf16.mxu0 0
    %2593 = vmatpush1.bf16.msra.mxu0 0
    %2594 = vmatprep.subr.bf16.mxu0 0
    %2595 = vmatpush1.bf16.msra.mxu0 0
    %2596 = vmatprep.mubr.bf16.mxu0 0
    %2597 = vmatmul.mubr.bf16.gmra.mrb[0].mxu0 %v2504
    %v2598 = vpop.f32.mrb[0].mxu0
    %v2599 = vadd.f32 %v2515, %v2598
    %v2600 = vpop.f32.mrb[0].mxu0
    %v2601 = vpop.f32.mrb[0].mxu0
    %v2602 = vadd.f32 %v2515, %v2601
    %v2603 = vpop.f32.mrb[0].mxu0
    %2604 = vmatprep.mubr.bf16.mxu0 0
    %2605 = vmatmul.mubr.bf16.gmra.mrb[0].mxu0 %v2505
    %v2606 = vpop.f32.mrb[0].mxu0
    %v2607 = vadd.f32 %v2515, %v2606
    %v2608 = vpop.f32.mrb[0].mxu0
    %v2609 = vpop.f32.mrb[0].mxu0
    %v2610 = vadd.f32 %v2515, %v2609
    %v2611 = vpop.f32.mrb[0].mxu0
    %2612 = vmatprep.mubr.bf16.mxu0 0
    %2613 = vmatmul.mubr.bf16.gmra.mrb[0].mxu0 %v2506
    %v2614 = vpop.f32.mrb[0].mxu0
    %v2615 = vadd.f32 %v2515, %v2614
    %v2616 = vpop.f32.mrb[0].mxu0
    %v2617 = vpop.f32.mrb[0].mxu0
    %v2618 = vadd.f32 %v2515, %v2617
    %v2619 = vpop.f32.mrb[0].mxu0
    %2620 = vmatprep.mubr.bf16.mxu0 0
    %2621 = vmatmul.mubr.bf16.gmra.mrb[0].mxu0 %v2507
    %v2622 = vpop.f32.mrb[0].mxu0
    %v2623 = vadd.f32 %v2515, %v2622
    %v2624 = vpop.f32.mrb[0].mxu0
    %v2625 = vpop.f32.mrb[0].mxu0
    %v2626 = vadd.f32 %v2515, %v2625
    %v2627 = vpop.f32.mrb[0].mxu0
    %2628 = vmatprep.mubr.bf16.mxu0 0
    %2629 = vmatmul.mubr.bf16.gmra.mrb[0].mxu0 %v2508
    %v2630 = vpop.f32.mrb[0].mxu0
    %v2631 = vadd.f32 %v2515, %v2630
    %v2632 = vpop.f32.mrb[0].mxu0
    %v2633 = vpop.f32.mrb[0].mxu0
    %v2634 = vadd.f32 %v2515, %v2633
    %v2635 = vpop.f32.mrb[0].mxu0
    %2636 = vmatprep.mubr.bf16.mxu0 0
    %2637 = vmatmul.mubr.bf16.gmra.mrb[0].mxu0 %v2509
    %v2638 = vpop.f32.mrb[0].mxu0
    %v2639 = vadd.f32 %v2515, %v2638
    %v2640 = vpop.f32.mrb[0].mxu0
    %v2641 = vpop.f32.mrb[0].mxu0
    %v2642 = vadd.f32 %v2515, %v2641
    %v2643 = vpop.f32.mrb[0].mxu0
    %2644 = vmatprep.mubr.bf16.mxu0 0
    %2645 = vmatmul.mubr.bf16.gmra.mrb[0].mxu0 %v2510
    %v2646 = vpop.f32.mrb[0].mxu0
    %v2647 = vadd.f32 %v2515, %v2646
    %v2648 = vpop.f32.mrb[0].mxu0
    %v2649 = vpop.f32.mrb[0].mxu0
    %v2650 = vadd.f32 %v2515, %v2649
    %v2651 = vpop.f32.mrb[0].mxu0
    %2652 = vmatprep.mubr.bf16.mxu0 0
    %2653 = vmatmul.mubr.bf16.gmra.mrb[0].mxu0 %v2511
    %v2654 = vpop.f32.mrb[0].mxu0
    %v2655 = vadd.f32 %v2515, %v2654
    %v2656 = vpop.f32.mrb[0].mxu0
    %v2657 = vpop.f32.mrb[0].mxu0
    %v2658 = vadd.f32 %v2515, %v2657
    %v2659 = vpop.f32.mrb[0].mxu0
    %2660 = vdwg.mxu0
    %v2661 = vmul.f32 %v2599, %v2599
    %v2662 = vmul.f32 %v2602, %v2602
    %v2663 = vmul.f32 %v2607, %v2607
    %v2664 = vmul.f32 %v2610, %v2610
    %v2665 = vmul.f32 %v2615, %v2615
    %v2666 = vmul.f32 %v2618, %v2618
    %v2667 = vmul.f32 %v2623, %v2623
    %v2668 = vmul.f32 %v2626, %v2626
    %v2669 = vmul.f32 %v2631, %v2631
    %v2670 = vmul.f32 %v2634, %v2634
    %v2671 = vmul.f32 %v2639, %v2639
    %v2672 = vmul.f32 %v2642, %v2642
    %v2673 = vmul.f32 %v2647, %v2647
    %v2674 = vmul.f32 %v2650, %v2650
    %v2675 = vmul.f32 %v2655, %v2655
    %v2676 = vmul.f32 %v2658, %v2658
    %2677 = vadd.xlane.f32.xlu0 %v2661
    %v2678 = vpop.xlane.xlu0 %2677
    %2679 = vadd.xlane.f32.xlu0 %v2662
    %v2680 = vpop.xlane.xlu0 %2679
    %2681 = vadd.xlane.f32.xlu0 %v2663
    %v2682 = vpop.xlane.xlu0 %2681
    %2683 = vadd.xlane.f32.xlu0 %v2664
    %v2684 = vpop.xlane.xlu0 %2683
    %2685 = vadd.xlane.f32.xlu0 %v2665
    %v2686 = vpop.xlane.xlu0 %2685
    %2687 = vadd.xlane.f32.xlu0 %v2666
    %v2688 = vpop.xlane.xlu0 %2687
    %2689 = vadd.xlane.f32.xlu0 %v2667
    %v2690 = vpop.xlane.xlu0 %2689
    %2691 = vadd.xlane.f32.xlu0 %v2668
    %v2692 = vpop.xlane.xlu0 %2691
    %2693 = vadd.xlane.f32.xlu0 %v2669
    %v2694 = vpop.xlane.xlu0 %2693
    %2695 = vadd.xlane.f32.xlu0 %v2670
    %v2696 = vpop.xlane.xlu0 %2695
    %2697 = vadd.xlane.f32.xlu0 %v2671
    %v2698 = vpop.xlane.xlu0 %2697
    %2699 = vadd.xlane.f32.xlu0 %v2672
    %v2700 = vpop.xlane.xlu0 %2699
    %2701 = vadd.xlane.f32.xlu0 %v2673
    %v2702 = vpop.xlane.xlu0 %2701
    %2703 = vadd.xlane.f32.xlu0 %v2674
    %v2704 = vpop.xlane.xlu0 %2703
    %2705 = vadd.xlane.f32.xlu0 %v2675
    %v2706 = vpop.xlane.xlu0 %2705
    %2707 = vadd.xlane.f32.xlu0 %v2676
    %v2708 = vpop.xlane.xlu0 %2707
    %2709 = vset.pattern.permute.xlu0 0
    %2710 = vperm.xlu0 %2709, %v658
    %v2711 = vpop.permute.xlu0 %2710
    %2712 = vset.pattern.permute.xlu0 0
    %2713 = vperm.xlu0 %2712, %v659
    %v2714 = vpop.permute.xlu0 %2713
    %2715 = vset.pattern.permute.xlu0 0
    %2716 = vperm.xlu0 %2715, %v660
    %v2717 = vpop.permute.xlu0 %2716
    %2718 = vset.pattern.permute.xlu0 0
    %2719 = vperm.xlu0 %2718, %v661
    %v2720 = vpop.permute.xlu0 %2719
    %2721 = vset.pattern.permute.xlu0 0
    %2722 = vperm.xlu0 %2721, %v662
    %v2723 = vpop.permute.xlu0 %2722
    %2724 = vset.pattern.permute.xlu0 0
    %2725 = vperm.xlu0 %2724, %v663
    %v2726 = vpop.permute.xlu0 %2725
    %2727 = vset.pattern.permute.xlu0 0
    %2728 = vperm.xlu0 %2727, %v664
    %v2729 = vpop.permute.xlu0 %2728
    %2730 = vset.pattern.permute.xlu0 0
    %2731 = vperm.xlu0 %2730, %v665
    %v2732 = vpop.permute.xlu0 %2731
    %2733 = vset.pattern.permute.xlu0 0
    %2734 = vperm.xlu0 %2733, %v666
    %v2735 = vpop.permute.xlu0 %2734
    %2736 = vset.pattern.permute.xlu0 0
    %2737 = vperm.xlu0 %2736, %v667
    %v2738 = vpop.permute.xlu0 %2737
    %2739 = vset.pattern.permute.xlu0 0
    %2740 = vperm.xlu0 %2739, %v668
    %v2741 = vpop.permute.xlu0 %2740
    %2742 = vset.pattern.permute.xlu0 0
    %2743 = vperm.xlu0 %2742, %v669
    %v2744 = vpop.permute.xlu0 %2743
    %2745 = vset.pattern.permute.xlu0 0
    %2746 = vperm.xlu0 %2745, %v670
    %v2747 = vpop.permute.xlu0 %2746
    %2748 = vset.pattern.permute.xlu0 0
    %2749 = vperm.xlu0 %2748, %v671
    %v2750 = vpop.permute.xlu0 %2749
    %2751 = vset.pattern.permute.xlu0 0
    %2752 = vperm.xlu0 %2751, %v672
    %v2753 = vpop.permute.xlu0 %2752
    %2754 = vset.pattern.permute.xlu0 0
    %2755 = vperm.xlu0 %2754, %v673
    %v2756 = vpop.permute.xlu0 %2755
    %vm2757 = vcmp.eq.s32.totalorder %v62, %v2711
    %vm2758 = vcmp.eq.s32.totalorder %v62, %v2714
    %vm2759 = vcmp.eq.s32.totalorder %v62, %v2717
    %vm2760 = vcmp.eq.s32.totalorder %v62, %v2720
    %vm2761 = vcmp.eq.s32.totalorder %v62, %v2723
    %vm2762 = vcmp.eq.s32.totalorder %v62, %v2726
    %vm2763 = vcmp.eq.s32.totalorder %v62, %v2729
    %vm2764 = vcmp.eq.s32.totalorder %v62, %v2732
    %vm2765 = vcmp.eq.s32.totalorder %v62, %v2735
    %vm2766 = vcmp.eq.s32.totalorder %v62, %v2738
    %vm2767 = vcmp.eq.s32.totalorder %v62, %v2741
    %vm2768 = vcmp.eq.s32.totalorder %v62, %v2744
    %vm2769 = vcmp.eq.s32.totalorder %v62, %v2747
    %vm2770 = vcmp.eq.s32.totalorder %v62, %v2750
    %vm2771 = vcmp.eq.s32.totalorder %v62, %v2753
    %vm2772 = vcmp.eq.s32.totalorder %v62, %v2756
    %v2773 = vsel %vm2757, %v2599, 0.0
    %v2774 = vsel %vm2758, %v2602, 0.0
    %v2775 = vsel %vm2759, %v2607, 0.0
    %v2776 = vsel %vm2760, %v2610, 0.0
    %v2777 = vsel %vm2761, %v2615, 0.0
    %v2778 = vsel %vm2762, %v2618, 0.0
    %v2779 = vsel %vm2763, %v2623, 0.0
    %v2780 = vsel %vm2764, %v2626, 0.0
    %v2781 = vsel %vm2765, %v2631, 0.0
    %v2782 = vsel %vm2766, %v2634, 0.0
    %v2783 = vsel %vm2767, %v2639, 0.0
    %v2784 = vsel %vm2768, %v2642, 0.0
    %v2785 = vsel %vm2769, %v2647, 0.0
    %v2786 = vsel %vm2770, %v2650, 0.0
    %v2787 = vsel %vm2771, %v2655, 0.0
    %v2788 = vsel %vm2772, %v2658, 0.0
    %2789 = vadd.xlane.f32.xlu0 %v2773
    %v2790 = vpop.xlane.xlu0 %2789
    %2791 = vadd.xlane.f32.xlu0 %v2774
    %v2792 = vpop.xlane.xlu0 %2791
    %2793 = vadd.xlane.f32.xlu0 %v2775
    %v2794 = vpop.xlane.xlu0 %2793
    %2795 = vadd.xlane.f32.xlu0 %v2776
    %v2796 = vpop.xlane.xlu0 %2795
    %2797 = vadd.xlane.f32.xlu0 %v2777
    %v2798 = vpop.xlane.xlu0 %2797
    %2799 = vadd.xlane.f32.xlu0 %v2778
    %v2800 = vpop.xlane.xlu0 %2799
    %2801 = vadd.xlane.f32.xlu0 %v2779
    %v2802 = vpop.xlane.xlu0 %2801
    %2803 = vadd.xlane.f32.xlu0 %v2780
    %v2804 = vpop.xlane.xlu0 %2803
    %2805 = vadd.xlane.f32.xlu0 %v2781
    %v2806 = vpop.xlane.xlu0 %2805
    %2807 = vadd.xlane.f32.xlu0 %v2782
    %v2808 = vpop.xlane.xlu0 %2807
    %2809 = vadd.xlane.f32.xlu0 %v2783
    %v2810 = vpop.xlane.xlu0 %2809
    %2811 = vadd.xlane.f32.xlu0 %v2784
    %v2812 = vpop.xlane.xlu0 %2811
    %2813 = vadd.xlane.f32.xlu0 %v2785
    %v2814 = vpop.xlane.xlu0 %2813
    %2815 = vadd.xlane.f32.xlu0 %v2786
    %v2816 = vpop.xlane.xlu0 %2815
    %2817 = vadd.xlane.f32.xlu0 %v2787
    %v2818 = vpop.xlane.xlu0 %2817
    %2819 = vadd.xlane.f32.xlu0 %v2788
    %v2820 = vpop.xlane.xlu0 %2819
    %v2821 = vmax.f32 %v2678, 1e-24
    %v2822 = vmax.f32 %v2680, 1e-24
    %v2823 = vmax.f32 %v2682, 1e-24
    %v2824 = vmax.f32 %v2684, 1e-24
    %v2825 = vmax.f32 %v2686, 1e-24
    %v2826 = vmax.f32 %v2688, 1e-24
    %v2827 = vmax.f32 %v2690, 1e-24
    %v2828 = vmax.f32 %v2692, 1e-24
    %v2829 = vmax.f32 %v2694, 1e-24
    %v2830 = vmax.f32 %v2696, 1e-24
    %v2831 = vmax.f32 %v2698, 1e-24
    %v2832 = vmax.f32 %v2700, 1e-24
    %v2833 = vmax.f32 %v2702, 1e-24
    %v2834 = vmax.f32 %v2704, 1e-24
    %v2835 = vmax.f32 %v2706, 1e-24
    %v2836 = vmax.f32 %v2708, 1e-24
    %v2837 = vrsqrt.pop %v2821
    %v2838 = vrsqrt.pop %v2822
    %v2839 = vrsqrt.pop %v2823
    %v2840 = vrsqrt.pop %v2824
    %v2841 = vrsqrt.pop %v2825
    %v2842 = vrsqrt.pop %v2826
    %v2843 = vrsqrt.pop %v2827
    %v2844 = vrsqrt.pop %v2828
    %v2845 = vrsqrt.pop %v2829
    %v2846 = vrsqrt.pop %v2830
    %v2847 = vrsqrt.pop %v2831
    %v2848 = vrsqrt.pop %v2832
    %v2849 = vrsqrt.pop %v2833
    %v2850 = vrsqrt.pop %v2834
    %v2851 = vrsqrt.pop %v2835
    %v2852 = vrsqrt.pop %v2836
    %v2853 = vmul.f32 %v2790, %v2837
    %v2854 = vmul.f32 %v2792, %v2838
    %v2855 = vmul.f32 %v2794, %v2839
    %v2856 = vmul.f32 %v2796, %v2840
    %v2857 = vmul.f32 %v2798, %v2841
    %v2858 = vmul.f32 %v2800, %v2842
    %v2859 = vmul.f32 %v2802, %v2843
    %v2860 = vmul.f32 %v2804, %v2844
    %v2861 = vmul.f32 %v2806, %v2845
    %v2862 = vmul.f32 %v2808, %v2846
    %v2863 = vmul.f32 %v2810, %v2847
    %v2864 = vmul.f32 %v2812, %v2848
    %v2865 = vmul.f32 %v2814, %v2849
    %v2866 = vmul.f32 %v2816, %v2850
    %v2867 = vmul.f32 %v2818, %v2851
    %v2868 = vmul.f32 %v2820, %v2852
    %v2869 = vsub.f32 1.0, %v2853
    %v2870 = vsub.f32 1.0, %v2854
    %v2871 = vsub.f32 1.0, %v2855
    %v2872 = vsub.f32 1.0, %v2856
    %v2873 = vsub.f32 1.0, %v2857
    %v2874 = vsub.f32 1.0, %v2858
    %v2875 = vsub.f32 1.0, %v2859
    %v2876 = vsub.f32 1.0, %v2860
    %v2877 = vsub.f32 1.0, %v2861
    %v2878 = vsub.f32 1.0, %v2862
    %v2879 = vsub.f32 1.0, %v2863
    %v2880 = vsub.f32 1.0, %v2864
    %v2881 = vsub.f32 1.0, %v2865
    %v2882 = vsub.f32 1.0, %v2866
    %v2883 = vsub.f32 1.0, %v2867
    %v2884 = vsub.f32 1.0, %v2868
    %v2885 = vmul.f32 %v2869, %v674
    %v2886 = vmul.f32 %v2870, %v675
    %v2887 = vmul.f32 %v2871, %v676
    %v2888 = vmul.f32 %v2872, %v677
    %v2889 = vmul.f32 %v2873, %v678
    %v2890 = vmul.f32 %v2874, %v679
    %v2891 = vmul.f32 %v2875, %v680
    %v2892 = vmul.f32 %v2876, %v681
    %v2893 = vmul.f32 %v2877, %v682
    %v2894 = vmul.f32 %v2878, %v683
    %v2895 = vmul.f32 %v2879, %v684
    %v2896 = vmul.f32 %v2880, %v685
    %v2897 = vmul.f32 %v2881, %v686
    %v2898 = vmul.f32 %v2882, %v687
    %v2899 = vmul.f32 %v2883, %v688
    %v2900 = vmul.f32 %v2884, %v689
    %vm2901 = vcmask 7168
    %v2902 = vsel %vm2901, %v2885, 0.0
    %v2903 = vsel %vm2901, %v2886, 0.0
    %v2904 = vadd.f32 %v2902, %v2903
    %v2905 = vsel %vm2901, %v2887, 0.0
    %v2906 = vadd.f32 %v2904, %v2905
    %v2907 = vsel %vm2901, %v2888, 0.0
    %v2908 = vadd.f32 %v2906, %v2907
    %v2909 = vsel %vm2901, %v2889, 0.0
    %v2910 = vadd.f32 %v2908, %v2909
    %v2911 = vsel %vm2901, %v2890, 0.0
    %v2912 = vadd.f32 %v2910, %v2911
    %v2913 = vsel %vm2901, %v2891, 0.0
    %v2914 = vadd.f32 %v2912, %v2913
    %v2915 = vsel %vm2901, %v2892, 0.0
    %v2916 = vadd.f32 %v2914, %v2915
    %v2917 = vsel %vm2901, %v2893, 0.0
    %v2918 = vadd.f32 %v2916, %v2917
    %v2919 = vsel %vm2901, %v2894, 0.0
    %v2920 = vadd.f32 %v2918, %v2919
    %v2921 = vsel %vm2901, %v2895, 0.0
    %v2922 = vadd.f32 %v2920, %v2921
    %v2923 = vsel %vm2901, %v2896, 0.0
    %v2924 = vadd.f32 %v2922, %v2923
    %v2925 = vsel %vm2901, %v2897, 0.0
    %v2926 = vadd.f32 %v2924, %v2925
    %v2927 = vsel %vm2901, %v2898, 0.0
    %v2928 = vadd.f32 %v2926, %v2927
    %v2929 = vsel %vm2901, %v2899, 0.0
    %v2930 = vadd.f32 %v2928, %v2929
    %v2931 = vsel %vm2901, %v2900, 0.0
    %v2932 = vadd.f32 %v2930, %v2931
    %2933 = vadd.xlane.f32.xlu0 %v2932
    %v2934 = vpop.xlane.xlu0 %2933
    %v2935 = vrot.slane %v2934, 4
    %v2936 = vadd.f32 %v2934, %v2935
    %v2937 = vrot.slane %v2936, 2
    %v2938 = vadd.f32 %v2936, %v2937
    %v2939 = vrot.slane %v2938, 1
    %v2940 = vadd.f32 %v2938, %v2939
    %s2941 = vtos %v2940
    %v2942 = vsel %vm2901, %v674, 0.0
    %v2943 = vsel %vm2901, %v675, 0.0
    %v2944 = vadd.f32 %v2942, %v2943
    %v2945 = vsel %vm2901, %v676, 0.0
    %v2946 = vadd.f32 %v2944, %v2945
    %v2947 = vsel %vm2901, %v677, 0.0
    %v2948 = vadd.f32 %v2946, %v2947
    %v2949 = vsel %vm2901, %v678, 0.0
    %v2950 = vadd.f32 %v2948, %v2949
    %v2951 = vsel %vm2901, %v679, 0.0
    %v2952 = vadd.f32 %v2950, %v2951
    %v2953 = vsel %vm2901, %v680, 0.0
    %v2954 = vadd.f32 %v2952, %v2953
    %v2955 = vsel %vm2901, %v681, 0.0
    %v2956 = vadd.f32 %v2954, %v2955
    %v2957 = vsel %vm2901, %v682, 0.0
    %v2958 = vadd.f32 %v2956, %v2957
    %v2959 = vsel %vm2901, %v683, 0.0
    %v2960 = vadd.f32 %v2958, %v2959
    %v2961 = vsel %vm2901, %v684, 0.0
    %v2962 = vadd.f32 %v2960, %v2961
    %v2963 = vsel %vm2901, %v685, 0.0
    %v2964 = vadd.f32 %v2962, %v2963
    %v2965 = vsel %vm2901, %v686, 0.0
    %v2966 = vadd.f32 %v2964, %v2965
    %v2967 = vsel %vm2901, %v687, 0.0
    %v2968 = vadd.f32 %v2966, %v2967
    %v2969 = vsel %vm2901, %v688, 0.0
    %v2970 = vadd.f32 %v2968, %v2969
    %v2971 = vsel %vm2901, %v689, 0.0
    %v2972 = vadd.f32 %v2970, %v2971
    %2973 = vadd.xlane.f32.xlu0 %v2972
    %v2974 = vpop.xlane.xlu0 %2973
    %v2975 = vrot.slane %v2974, 4
    %v2976 = vadd.f32 %v2974, %v2975
    %v2977 = vrot.slane %v2976, 2
    %v2978 = vadd.f32 %v2976, %v2977
    %v2979 = vrot.slane %v2978, 1
    %v2980 = vadd.f32 %v2978, %v2979
    %s2981 = vtos %v2980
    %s2982 = smax.f32 %s2981, 1.0
    %v2983 = vstv %s2982
    %v2984 = vrcp.pop %v2983
    %s2985 = vtos %v2984
    %s2986 = smul.f32 %s2941, %s2985
    %v2987 = vstv %s2986
    %2988 = vst [vmem:[#allocation2] sm:$0x1] %v2987
    // Predicated region
    $region30: #{graphmae_pretrainer_forward.1} parent=1 // pred_check
      _
    $region31: #{graphmae_pretrainer_forward.1} parent=1 // pred_check_branch
      %2990 = sbr.rel (0) target = $region33
    $region32: #{graphmae_pretrainer_forward.1} parent=1 // pred_region
      %s2992 = ssub.s32 16, 16
      %2993 = vsyncadd [#allocation3], %s2992
      %s2995 = sshll.u32 [#allocation2], 4
      %s2996 = int_to_ptr.vmem [resolvable:$true] %s2995
      %2998 = dma.vmem_to_hbm [thread:$0]  %s2996, 16, %s7, [#allocation3]
    $region33: #{graphmae_pretrainer_forward.1} parent=1 // pred_fallthru
      _
    // Predicated region
    $region34: #{graphmae_pretrainer_forward.1} parent=1 // pred_check
      _
    $region35: #{graphmae_pretrainer_forward.1} parent=1 // pred_check_branch
      %3000 = sbr.rel (0) target = $region37
    $region36: #{graphmae_pretrainer_forward.1} parent=1 // pred_region
      %3001 = dma.done [#allocation3], 16
    $region37: #{graphmae_pretrainer_forward.1} parent=1 // pred_fallthru
      _
    %3002 = vsyncpa [#allocation3], 1

</llo_original>
